<compile_context>
chip_gen: v7x
topology: tpu7x:2x2x1
jax: 0.10.0
libtpu: 0.0.40
codegen_flags: <defaults>
</compile_context>

<pallas_src>
import functools

import jax
import jax.numpy as jnp
from jax import lax
from jax.experimental import pallas as pl
from jax.experimental.pallas import tpu as pltpu

_VMEM_LIMIT = 32 * 1024 * 1024  # safe explicit scoped-VMEM limit on v5e/v6e/v7x


def _leaky(x, slope=0.01):
    return jnp.where(x >= 0, x, slope * x)


# ----------------------------------------------------------------------------
# One-time parameter preparation (hoisted out of the forward pass).
# ----------------------------------------------------------------------------
def prepare_params(params, up_scale):
    s = up_scale
    w1 = params["w1"]                                   # [C, 2C, 3, 3]
    c = w1.shape[0]
    c2 = w1.shape[1]
    # 3x3 conv weights -> [Cout, 9*Cin], column = (dy*3+dx)*Cin + ci  (tap-major, channel-minor)
    w1k = jnp.transpose(w1, (0, 2, 3, 1)).reshape(c, 9 * c2)
    w2k = jnp.transpose(params["w2"], (0, 2, 3, 1)).reshape(c, 9 * c)
    w3m = params["w3"].reshape(c, c)                    # [Cout, Cin]
    # ConvTranspose(k=s=scale): rows ordered (di, dj, co), columns = ci
    wtm = jnp.transpose(params["wt"], (2, 3, 1, 0)).reshape(s * s * c, c)
    btr = jnp.tile(params["bt"], s * s).reshape(s * s * c, 1)
    # transfer_H / transfer_W 1x1 weights, split by the upsample phase (di / dj)
    wh2 = params["wh"].reshape(params["wh"].shape[0], -1)        # [Hc, H2]
    ww2 = params["ww"].reshape(params["ww"].shape[0], -1)        # [Wc, W2]
    hc, h2 = wh2.shape
    wc, w2 = ww2.shape
    whs = jnp.transpose(wh2.reshape(hc, h2 // s, s), (2, 0, 1))  # [s, Hc, H1],  whs[di][hc,i] = wh[hc, i*s+di]
    wws = jnp.transpose(ww2.reshape(wc, w2 // s, s), (2, 1, 0))  # [s, W1, Wc],  wws[dj][j,wc] = ww[wc, j*s+dj]
    return dict(w1k=w1k, w2k=w2k, w3m=w3m, wtm=wtm, btr=btr, whs=whs, wws=wws)


# ----------------------------------------------------------------------------
# Kernel A: conv3x3+LReLU -> conv3x3+LReLU -> conv1x1+LReLU -> ConvT(k=s)+bias+LReLU
# Layout: channels on sublanes, flattened spatial (H*W) on lanes. One image per grid step.
# ----------------------------------------------------------------------------
def _concat_conv_upsample_kernel(x_ref, w1_ref, w2_ref, w3_ref, wt_ref, bt_ref,
                                 o_ref, xpad1, im1, xpad2, im2, *, h, w, slope):
    hw = h * w
    pad = w + 1  # enough zero slack so every vertical out-of-range tap lands in the pad region

    def conv3x3(xpad_ref, im_ref, w_ref, x_val, cin):
        # zero-padded flat row buffer:  [cin, pad | H*W | pad]
        xpad_ref[...] = jnp.zeros(xpad_ref.shape, xpad_ref.dtype)
        xpad_ref[:, pad:pad + hw] = x_val
        jmod = lax.broadcasted_iota(jnp.int32, (cin, hw), 1) % w
        for dy in range(3):
            for dx in range(3):
                off = dy * w + dx
                xs = xpad_ref[:, off:off + hw]
                # horizontal halo: zero the column that wrapped across a row boundary
                if dx == 0:
                    xs = jnp.where(jmod != 0, xs, 0.0)
                elif dx == 2:
                    xs = jnp.where(jmod != w - 1, xs, 0.0)
                t = dy * 3 + dx
                im_ref[t * cin:(t + 1) * cin, :] = xs
        # single K = 9*Cin MXU matmul, f32 accumulation, fused LeakyReLU
        acc = jnp.dot(w_ref[...], im_ref[...], preferred_element_type=jnp.float32)
        return jnp.where(acc >= 0, acc, slope * acc)

    c2 = x_ref.shape[1]          # 2C
    c = w1_ref.shape[0]          # C

    y1 = conv3x3(xpad1, im1, w1_ref, x_ref[0], c2)      # [C, H*W]
    y2 = conv3x3(xpad2, im2, w2_ref, y1, c)             # [C, H*W]

    # 1x1 conv + LeakyReLU
    y3 = jnp.dot(w3_ref[...], y2, preferred_element_type=jnp.float32)
    y3 = jnp.where(y3 >= 0, y3, slope * y3)

    # ConvTranspose2d(k=s=scale): rows = (di, dj, co); + bias, LeakyReLU
    v = jnp.dot(wt_ref[...], y3, preferred_element_type=jnp.float32) + bt_ref[...]
    o_ref[0] = jnp.where(v >= 0, v, slope * v).astype(o_ref.dtype)


def _call_conv_upsample(x_flat, pp, *, h, w, slope):
    b, c2, hw = x_flat.shape
    c = pp["w1k"].shape[0]
    s2c = pp["wtm"].shape[0]
    pad = w + 1
    kernel = functools.partial(_concat_conv_upsample_kernel, h=h, w=w, slope=slope)
    return pl.pallas_call(
        kernel,
        out_shape=jax.ShapeDtypeStruct((b, s2c, hw), x_flat.dtype),
        grid=(b,),
        in_specs=[
            pl.BlockSpec((1, c2, hw), lambda i: (i, 0, 0)),          # streamed image
            pl.BlockSpec(pp["w1k"].shape, lambda i: (0, 0)),         # resident weights
            pl.BlockSpec(pp["w2k"].shape, lambda i: (0, 0)),
            pl.BlockSpec(pp["w3m"].shape, lambda i: (0, 0)),
            pl.BlockSpec(pp["wtm"].shape, lambda i: (0, 0)),
            pl.BlockSpec(pp["btr"].shape, lambda i: (0, 0)),
        ],
        out_specs=pl.BlockSpec((1, s2c, hw), lambda i: (i, 0, 0)),
        scratch_shapes=[
            pltpu.VMEM((c2, hw + 2 * pad), jnp.float32),             # padded flat input (conv1)
            pltpu.VMEM((9 * c2, hw), jnp.float32),                   # im2col (conv1)
            pltpu.VMEM((c, hw + 2 * pad), jnp.float32),              # padded flat input (conv2)
            pltpu.VMEM((9 * c, hw), jnp.float32),                    # im2col (conv2)
        ],
        compiler_params=pltpu.CompilerParams(
            dimension_semantics=("parallel",),
            vmem_limit_bytes=_VMEM_LIMIT,
        ),
    )(x_flat, pp["w1k"], pp["w2k"], pp["w3m"], pp["wtm"], pp["btr"])


# ----------------------------------------------------------------------------
# Kernel B: transfer_H (+ReLU) -> transfer_W (+ReLU), fused.
# Input is the ConvTranspose output kept in its phase-separated form
#   v[(di*s+dj)*C + co, i, j] = U[co, i*s+di, j*s+dj]
# so the H/W contractions become plain 2D matmuls with the s-split transfer weights and the
# upsample interleave never has to be materialized (no transposes / reshapes in-kernel).
# ----------------------------------------------------------------------------
def _transfer_kernel(v_ref, whs_ref, wws_ref, o_ref, *, c, s):
    whs_vals = [whs_ref[di] for di in range(s)]     # each [Hc, H1]
    wws_vals = [wws_ref[dj] for dj in range(s)]     # each [W1, Wc]
    for co in range(c):
        acc = None
        for dj in range(s):
            zd = None
            for di in range(s):
                a = v_ref[0, (di * s + dj) * c + co]                      # [H1, W1]
                t = jnp.dot(whs_vals[di], a, preferred_element_type=jnp.float32)
                zd = t if zd is None else zd + t
            zd = jnp.maximum(zd, 0.0)                                     # transfer_H ReLU
            t2 = jnp.dot(zd, wws_vals[dj], preferred_element_type=jnp.float32)
            acc = t2 if acc is None else acc + t2
        o_ref[0, co] = jnp.maximum(acc, 0.0).astype(o_ref.dtype)          # transfer_W ReLU


def _call_transfer(v4, pp):
    b, s2c, h1, w1 = v4.shape
    s, hcdim, _ = pp["whs"].shape
    _, _, wcdim = pp["wws"].shape
    c = s2c // (s * s)
    kernel = functools.partial(_transfer_kernel, c=c, s=s)
    return pl.pallas_call(
        kernel,
        out_shape=jax.ShapeDtypeStruct((b, c, hcdim, wcdim), v4.dtype),
        grid=(b,),
        in_specs=[
            pl.BlockSpec((1, s2c, h1, w1), lambda i: (i, 0, 0, 0)),
            pl.BlockSpec(pp["whs"].shape, lambda i: (0, 0, 0)),
            pl.BlockSpec(pp["wws"].shape, lambda i: (0, 0, 0)),
        ],
        out_specs=pl.BlockSpec((1, c, hcdim, wcdim), lambda i: (i, 0, 0, 0)),
        compiler_params=pltpu.CompilerParams(
            dimension_semantics=("parallel",),
            vmem_limit_bytes=_VMEM_LIMIT,
        ),
    )(v4, pp["whs"], pp["wws"])


# ----------------------------------------------------------------------------
# Layout helpers (pure plumbing, wrapper-side).
# ----------------------------------------------------------------------------
def pixel_shuffle_nchw(x, r):
    b, crr, h, w = x.shape
    c = crr // (r * r)
    x = x.reshape(b, c, r, r, h, w)
    x = jnp.transpose(x, (0, 1, 4, 2, 5, 3))
    return x.reshape(b, c, h * r, w * r)


# ----------------------------------------------------------------------------
# Full FeatureConcat forward (NCHW in / NCHW out, like the PyTorch module).
# ----------------------------------------------------------------------------
def feature_concat_forward(ct1, ct2, prepped, *, psf_scale, up_scale, slope=0.01):
    p = pixel_shuffle_nchw(ct1, psf_scale)
    x = jnp.concatenate([p, ct2], axis=1)              # [B, 2C, H1, W1]
    b, c2, h1, w1 = x.shape
    c = prepped["w1k"].shape[0]
    s = up_scale

    x_flat = x.reshape(b, c2, h1 * w1)                 # free, contiguous reshape
    v = _call_conv_upsample(x_flat, prepped, h=h1, w=w1, slope=slope)   # [B, s*s*C, H1*W1]
    v4 = v.reshape(b, s * s * c, h1, w1)               # free, contiguous reshape
    return _call_transfer(v4, prepped)                 # [B, C, Hc, Wc]


# ----------------------------------------------------------------------------
# Pure-JAX reference (matches the PyTorch module op-by-op).
# ----------------------------------------------------------------------------
def _conv_nchw(x, w, pad):
    return lax.conv_general_dilated(x, w, window_strides=(1, 1), padding=pad,
                                    dimension_numbers=("NCHW", "OIHW", "NCHW"))


def feature_concat_ref(ct1, ct2, params, *, psf_scale, up_scale, slope=0.01):
    p = pixel_shuffle_nchw(ct1, psf_scale)
    x = jnp.concatenate([p, ct2], axis=1)
    y = _leaky(_conv_nchw(x, params["w1"], [(1, 1), (1, 1)]), slope)
    y = _leaky(_conv_nchw(y, params["w2"], [(1, 1), (1, 1)]), slope)
    y = _leaky(_conv_nchw(y, params["w3"], [(0, 0), (0, 0)]), slope)
    s = up_scale
    u = jnp.einsum("bihw,iodk->bohdwk", y, params["wt"])
    u = u.reshape(u.shape[0], u.shape[1], y.shape[2] * s, y.shape[3] * s)
    u = _leaky(u + params["bt"][None, :, None, None], slope)
    t = jnp.transpose(u, (0, 2, 1, 3))
    t = jnp.maximum(_conv_nchw(t, params["wh"], [(0, 0), (0, 0)]), 0.0)
    t = jnp.transpose(t, (0, 2, 1, 3))
    t = jnp.transpose(t, (0, 3, 2, 1))
    t = jnp.maximum(_conv_nchw(t, params["ww"], [(0, 0), (0, 0)]), 0.0)
    return jnp.transpose(t, (0, 3, 2, 1))


if __name__ == "__main__":
    key = jax.random.PRNGKey(0)
    keys = jax.random.split(key, 9)

    batch, in_c = 2, 4
    psf_scale, up_scale = 2, 2
    h0, w0 = 8, 8                                   # ct1 spatial (pre pixel-shuffle)
    h1, w1 = h0 * psf_scale, w0 * psf_scale         # 16, 16
    H, W = h1 * up_scale, w1 * up_scale             # 32, 32  (constructor H, W)
    Hc, Wc = 16, 16

    ct1 = jax.random.normal(keys[0], (batch, in_c * psf_scale ** 2, h0, w0), jnp.float32)
    ct2 = jax.random.normal(keys[1], (batch, in_c, h1, w1), jnp.float32)

    def winit(k, shape, fan_in):
        bound = (1.0 / fan_in) ** 0.5
        return jax.random.uniform(k, shape, jnp.float32, -bound, bound)

    params = {
        "w1": winit(keys[2], (in_c, 2 * in_c, 3, 3), 2 * in_c * 9),
        "w2": winit(keys[3], (in_c, in_c, 3, 3), in_c * 9),
        "w3": winit(keys[4], (in_c, in_c, 1, 1), in_c),
        "wt": winit(keys[5], (in_c, in_c, up_scale, up_scale), in_c * up_scale ** 2),
        "bt": winit(keys[6], (in_c,), in_c * up_scale ** 2),
        "wh": winit(keys[7], (Hc, H, 1, 1), H),
        "ww": winit(keys[8], (Wc, W, 1, 1), W),
    }

    prepped = prepare_params(params, up_scale)      # one-time weight re-layout (hoisted)

    fwd = jax.jit(functools.partial(feature_concat_forward,
                                    psf_scale=psf_scale, up_scale=up_scale))
    out = jax.block_until_ready(fwd(ct1, ct2, prepped))

    ref = feature_concat_ref(ct1, ct2, params, psf_scale=psf_scale, up_scale=up_scale)
    assert out.shape == (batch, in_c, Hc, Wc), out.shape
    max_err = float(jnp.max(jnp.abs(out - ref)))
    assert jnp.allclose(out, ref, atol=2e-4, rtol=2e-4), max_err

    print("KERNEL_OK")
</pallas_src>

<mosaic_0001>
module attributes {stable_mosaic.version = 11 : i64} {
  func.func @_transfer_kernel(%arg0: i32, %arg1: memref<1x16x16x16xf32, #tpu.memory_space<vmem>>, %arg2: memref<2x16x16xf32, #tpu.memory_space<vmem>>, %arg3: memref<2x16x16xf32, #tpu.memory_space<vmem>>, %arg4: memref<1x4x16x16xf32, #tpu.memory_space<vmem>>) attributes {dimension_semantics = [#tpu.dimension_semantics<parallel>], iteration_bounds = array<i64: 2>, scalar_prefetch = 0 : i64, scratch_operands = 0 : i64, tpu.core_type = #tpu.core_type<tc>, window_params = [{transform_indices = @transform_0, window_bounds = array<i64: 1, 16, 16, 16>}, {pipeline_mode = #tpu.pipeline_mode<synchronous>, transform_indices = @transform_1, window_bounds = array<i64: 2, 16, 16>}, {pipeline_mode = #tpu.pipeline_mode<synchronous>, transform_indices = @transform_2, window_bounds = array<i64: 2, 16, 16>}, {transform_indices = @transform_3, window_bounds = array<i64: 1, 4, 16, 16>}]} {
    %c0 = arith.constant 0 : index
    %c0_0 = arith.constant 0 : index
    %c0_1 = arith.constant 0 : index
    %0 = vector.load %arg2[%c0, %c0_0, %c0_1] : memref<2x16x16xf32, #tpu.memory_space<vmem>>, vector<1x16x16xf32>
    %1 = vector.shape_cast %0 : vector<1x16x16xf32> to vector<16x16xf32>
    %c1 = arith.constant 1 : index
    %c0_2 = arith.constant 0 : index
    %c0_3 = arith.constant 0 : index
    %2 = vector.load %arg2[%c1, %c0_2, %c0_3] : memref<2x16x16xf32, #tpu.memory_space<vmem>>, vector<1x16x16xf32>
    %3 = vector.shape_cast %2 : vector<1x16x16xf32> to vector<16x16xf32>
    %c0_4 = arith.constant 0 : index
    %c0_5 = arith.constant 0 : index
    %c0_6 = arith.constant 0 : index
    %4 = vector.load %arg3[%c0_4, %c0_5, %c0_6] : memref<2x16x16xf32, #tpu.memory_space<vmem>>, vector<1x16x16xf32>
    %5 = vector.shape_cast %4 : vector<1x16x16xf32> to vector<16x16xf32>
    %c1_7 = arith.constant 1 : index
    %c0_8 = arith.constant 0 : index
    %c0_9 = arith.constant 0 : index
    %6 = vector.load %arg3[%c1_7, %c0_8, %c0_9] : memref<2x16x16xf32, #tpu.memory_space<vmem>>, vector<1x16x16xf32>
    %7 = vector.shape_cast %6 : vector<1x16x16xf32> to vector<16x16xf32>
    %c0_10 = arith.constant 0 : index
    %c0_11 = arith.constant 0 : index
    %c0_12 = arith.constant 0 : index
    %c0_13 = arith.constant 0 : index
    %8 = vector.load %arg1[%c0_10, %c0_11, %c0_12, %c0_13] : memref<1x16x16x16xf32, #tpu.memory_space<vmem>>, vector<1x1x16x16xf32>
    %9 = vector.shape_cast %8 : vector<1x1x16x16xf32> to vector<16x16xf32>
    %cst = arith.constant dense<0.000000e+00> : vector<16x16xf32>
    %10 = tpu.matmul %1, %9, %cst {dimension_numbers = #tpu.dot_dimension_numbers<[1], [0], [0], [1], [0, 0, 1, 1], [], []>} : vector<16x16xf32>, vector<16x16xf32>, vector<16x16xf32> -> vector<16x16xf32>
    %c0_14 = arith.constant 0 : index
    %c8 = arith.constant 8 : index
    %c0_15 = arith.constant 0 : index
    %c0_16 = arith.constant 0 : index
    %11 = vector.load %arg1[%c0_14, %c8, %c0_15, %c0_16] : memref<1x16x16x16xf32, #tpu.memory_space<vmem>>, vector<1x1x16x16xf32>
    %12 = vector.shape_cast %11 : vector<1x1x16x16xf32> to vector<16x16xf32>
    %cst_17 = arith.constant dense<0.000000e+00> : vector<16x16xf32>
    %13 = tpu.matmul %3, %12, %cst_17 {dimension_numbers = #tpu.dot_dimension_numbers<[1], [0], [0], [1], [0, 0, 1, 1], [], []>} : vector<16x16xf32>, vector<16x16xf32>, vector<16x16xf32> -> vector<16x16xf32>
    %14 = arith.addf %10, %13 : vector<16x16xf32>
    %cst_18 = arith.constant 0.000000e+00 : f32
    %15 = vector.broadcast %cst_18 : f32 to vector<16x16xf32>
    %16 = arith.maximumf %14, %15 : vector<16x16xf32>
    %cst_19 = arith.constant dense<0.000000e+00> : vector<16x16xf32>
    %17 = tpu.matmul %16, %5, %cst_19 {dimension_numbers = #tpu.dot_dimension_numbers<[1], [0], [0], [1], [0, 0, 1, 1], [], []>} : vector<16x16xf32>, vector<16x16xf32>, vector<16x16xf32> -> vector<16x16xf32>
    %c0_20 = arith.constant 0 : index
    %c4 = arith.constant 4 : index
    %c0_21 = arith.constant 0 : index
    %c0_22 = arith.constant 0 : index
    %18 = vector.load %arg1[%c0_20, %c4, %c0_21, %c0_22] : memref<1x16x16x16xf32, #tpu.memory_space<vmem>>, vector<1x1x16x16xf32>
    %19 = vector.shape_cast %18 : vector<1x1x16x16xf32> to vector<16x16xf32>
    %cst_23 = arith.constant dense<0.000000e+00> : vector<16x16xf32>
    %20 = tpu.matmul %1, %19, %cst_23 {dimension_numbers = #tpu.dot_dimension_numbers<[1], [0], [0], [1], [0, 0, 1, 1], [], []>} : vector<16x16xf32>, vector<16x16xf32>, vector<16x16xf32> -> vector<16x16xf32>
    %c0_24 = arith.constant 0 : index
    %c12 = arith.constant 12 : index
    %c0_25 = arith.constant 0 : index
    %c0_26 = arith.constant 0 : index
    %21 = vector.load %arg1[%c0_24, %c12, %c0_25, %c0_26] : memref<1x16x16x16xf32, #tpu.memory_space<vmem>>, vector<1x1x16x16xf32>
    %22 = vector.shape_cast %21 : vector<1x1x16x16xf32> to vector<16x16xf32>
    %cst_27 = arith.constant dense<0.000000e+00> : vector<16x16xf32>
    %23 = tpu.matmul %3, %22, %cst_27 {dimension_numbers = #tpu.dot_dimension_numbers<[1], [0], [0], [1], [0, 0, 1, 1], [], []>} : vector<16x16xf32>, vector<16x16xf32>, vector<16x16xf32> -> vector<16x16xf32>
    %24 = arith.addf %20, %23 : vector<16x16xf32>
    %cst_28 = arith.constant 0.000000e+00 : f32
    %25 = vector.broadcast %cst_28 : f32 to vector<16x16xf32>
    %26 = arith.maximumf %24, %25 : vector<16x16xf32>
    %cst_29 = arith.constant dense<0.000000e+00> : vector<16x16xf32>
    %27 = tpu.matmul %26, %7, %cst_29 {dimension_numbers = #tpu.dot_dimension_numbers<[1], [0], [0], [1], [0, 0, 1, 1], [], []>} : vector<16x16xf32>, vector<16x16xf32>, vector<16x16xf32> -> vector<16x16xf32>
    %28 = arith.addf %17, %27 : vector<16x16xf32>
    %cst_30 = arith.constant 0.000000e+00 : f32
    %29 = vector.broadcast %cst_30 : f32 to vector<16x16xf32>
    %30 = arith.maximumf %28, %29 : vector<16x16xf32>
    %c0_31 = arith.constant 0 : index
    %c0_32 = arith.constant 0 : index
    %c0_33 = arith.constant 0 : index
    %c0_34 = arith.constant 0 : index
    %31 = vector.load %arg4[%c0_31, %c0_32, %c0_33, %c0_34] : memref<1x4x16x16xf32, #tpu.memory_space<vmem>>, vector<1x1x16x16xf32>
    %32 = vector.shape_cast %31 : vector<1x1x16x16xf32> to vector<16x16xf32>
    %33 = vector.shape_cast %30 : vector<16x16xf32> to vector<1x1x16x16xf32>
    tpu.vector_store %arg4[%c0_31, %c0_32, %c0_33, %c0_34], %33 {strides = array<i32>} : memref<1x4x16x16xf32, #tpu.memory_space<vmem>>, vector<1x1x16x16xf32>,
    %c0_35 = arith.constant 0 : index
    %c1_36 = arith.constant 1 : index
    %c0_37 = arith.constant 0 : index
    %c0_38 = arith.constant 0 : index
    %34 = vector.load %arg1[%c0_35, %c1_36, %c0_37, %c0_38] : memref<1x16x16x16xf32, #tpu.memory_space<vmem>>, vector<1x1x16x16xf32>
    %35 = vector.shape_cast %34 : vector<1x1x16x16xf32> to vector<16x16xf32>
    %cst_39 = arith.constant dense<0.000000e+00> : vector<16x16xf32>
    %36 = tpu.matmul %1, %35, %cst_39 {dimension_numbers = #tpu.dot_dimension_numbers<[1], [0], [0], [1], [0, 0, 1, 1], [], []>} : vector<16x16xf32>, vector<16x16xf32>, vector<16x16xf32> -> vector<16x16xf32>
    %c0_40 = arith.constant 0 : index
    %c9 = arith.constant 9 : index
    %c0_41 = arith.constant 0 : index
    %c0_42 = arith.constant 0 : index
    %37 = vector.load %arg1[%c0_40, %c9, %c0_41, %c0_42] : memref<1x16x16x16xf32, #tpu.memory_space<vmem>>, vector<1x1x16x16xf32>
    %38 = vector.shape_cast %37 : vector<1x1x16x16xf32> to vector<16x16xf32>
    %cst_43 = arith.constant dense<0.000000e+00> : vector<16x16xf32>
    %39 = tpu.matmul %3, %38, %cst_43 {dimension_numbers = #tpu.dot_dimension_numbers<[1], [0], [0], [1], [0, 0, 1, 1], [], []>} : vector<16x16xf32>, vector<16x16xf32>, vector<16x16xf32> -> vector<16x16xf32>
    %40 = arith.addf %36, %39 : vector<16x16xf32>
    %cst_44 = arith.constant 0.000000e+00 : f32
    %41 = vector.broadcast %cst_44 : f32 to vector<16x16xf32>
    %42 = arith.maximumf %40, %41 : vector<16x16xf32>
    %cst_45 = arith.constant dense<0.000000e+00> : vector<16x16xf32>
    %43 = tpu.matmul %42, %5, %cst_45 {dimension_numbers = #tpu.dot_dimension_numbers<[1], [0], [0], [1], [0, 0, 1, 1], [], []>} : vector<16x16xf32>, vector<16x16xf32>, vector<16x16xf32> -> vector<16x16xf32>
    %c0_46 = arith.constant 0 : index
    %c5 = arith.constant 5 : index
    %c0_47 = arith.constant 0 : index
    %c0_48 = arith.constant 0 : index
    %44 = vector.load %arg1[%c0_46, %c5, %c0_47, %c0_48] : memref<1x16x16x16xf32, #tpu.memory_space<vmem>>, vector<1x1x16x16xf32>
    %45 = vector.shape_cast %44 : vector<1x1x16x16xf32> to vector<16x16xf32>
    %cst_49 = arith.constant dense<0.000000e+00> : vector<16x16xf32>
    %46 = tpu.matmul %1, %45, %cst_49 {dimension_numbers = #tpu.dot_dimension_numbers<[1], [0], [0], [1], [0, 0, 1, 1], [], []>} : vector<16x16xf32>, vector<16x16xf32>, vector<16x16xf32> -> vector<16x16xf32>
    %c0_50 = arith.constant 0 : index
    %c13 = arith.constant 13 : index
    %c0_51 = arith.constant 0 : index
    %c0_52 = arith.constant 0 : index
    %47 = vector.load %arg1[%c0_50, %c13, %c0_51, %c0_52] : memref<1x16x16x16xf32, #tpu.memory_space<vmem>>, vector<1x1x16x16xf32>
    %48 = vector.shape_cast %47 : vector<1x1x16x16xf32> to vector<16x16xf32>
    %cst_53 = arith.constant dense<0.000000e+00> : vector<16x16xf32>
    %49 = tpu.matmul %3, %48, %cst_53 {dimension_numbers = #tpu.dot_dimension_numbers<[1], [0], [0], [1], [0, 0, 1, 1], [], []>} : vector<16x16xf32>, vector<16x16xf32>, vector<16x16xf32> -> vector<16x16xf32>
    %50 = arith.addf %46, %49 : vector<16x16xf32>
    %cst_54 = arith.constant 0.000000e+00 : f32
    %51 = vector.broadcast %cst_54 : f32 to vector<16x16xf32>
    %52 = arith.maximumf %50, %51 : vector<16x16xf32>
    %cst_55 = arith.constant dense<0.000000e+00> : vector<16x16xf32>
    %53 = tpu.matmul %52, %7, %cst_55 {dimension_numbers = #tpu.dot_dimension_numbers<[1], [0], [0], [1], [0, 0, 1, 1], [], []>} : vector<16x16xf32>, vector<16x16xf32>, vector<16x16xf32> -> vector<16x16xf32>
    %54 = arith.addf %43, %53 : vector<16x16xf32>
    %cst_56 = arith.constant 0.000000e+00 : f32
    %55 = vector.broadcast %cst_56 : f32 to vector<16x16xf32>
    %56 = arith.maximumf %54, %55 : vector<16x16xf32>
    %c0_57 = arith.constant 0 : index
    %c1_58 = arith.constant 1 : index
    %c0_59 = arith.constant 0 : index
    %c0_60 = arith.constant 0 : index
    %57 = vector.load %arg4[%c0_57, %c1_58, %c0_59, %c0_60] : memref<1x4x16x16xf32, #tpu.memory_space<vmem>>, vector<1x1x16x16xf32>
    %58 = vector.shape_cast %57 : vector<1x1x16x16xf32> to vector<16x16xf32>
    %59 = vector.shape_cast %56 : vector<16x16xf32> to vector<1x1x16x16xf32>
    tpu.vector_store %arg4[%c0_57, %c1_58, %c0_59, %c0_60], %59 {strides = array<i32>} : memref<1x4x16x16xf32, #tpu.memory_space<vmem>>, vector<1x1x16x16xf32>,
    %c0_61 = arith.constant 0 : index
    %c2 = arith.constant 2 : index
    %c0_62 = arith.constant 0 : index
    %c0_63 = arith.constant 0 : index
    %60 = vector.load %arg1[%c0_61, %c2, %c0_62, %c0_63] : memref<1x16x16x16xf32, #tpu.memory_space<vmem>>, vector<1x1x16x16xf32>
    %61 = vector.shape_cast %60 : vector<1x1x16x16xf32> to vector<16x16xf32>
    %cst_64 = arith.constant dense<0.000000e+00> : vector<16x16xf32>
    %62 = tpu.matmul %1, %61, %cst_64 {dimension_numbers = #tpu.dot_dimension_numbers<[1], [0], [0], [1], [0, 0, 1, 1], [], []>} : vector<16x16xf32>, vector<16x16xf32>, vector<16x16xf32> -> vector<16x16xf32>
    %c0_65 = arith.constant 0 : index
    %c10 = arith.constant 10 : index
    %c0_66 = arith.constant 0 : index
    %c0_67 = arith.constant 0 : index
    %63 = vector.load %arg1[%c0_65, %c10, %c0_66, %c0_67] : memref<1x16x16x16xf32, #tpu.memory_space<vmem>>, vector<1x1x16x16xf32>
    %64 = vector.shape_cast %63 : vector<1x1x16x16xf32> to vector<16x16xf32>
    %cst_68 = arith.constant dense<0.000000e+00> : vector<16x16xf32>
    %65 = tpu.matmul %3, %64, %cst_68 {dimension_numbers = #tpu.dot_dimension_numbers<[1], [0], [0], [1], [0, 0, 1, 1], [], []>} : vector<16x16xf32>, vector<16x16xf32>, vector<16x16xf32> -> vector<16x16xf32>
    %66 = arith.addf %62, %65 : vector<16x16xf32>
    %cst_69 = arith.constant 0.000000e+00 : f32
    %67 = vector.broadcast %cst_69 : f32 to vector<16x16xf32>
    %68 = arith.maximumf %66, %67 : vector<16x16xf32>
    %cst_70 = arith.constant dense<0.000000e+00> : vector<16x16xf32>
    %69 = tpu.matmul %68, %5, %cst_70 {dimension_numbers = #tpu.dot_dimension_numbers<[1], [0], [0], [1], [0, 0, 1, 1], [], []>} : vector<16x16xf32>, vector<16x16xf32>, vector<16x16xf32> -> vector<16x16xf32>
    %c0_71 = arith.constant 0 : index
    %c6 = arith.constant 6 : index
    %c0_72 = arith.constant 0 : index
    %c0_73 = arith.constant 0 : index
    %70 = vector.load %arg1[%c0_71, %c6, %c0_72, %c0_73] : memref<1x16x16x16xf32, #tpu.memory_space<vmem>>, vector<1x1x16x16xf32>
    %71 = vector.shape_cast %70 : vector<1x1x16x16xf32> to vector<16x16xf32>
    %cst_74 = arith.constant dense<0.000000e+00> : vector<16x16xf32>
    %72 = tpu.matmul %1, %71, %cst_74 {dimension_numbers = #tpu.dot_dimension_numbers<[1], [0], [0], [1], [0, 0, 1, 1], [], []>} : vector<16x16xf32>, vector<16x16xf32>, vector<16x16xf32> -> vector<16x16xf32>
    %c0_75 = arith.constant 0 : index
    %c14 = arith.constant 14 : index
    %c0_76 = arith.constant 0 : index
    %c0_77 = arith.constant 0 : index
    %73 = vector.load %arg1[%c0_75, %c14, %c0_76, %c0_77] : memref<1x16x16x16xf32, #tpu.memory_space<vmem>>, vector<1x1x16x16xf32>
    %74 = vector.shape_cast %73 : vector<1x1x16x16xf32> to vector<16x16xf32>
    %cst_78 = arith.constant dense<0.000000e+00> : vector<16x16xf32>
    %75 = tpu.matmul %3, %74, %cst_78 {dimension_numbers = #tpu.dot_dimension_numbers<[1], [0], [0], [1], [0, 0, 1, 1], [], []>} : vector<16x16xf32>, vector<16x16xf32>, vector<16x16xf32> -> vector<16x16xf32>
    %76 = arith.addf %72, %75 : vector<16x16xf32>
    %cst_79 = arith.constant 0.000000e+00 : f32
    %77 = vector.broadcast %cst_79 : f32 to vector<16x16xf32>
    %78 = arith.maximumf %76, %77 : vector<16x16xf32>
    %cst_80 = arith.constant dense<0.000000e+00> : vector<16x16xf32>
    %79 = tpu.matmul %78, %7, %cst_80 {dimension_numbers = #tpu.dot_dimension_numbers<[1], [0], [0], [1], [0, 0, 1, 1], [], []>} : vector<16x16xf32>, vector<16x16xf32>, vector<16x16xf32> -> vector<16x16xf32>
    %80 = arith.addf %69, %79 : vector<16x16xf32>
    %cst_81 = arith.constant 0.000000e+00 : f32
    %81 = vector.broadcast %cst_81 : f32 to vector<16x16xf32>
    %82 = arith.maximumf %80, %81 : vector<16x16xf32>
    %c0_82 = arith.constant 0 : index
    %c2_83 = arith.constant 2 : index
    %c0_84 = arith.constant 0 : index
    %c0_85 = arith.constant 0 : index
    %83 = vector.load %arg4[%c0_82, %c2_83, %c0_84, %c0_85] : memref<1x4x16x16xf32, #tpu.memory_space<vmem>>, vector<1x1x16x16xf32>
    %84 = vector.shape_cast %83 : vector<1x1x16x16xf32> to vector<16x16xf32>
    %85 = vector.shape_cast %82 : vector<16x16xf32> to vector<1x1x16x16xf32>
    tpu.vector_store %arg4[%c0_82, %c2_83, %c0_84, %c0_85], %85 {strides = array<i32>} : memref<1x4x16x16xf32, #tpu.memory_space<vmem>>, vector<1x1x16x16xf32>,
    %c0_86 = arith.constant 0 : index
    %c3 = arith.constant 3 : index
    %c0_87 = arith.constant 0 : index
    %c0_88 = arith.constant 0 : index
    %86 = vector.load %arg1[%c0_86, %c3, %c0_87, %c0_88] : memref<1x16x16x16xf32, #tpu.memory_space<vmem>>, vector<1x1x16x16xf32>
    %87 = vector.shape_cast %86 : vector<1x1x16x16xf32> to vector<16x16xf32>
    %cst_89 = arith.constant dense<0.000000e+00> : vector<16x16xf32>
    %88 = tpu.matmul %1, %87, %cst_89 {dimension_numbers = #tpu.dot_dimension_numbers<[1], [0], [0], [1], [0, 0, 1, 1], [], []>} : vector<16x16xf32>, vector<16x16xf32>, vector<16x16xf32> -> vector<16x16xf32>
    %c0_90 = arith.constant 0 : index
    %c11 = arith.constant 11 : index
    %c0_91 = arith.constant 0 : index
    %c0_92 = arith.constant 0 : index
    %89 = vector.load %arg1[%c0_90, %c11, %c0_91, %c0_92] : memref<1x16x16x16xf32, #tpu.memory_space<vmem>>, vector<1x1x16x16xf32>
    %90 = vector.shape_cast %89 : vector<1x1x16x16xf32> to vector<16x16xf32>
    %cst_93 = arith.constant dense<0.000000e+00> : vector<16x16xf32>
    %91 = tpu.matmul %3, %90, %cst_93 {dimension_numbers = #tpu.dot_dimension_numbers<[1], [0], [0], [1], [0, 0, 1, 1], [], []>} : vector<16x16xf32>, vector<16x16xf32>, vector<16x16xf32> -> vector<16x16xf32>
    %92 = arith.addf %88, %91 : vector<16x16xf32>
    %cst_94 = arith.constant 0.000000e+00 : f32
    %93 = vector.broadcast %cst_94 : f32 to vector<16x16xf32>
    %94 = arith.maximumf %92, %93 : vector<16x16xf32>
    %cst_95 = arith.constant dense<0.000000e+00> : vector<16x16xf32>
    %95 = tpu.matmul %94, %5, %cst_95 {dimension_numbers = #tpu.dot_dimension_numbers<[1], [0], [0], [1], [0, 0, 1, 1], [], []>} : vector<16x16xf32>, vector<16x16xf32>, vector<16x16xf32> -> vector<16x16xf32>
    %c0_96 = arith.constant 0 : index
    %c7 = arith.constant 7 : index
    %c0_97 = arith.constant 0 : index
    %c0_98 = arith.constant 0 : index
    %96 = vector.load %arg1[%c0_96, %c7, %c0_97, %c0_98] : memref<1x16x16x16xf32, #tpu.memory_space<vmem>>, vector<1x1x16x16xf32>
    %97 = vector.shape_cast %96 : vector<1x1x16x16xf32> to vector<16x16xf32>
    %cst_99 = arith.constant dense<0.000000e+00> : vector<16x16xf32>
    %98 = tpu.matmul %1, %97, %cst_99 {dimension_numbers = #tpu.dot_dimension_numbers<[1], [0], [0], [1], [0, 0, 1, 1], [], []>} : vector<16x16xf32>, vector<16x16xf32>, vector<16x16xf32> -> vector<16x16xf32>
    %c0_100 = arith.constant 0 : index
    %c15 = arith.constant 15 : index
    %c0_101 = arith.constant 0 : index
    %c0_102 = arith.constant 0 : index
    %99 = vector.load %arg1[%c0_100, %c15, %c0_101, %c0_102] : memref<1x16x16x16xf32, #tpu.memory_space<vmem>>, vector<1x1x16x16xf32>
    %100 = vector.shape_cast %99 : vector<1x1x16x16xf32> to vector<16x16xf32>
    %cst_103 = arith.constant dense<0.000000e+00> : vector<16x16xf32>
    %101 = tpu.matmul %3, %100, %cst_103 {dimension_numbers = #tpu.dot_dimension_numbers<[1], [0], [0], [1], [0, 0, 1, 1], [], []>} : vector<16x16xf32>, vector<16x16xf32>, vector<16x16xf32> -> vector<16x16xf32>
    %102 = arith.addf %98, %101 : vector<16x16xf32>
    %cst_104 = arith.constant 0.000000e+00 : f32
    %103 = vector.broadcast %cst_104 : f32 to vector<16x16xf32>
    %104 = arith.maximumf %102, %103 : vector<16x16xf32>
    %cst_105 = arith.constant dense<0.000000e+00> : vector<16x16xf32>
    %105 = tpu.matmul %104, %7, %cst_105 {dimension_numbers = #tpu.dot_dimension_numbers<[1], [0], [0], [1], [0, 0, 1, 1], [], []>} : vector<16x16xf32>, vector<16x16xf32>, vector<16x16xf32> -> vector<16x16xf32>
    %106 = arith.addf %95, %105 : vector<16x16xf32>
    %cst_106 = arith.constant 0.000000e+00 : f32
    %107 = vector.broadcast %cst_106 : f32 to vector<16x16xf32>
    %108 = arith.maximumf %106, %107 : vector<16x16xf32>
    %c0_107 = arith.constant 0 : index
    %c3_108 = arith.constant 3 : index
    %c0_109 = arith.constant 0 : index
    %c0_110 = arith.constant 0 : index
    %109 = vector.load %arg4[%c0_107, %c3_108, %c0_109, %c0_110] : memref<1x4x16x16xf32, #tpu.memory_space<vmem>>, vector<1x1x16x16xf32>
    %110 = vector.shape_cast %109 : vector<1x1x16x16xf32> to vector<16x16xf32>
    %111 = vector.shape_cast %108 : vector<16x16xf32> to vector<1x1x16x16xf32>
    tpu.vector_store %arg4[%c0_107, %c3_108, %c0_109, %c0_110], %111 {strides = array<i32>} : memref<1x4x16x16xf32, #tpu.memory_space<vmem>>, vector<1x1x16x16xf32>,
    return
  }
  func.func @transform_0(%arg0: i32) -> (i32, i32, i32, i32) {
    %c0_i32 = arith.constant 0 : i32
    %c0_i32_0 = arith.constant 0 : i32
    %c0_i32_1 = arith.constant 0 : i32
    %c0_i32_2 = arith.constant 0 : i32
    return %arg0, %c0_i32, %c0_i32_0, %c0_i32_1 : i32, i32, i32, i32
  }
  func.func @transform_1(%arg0: i32) -> (i32, i32, i32) {
    %c0_i32 = arith.constant 0 : i32
    %c0_i32_0 = arith.constant 0 : i32
    %c0_i32_1 = arith.constant 0 : i32
    %c0_i32_2 = arith.constant 0 : i32
    return %c0_i32, %c0_i32_0, %c0_i32_1 : i32, i32, i32
  }
  func.func @transform_2(%arg0: i32) -> (i32, i32, i32) {
    %c0_i32 = arith.constant 0 : i32
    %c0_i32_0 = arith.constant 0 : i32
    %c0_i32_1 = arith.constant 0 : i32
    %c0_i32_2 = arith.constant 0 : i32
    return %c0_i32, %c0_i32_0, %c0_i32_1 : i32, i32, i32
  }
  func.func @transform_3(%arg0: i32) -> (i32, i32, i32, i32) {
    %c0_i32 = arith.constant 0 : i32
    %c0_i32_0 = arith.constant 0 : i32
    %c0_i32_1 = arith.constant 0 : i32
    %c0_i32_2 = arith.constant 0 : i32
    return %arg0, %c0_i32, %c0_i32_0, %c0_i32_1 : i32, i32, i32, i32
  }
}

module attributes {stable_mosaic.version = 11 : i64} {
  func.func @_concat_conv_upsample_kernel(%arg0: i32, %arg1: memref<1x8x256xf32, #tpu.memory_space<vmem>>, %arg2: memref<4x72xf32, #tpu.memory_space<vmem>>, %arg3: memref<4x36xf32, #tpu.memory_space<vmem>>, %arg4: memref<4x4xf32, #tpu.memory_space<vmem>>, %arg5: memref<16x4xf32, #tpu.memory_space<vmem>>, %arg6: memref<16x1xf32, #tpu.memory_space<vmem>>, %arg7: memref<1x16x256xf32, #tpu.memory_space<vmem>>, %arg8: memref<8x290xf32, #tpu.memory_space<vmem>>, %arg9: memref<72x256xf32, #tpu.memory_space<vmem>>, %arg10: memref<4x290xf32, #tpu.memory_space<vmem>>, %arg11: memref<36x256xf32, #tpu.memory_space<vmem>>) attributes {dimension_semantics = [#tpu.dimension_semantics<parallel>], iteration_bounds = array<i64: 2>, scalar_prefetch = 0 : i64, scratch_operands = 4 : i64, tpu.core_type = #tpu.core_type<tc>, window_params = [{transform_indices = @transform_0, window_bounds = array<i64: 1, 8, 256>}, {pipeline_mode = #tpu.pipeline_mode<synchronous>, transform_indices = @transform_1, window_bounds = array<i64: 4, 72>}, {pipeline_mode = #tpu.pipeline_mode<synchronous>, transform_indices = @transform_2, window_bounds = array<i64: 4, 36>}, {pipeline_mode = #tpu.pipeline_mode<synchronous>, transform_indices = @transform_3, window_bounds = array<i64: 4, 4>}, {pipeline_mode = #tpu.pipeline_mode<synchronous>, transform_indices = @transform_4, window_bounds = array<i64: 16, 4>}, {pipeline_mode = #tpu.pipeline_mode<synchronous>, transform_indices = @transform_5, window_bounds = array<i64: 16, 1>}, {transform_indices = @transform_6, window_bounds = array<i64: 1, 16, 256>}]} {
    %c0 = arith.constant 0 : index
    %c0_0 = arith.constant 0 : index
    %c0_1 = arith.constant 0 : index
    %0 = vector.load %arg1[%c0, %c0_0, %c0_1] : memref<1x8x256xf32, #tpu.memory_space<vmem>>, vector<1x8x256xf32>
    %1 = vector.shape_cast %0 : vector<1x8x256xf32> to vector<8x256xf32>
    %cst = arith.constant 0.000000e+00 : f32
    %2 = vector.broadcast %cst : f32 to vector<8x290xf32>
    %c0_2 = arith.constant 0 : index
    %c0_3 = arith.constant 0 : index
    %3 = vector.load %arg8[%c0_2, %c0_3] : memref<8x290xf32, #tpu.memory_space<vmem>>, vector<8x290xf32>
    tpu.vector_store %arg8[%c0_2, %c0_3], %2 {strides = array<i32>} : memref<8x290xf32, #tpu.memory_space<vmem>>, vector<8x290xf32>,
    %c0_4 = arith.constant 0 : index
    %c17 = arith.constant 17 : index
    %4 = vector.load %arg8[%c0_4, %c17] : memref<8x290xf32, #tpu.memory_space<vmem>>, vector<8x256xf32>
    tpu.vector_store %arg8[%c0_4, %c17], %1 {strides = array<i32>} : memref<8x290xf32, #tpu.memory_space<vmem>>, vector<8x256xf32>,
    %5 = tpu.iota {dimensions = array<i32: 1>} : vector<8x256xi32>
    %c16_i32 = arith.constant 16 : i32
    %c0_i32 = arith.constant 0 : i32
    %6 = arith.cmpi eq, %c16_i32, %c0_i32 : i32
    %c1_i32 = arith.constant 1 : i32
    %7 = arith.select %6, %c1_i32, %c16_i32 : i32
    %8 = vector.broadcast %7 : i32 to vector<8x256xi32>
    %9 = arith.remsi %5, %8 : vector<8x256xi32>
    %c0_i32_5 = arith.constant 0 : i32
    %10 = vector.broadcast %c0_i32_5 : i32 to vector<8x256xi32>
    %11 = arith.cmpi ne, %9, %10 : vector<8x256xi32>
    %c0_i32_6 = arith.constant 0 : i32
    %12 = vector.broadcast %c0_i32_6 : i32 to vector<8x256xi32>
    %13 = arith.cmpi slt, %9, %12 : vector<8x256xi32>
    %c0_i32_7 = arith.constant 0 : i32
    %14 = arith.cmpi slt, %7, %c0_i32_7 : i32
    %15 = vector.broadcast %14 : i1 to vector<8x256xi1>
    %16 = vector.broadcast %15 : vector<8x256xi1> to vector<8x256xi1>
    %17 = arith.xori %13, %16 : vector<8x256xi1>
    %18 = arith.andi %17, %11 : vector<8x256xi1>
    %19 = vector.broadcast %7 : i32 to vector<8x256xi32>
    %20 = arith.addi %9, %19 : vector<8x256xi32>
    %21 = arith.select %18, %20, %9 : vector<8x256xi1>, vector<8x256xi32>
    %c0_8 = arith.constant 0 : index
    %c0_9 = arith.constant 0 : index
    %22 = vector.load %arg8[%c0_8, %c0_9] : memref<8x290xf32, #tpu.memory_space<vmem>>, vector<8x256xf32>
    %c0_i32_10 = arith.constant 0 : i32
    %23 = vector.broadcast %c0_i32_10 : i32 to vector<8x256xi32>
    %24 = arith.cmpi ne, %21, %23 : vector<8x256xi32>
    %cst_11 = arith.constant 0.000000e+00 : f32
    %25 = vector.broadcast %cst_11 : f32 to vector<8x256xf32>
    %26 = arith.select %24, %22, %25 : vector<8x256xi1>, vector<8x256xf32>
    %c0_12 = arith.constant 0 : index
    %c0_13 = arith.constant 0 : index
    %27 = vector.load %arg9[%c0_12, %c0_13] : memref<72x256xf32, #tpu.memory_space<vmem>>, vector<8x256xf32>
    tpu.vector_store %arg9[%c0_12, %c0_13], %26 {strides = array<i32>} : memref<72x256xf32, #tpu.memory_space<vmem>>, vector<8x256xf32>,
    %c0_14 = arith.constant 0 : index
    %c1 = arith.constant 1 : index
    %28 = vector.load %arg8[%c0_14, %c1] : memref<8x290xf32, #tpu.memory_space<vmem>>, vector<8x256xf32>
    %c8 = arith.constant 8 : index
    %c0_15 = arith.constant 0 : index
    %29 = vector.load %arg9[%c8, %c0_15] : memref<72x256xf32, #tpu.memory_space<vmem>>, vector<8x256xf32>
    tpu.vector_store %arg9[%c8, %c0_15], %28 {strides = array<i32>} : memref<72x256xf32, #tpu.memory_space<vmem>>, vector<8x256xf32>,
    %c0_16 = arith.constant 0 : index
    %c2 = arith.constant 2 : index
    %30 = vector.load %arg8[%c0_16, %c2] : memref<8x290xf32, #tpu.memory_space<vmem>>, vector<8x256xf32>
    %c15_i32 = arith.constant 15 : i32
    %31 = vector.broadcast %c15_i32 : i32 to vector<8x256xi32>
    %32 = arith.cmpi ne, %21, %31 : vector<8x256xi32>
    %cst_17 = arith.constant 0.000000e+00 : f32
    %33 = vector.broadcast %cst_17 : f32 to vector<8x256xf32>
    %34 = arith.select %32, %30, %33 : vector<8x256xi1>, vector<8x256xf32>
    %c16 = arith.constant 16 : index
    %c0_18 = arith.constant 0 : index
    %35 = vector.load %arg9[%c16, %c0_18] : memref<72x256xf32, #tpu.memory_space<vmem>>, vector<8x256xf32>
    tpu.vector_store %arg9[%c16, %c0_18], %34 {strides = array<i32>} : memref<72x256xf32, #tpu.memory_space<vmem>>, vector<8x256xf32>,
    %c0_19 = arith.constant 0 : index
    %c16_20 = arith.constant 16 : index
    %36 = vector.load %arg8[%c0_19, %c16_20] : memref<8x290xf32, #tpu.memory_space<vmem>>, vector<8x256xf32>
    %c0_i32_21 = arith.constant 0 : i32
    %37 = vector.broadcast %c0_i32_21 : i32 to vector<8x256xi32>
    %38 = arith.cmpi ne, %21, %37 : vector<8x256xi32>
    %cst_22 = arith.constant 0.000000e+00 : f32
    %39 = vector.broadcast %cst_22 : f32 to vector<8x256xf32>
    %40 = arith.select %38, %36, %39 : vector<8x256xi1>, vector<8x256xf32>
    %c24 = arith.constant 24 : index
    %c0_23 = arith.constant 0 : index
    %41 = vector.load %arg9[%c24, %c0_23] : memref<72x256xf32, #tpu.memory_space<vmem>>, vector<8x256xf32>
    tpu.vector_store %arg9[%c24, %c0_23], %40 {strides = array<i32>} : memref<72x256xf32, #tpu.memory_space<vmem>>, vector<8x256xf32>,
    %c0_24 = arith.constant 0 : index
    %c17_25 = arith.constant 17 : index
    %42 = vector.load %arg8[%c0_24, %c17_25] : memref<8x290xf32, #tpu.memory_space<vmem>>, vector<8x256xf32>
    %c32 = arith.constant 32 : index
    %c0_26 = arith.constant 0 : index
    %43 = vector.load %arg9[%c32, %c0_26] : memref<72x256xf32, #tpu.memory_space<vmem>>, vector<8x256xf32>
    tpu.vector_store %arg9[%c32, %c0_26], %42 {strides = array<i32>} : memref<72x256xf32, #tpu.memory_space<vmem>>, vector<8x256xf32>,
    %c0_27 = arith.constant 0 : index
    %c18 = arith.constant 18 : index
    %44 = vector.load %arg8[%c0_27, %c18] : memref<8x290xf32, #tpu.memory_space<vmem>>, vector<8x256xf32>
    %c15_i32_28 = arith.constant 15 : i32
    %45 = vector.broadcast %c15_i32_28 : i32 to vector<8x256xi32>
    %46 = arith.cmpi ne, %21, %45 : vector<8x256xi32>
    %cst_29 = arith.constant 0.000000e+00 : f32
    %47 = vector.broadcast %cst_29 : f32 to vector<8x256xf32>
    %48 = arith.select %46, %44, %47 : vector<8x256xi1>, vector<8x256xf32>
    %c40 = arith.constant 40 : index
    %c0_30 = arith.constant 0 : index
    %49 = vector.load %arg9[%c40, %c0_30] : memref<72x256xf32, #tpu.memory_space<vmem>>, vector<8x256xf32>
    tpu.vector_store %arg9[%c40, %c0_30], %48 {strides = array<i32>} : memref<72x256xf32, #tpu.memory_space<vmem>>, vector<8x256xf32>,
    %c0_31 = arith.constant 0 : index
    %c32_32 = arith.constant 32 : index
    %50 = vector.load %arg8[%c0_31, %c32_32] : memref<8x290xf32, #tpu.memory_space<vmem>>, vector<8x256xf32>
    %c0_i32_33 = arith.constant 0 : i32
    %51 = vector.broadcast %c0_i32_33 : i32 to vector<8x256xi32>
    %52 = arith.cmpi ne, %21, %51 : vector<8x256xi32>
    %cst_34 = arith.constant 0.000000e+00 : f32
    %53 = vector.broadcast %cst_34 : f32 to vector<8x256xf32>
    %54 = arith.select %52, %50, %53 : vector<8x256xi1>, vector<8x256xf32>
    %c48 = arith.constant 48 : index
    %c0_35 = arith.constant 0 : index
    %55 = vector.load %arg9[%c48, %c0_35] : memref<72x256xf32, #tpu.memory_space<vmem>>, vector<8x256xf32>
    tpu.vector_store %arg9[%c48, %c0_35], %54 {strides = array<i32>} : memref<72x256xf32, #tpu.memory_space<vmem>>, vector<8x256xf32>,
    %c0_36 = arith.constant 0 : index
    %c33 = arith.constant 33 : index
    %56 = vector.load %arg8[%c0_36, %c33] : memref<8x290xf32, #tpu.memory_space<vmem>>, vector<8x256xf32>
    %c56 = arith.constant 56 : index
    %c0_37 = arith.constant 0 : index
    %57 = vector.load %arg9[%c56, %c0_37] : memref<72x256xf32, #tpu.memory_space<vmem>>, vector<8x256xf32>
    tpu.vector_store %arg9[%c56, %c0_37], %56 {strides = array<i32>} : memref<72x256xf32, #tpu.memory_space<vmem>>, vector<8x256xf32>,
    %c0_38 = arith.constant 0 : index
    %c34 = arith.constant 34 : index
    %58 = vector.load %arg8[%c0_38, %c34] : memref<8x290xf32, #tpu.memory_space<vmem>>, vector<8x256xf32>
    %c15_i32_39 = arith.constant 15 : i32
    %59 = vector.broadcast %c15_i32_39 : i32 to vector<8x256xi32>
    %60 = arith.cmpi ne, %21, %59 : vector<8x256xi32>
    %cst_40 = arith.constant 0.000000e+00 : f32
    %61 = vector.broadcast %cst_40 : f32 to vector<8x256xf32>
    %62 = arith.select %60, %58, %61 : vector<8x256xi1>, vector<8x256xf32>
    %c64 = arith.constant 64 : index
    %c0_41 = arith.constant 0 : index
    %63 = vector.load %arg9[%c64, %c0_41] : memref<72x256xf32, #tpu.memory_space<vmem>>, vector<8x256xf32>
    tpu.vector_store %arg9[%c64, %c0_41], %62 {strides = array<i32>} : memref<72x256xf32, #tpu.memory_space<vmem>>, vector<8x256xf32>,
    %c0_42 = arith.constant 0 : index
    %c0_43 = arith.constant 0 : index
    %64 = vector.load %arg2[%c0_42, %c0_43] : memref<4x72xf32, #tpu.memory_space<vmem>>, vector<4x72xf32>
    %c0_44 = arith.constant 0 : index
    %c0_45 = arith.constant 0 : index
    %65 = vector.load %arg9[%c0_44, %c0_45] : memref<72x256xf32, #tpu.memory_space<vmem>>, vector<72x256xf32>
    %cst_46 = arith.constant dense<0.000000e+00> : vector<4x256xf32>
    %66 = tpu.matmul %64, %65, %cst_46 {dimension_numbers = #tpu.dot_dimension_numbers<[1], [0], [0], [1], [0, 0, 1, 1], [], []>} : vector<4x72xf32>, vector<72x256xf32>, vector<4x256xf32> -> vector<4x256xf32>
    %cst_47 = arith.constant 0.000000e+00 : f32
    %67 = vector.broadcast %cst_47 : f32 to vector<4x256xf32>
    %68 = arith.cmpf oge, %66, %67 : vector<4x256xf32>
    %cst_48 = arith.constant 0.00999999977 : f32
    %69 = vector.broadcast %cst_48 : f32 to vector<4x256xf32>
    %70 = arith.mulf %69, %66 : vector<4x256xf32>
    %71 = arith.select %68, %66, %70 : vector<4x256xi1>, vector<4x256xf32>
    %cst_49 = arith.constant 0.000000e+00 : f32
    %72 = vector.broadcast %cst_49 : f32 to vector<4x290xf32>
    %c0_50 = arith.constant 0 : index
    %c0_51 = arith.constant 0 : index
    %73 = vector.load %arg10[%c0_50, %c0_51] : memref<4x290xf32, #tpu.memory_space<vmem>>, vector<4x290xf32>
    tpu.vector_store %arg10[%c0_50, %c0_51], %72 {strides = array<i32>} : memref<4x290xf32, #tpu.memory_space<vmem>>, vector<4x290xf32>,
    %c0_52 = arith.constant 0 : index
    %c17_53 = arith.constant 17 : index
    %74 = vector.load %arg10[%c0_52, %c17_53] : memref<4x290xf32, #tpu.memory_space<vmem>>, vector<4x256xf32>
    tpu.vector_store %arg10[%c0_52, %c17_53], %71 {strides = array<i32>} : memref<4x290xf32, #tpu.memory_space<vmem>>, vector<4x256xf32>,
    %75 = tpu.iota {dimensions = array<i32: 1>} : vector<4x256xi32>
    %c16_i32_54 = arith.constant 16 : i32
    %c0_i32_55 = arith.constant 0 : i32
    %76 = arith.cmpi eq, %c16_i32_54, %c0_i32_55 : i32
    %c1_i32_56 = arith.constant 1 : i32
    %77 = arith.select %76, %c1_i32_56, %c16_i32_54 : i32
    %78 = vector.broadcast %77 : i32 to vector<4x256xi32>
    %79 = arith.remsi %75, %78 : vector<4x256xi32>
    %c0_i32_57 = arith.constant 0 : i32
    %80 = vector.broadcast %c0_i32_57 : i32 to vector<4x256xi32>
    %81 = arith.cmpi ne, %79, %80 : vector<4x256xi32>
    %c0_i32_58 = arith.constant 0 : i32
    %82 = vector.broadcast %c0_i32_58 : i32 to vector<4x256xi32>
    %83 = arith.cmpi slt, %79, %82 : vector<4x256xi32>
    %c0_i32_59 = arith.constant 0 : i32
    %84 = arith.cmpi slt, %77, %c0_i32_59 : i32
    %85 = vector.broadcast %84 : i1 to vector<4x256xi1>
    %86 = vector.broadcast %85 : vector<4x256xi1> to vector<4x256xi1>
    %87 = arith.xori %83, %86 : vector<4x256xi1>
    %88 = arith.andi %87, %81 : vector<4x256xi1>
    %89 = vector.broadcast %77 : i32 to vector<4x256xi32>
    %90 = arith.addi %79, %89 : vector<4x256xi32>
    %91 = arith.select %88, %90, %79 : vector<4x256xi1>, vector<4x256xi32>
    %c0_60 = arith.constant 0 : index
    %c0_61 = arith.constant 0 : index
    %92 = vector.load %arg10[%c0_60, %c0_61] : memref<4x290xf32, #tpu.memory_space<vmem>>, vector<4x256xf32>
    %c0_i32_62 = arith.constant 0 : i32
    %93 = vector.broadcast %c0_i32_62 : i32 to vector<4x256xi32>
    %94 = arith.cmpi ne, %91, %93 : vector<4x256xi32>
    %cst_63 = arith.constant 0.000000e+00 : f32
    %95 = vector.broadcast %cst_63 : f32 to vector<4x256xf32>
    %96 = arith.select %94, %92, %95 : vector<4x256xi1>, vector<4x256xf32>
    %c0_64 = arith.constant 0 : index
    %c0_65 = arith.constant 0 : index
    %97 = vector.load %arg11[%c0_64, %c0_65] : memref<36x256xf32, #tpu.memory_space<vmem>>, vector<4x256xf32>
    tpu.vector_store %arg11[%c0_64, %c0_65], %96 {strides = array<i32>} : memref<36x256xf32, #tpu.memory_space<vmem>>, vector<4x256xf32>,
    %c0_66 = arith.constant 0 : index
    %c1_67 = arith.constant 1 : index
    %98 = vector.load %arg10[%c0_66, %c1_67] : memref<4x290xf32, #tpu.memory_space<vmem>>, vector<4x256xf32>
    %c4 = arith.constant 4 : index
    %c0_68 = arith.constant 0 : index
    %99 = vector.load %arg11[%c4, %c0_68] : memref<36x256xf32, #tpu.memory_space<vmem>>, vector<4x256xf32>
    tpu.vector_store %arg11[%c4, %c0_68], %98 {strides = array<i32>} : memref<36x256xf32, #tpu.memory_space<vmem>>, vector<4x256xf32>,
    %c0_69 = arith.constant 0 : index
    %c2_70 = arith.constant 2 : index
    %100 = vector.load %arg10[%c0_69, %c2_70] : memref<4x290xf32, #tpu.memory_space<vmem>>, vector<4x256xf32>
    %c15_i32_71 = arith.constant 15 : i32
    %101 = vector.broadcast %c15_i32_71 : i32 to vector<4x256xi32>
    %102 = arith.cmpi ne, %91, %101 : vector<4x256xi32>
    %cst_72 = arith.constant 0.000000e+00 : f32
    %103 = vector.broadcast %cst_72 : f32 to vector<4x256xf32>
    %104 = arith.select %102, %100, %103 : vector<4x256xi1>, vector<4x256xf32>
    %c8_73 = arith.constant 8 : index
    %c0_74 = arith.constant 0 : index
    %105 = vector.load %arg11[%c8_73, %c0_74] : memref<36x256xf32, #tpu.memory_space<vmem>>, vector<4x256xf32>
    tpu.vector_store %arg11[%c8_73, %c0_74], %104 {strides = array<i32>} : memref<36x256xf32, #tpu.memory_space<vmem>>, vector<4x256xf32>,
    %c0_75 = arith.constant 0 : index
    %c16_76 = arith.constant 16 : index
    %106 = vector.load %arg10[%c0_75, %c16_76] : memref<4x290xf32, #tpu.memory_space<vmem>>, vector<4x256xf32>
    %c0_i32_77 = arith.constant 0 : i32
    %107 = vector.broadcast %c0_i32_77 : i32 to vector<4x256xi32>
    %108 = arith.cmpi ne, %91, %107 : vector<4x256xi32>
    %cst_78 = arith.constant 0.000000e+00 : f32
    %109 = vector.broadcast %cst_78 : f32 to vector<4x256xf32>
    %110 = arith.select %108, %106, %109 : vector<4x256xi1>, vector<4x256xf32>
    %c12 = arith.constant 12 : index
    %c0_79 = arith.constant 0 : index
    %111 = vector.load %arg11[%c12, %c0_79] : memref<36x256xf32, #tpu.memory_space<vmem>>, vector<4x256xf32>
    tpu.vector_store %arg11[%c12, %c0_79], %110 {strides = array<i32>} : memref<36x256xf32, #tpu.memory_space<vmem>>, vector<4x256xf32>,
    %c0_80 = arith.constant 0 : index
    %c17_81 = arith.constant 17 : index
    %112 = vector.load %arg10[%c0_80, %c17_81] : memref<4x290xf32, #tpu.memory_space<vmem>>, vector<4x256xf32>
    %c16_82 = arith.constant 16 : index
    %c0_83 = arith.constant 0 : index
    %113 = vector.load %arg11[%c16_82, %c0_83] : memref<36x256xf32, #tpu.memory_space<vmem>>, vector<4x256xf32>
    tpu.vector_store %arg11[%c16_82, %c0_83], %112 {strides = array<i32>} : memref<36x256xf32, #tpu.memory_space<vmem>>, vector<4x256xf32>,
    %c0_84 = arith.constant 0 : index
    %c18_85 = arith.constant 18 : index
    %114 = vector.load %arg10[%c0_84, %c18_85] : memref<4x290xf32, #tpu.memory_space<vmem>>, vector<4x256xf32>
    %c15_i32_86 = arith.constant 15 : i32
    %115 = vector.broadcast %c15_i32_86 : i32 to vector<4x256xi32>
    %116 = arith.cmpi ne, %91, %115 : vector<4x256xi32>
    %cst_87 = arith.constant 0.000000e+00 : f32
    %117 = vector.broadcast %cst_87 : f32 to vector<4x256xf32>
    %118 = arith.select %116, %114, %117 : vector<4x256xi1>, vector<4x256xf32>
    %c20 = arith.constant 20 : index
    %c0_88 = arith.constant 0 : index
    %119 = vector.load %arg11[%c20, %c0_88] : memref<36x256xf32, #tpu.memory_space<vmem>>, vector<4x256xf32>
    tpu.vector_store %arg11[%c20, %c0_88], %118 {strides = array<i32>} : memref<36x256xf32, #tpu.memory_space<vmem>>, vector<4x256xf32>,
    %c0_89 = arith.constant 0 : index
    %c32_90 = arith.constant 32 : index
    %120 = vector.load %arg10[%c0_89, %c32_90] : memref<4x290xf32, #tpu.memory_space<vmem>>, vector<4x256xf32>
    %c0_i32_91 = arith.constant 0 : i32
    %121 = vector.broadcast %c0_i32_91 : i32 to vector<4x256xi32>
    %122 = arith.cmpi ne, %91, %121 : vector<4x256xi32>
    %cst_92 = arith.constant 0.000000e+00 : f32
    %123 = vector.broadcast %cst_92 : f32 to vector<4x256xf32>
    %124 = arith.select %122, %120, %123 : vector<4x256xi1>, vector<4x256xf32>
    %c24_93 = arith.constant 24 : index
    %c0_94 = arith.constant 0 : index
    %125 = vector.load %arg11[%c24_93, %c0_94] : memref<36x256xf32, #tpu.memory_space<vmem>>, vector<4x256xf32>
    tpu.vector_store %arg11[%c24_93, %c0_94], %124 {strides = array<i32>} : memref<36x256xf32, #tpu.memory_space<vmem>>, vector<4x256xf32>,
    %c0_95 = arith.constant 0 : index
    %c33_96 = arith.constant 33 : index
    %126 = vector.load %arg10[%c0_95, %c33_96] : memref<4x290xf32, #tpu.memory_space<vmem>>, vector<4x256xf32>
    %c28 = arith.constant 28 : index
    %c0_97 = arith.constant 0 : index
    %127 = vector.load %arg11[%c28, %c0_97] : memref<36x256xf32, #tpu.memory_space<vmem>>, vector<4x256xf32>
    tpu.vector_store %arg11[%c28, %c0_97], %126 {strides = array<i32>} : memref<36x256xf32, #tpu.memory_space<vmem>>, vector<4x256xf32>,
    %c0_98 = arith.constant 0 : index
    %c34_99 = arith.constant 34 : index
    %128 = vector.load %arg10[%c0_98, %c34_99] : memref<4x290xf32, #tpu.memory_space<vmem>>, vector<4x256xf32>
    %c15_i32_100 = arith.constant 15 : i32
    %129 = vector.broadcast %c15_i32_100 : i32 to vector<4x256xi32>
    %130 = arith.cmpi ne, %91, %129 : vector<4x256xi32>
    %cst_101 = arith.constant 0.000000e+00 : f32
    %131 = vector.broadcast %cst_101 : f32 to vector<4x256xf32>
    %132 = arith.select %130, %128, %131 : vector<4x256xi1>, vector<4x256xf32>
    %c32_102 = arith.constant 32 : index
    %c0_103 = arith.constant 0 : index
    %133 = vector.load %arg11[%c32_102, %c0_103] : memref<36x256xf32, #tpu.memory_space<vmem>>, vector<4x256xf32>
    tpu.vector_store %arg11[%c32_102, %c0_103], %132 {strides = array<i32>} : memref<36x256xf32, #tpu.memory_space<vmem>>, vector<4x256xf32>,
    %c0_104 = arith.constant 0 : index
    %c0_105 = arith.constant 0 : index
    %134 = vector.load %arg3[%c0_104, %c0_105] : memref<4x36xf32, #tpu.memory_space<vmem>>, vector<4x36xf32>
    %c0_106 = arith.constant 0 : index
    %c0_107 = arith.constant 0 : index
    %135 = vector.load %arg11[%c0_106, %c0_107] : memref<36x256xf32, #tpu.memory_space<vmem>>, vector<36x256xf32>
    %cst_108 = arith.constant dense<0.000000e+00> : vector<4x256xf32>
    %136 = tpu.matmul %134, %135, %cst_108 {dimension_numbers = #tpu.dot_dimension_numbers<[1], [0], [0], [1], [0, 0, 1, 1], [], []>} : vector<4x36xf32>, vector<36x256xf32>, vector<4x256xf32> -> vector<4x256xf32>
    %cst_109 = arith.constant 0.000000e+00 : f32
    %137 = vector.broadcast %cst_109 : f32 to vector<4x256xf32>
    %138 = arith.cmpf oge, %136, %137 : vector<4x256xf32>
    %cst_110 = arith.constant 0.00999999977 : f32
    %139 = vector.broadcast %cst_110 : f32 to vector<4x256xf32>
    %140 = arith.mulf %139, %136 : vector<4x256xf32>
    %141 = arith.select %138, %136, %140 : vector<4x256xi1>, vector<4x256xf32>
    %c0_111 = arith.constant 0 : index
    %c0_112 = arith.constant 0 : index
    %142 = vector.load %arg4[%c0_111, %c0_112] : memref<4x4xf32, #tpu.memory_space<vmem>>, vector<4x4xf32>
    %cst_113 = arith.constant dense<0.000000e+00> : vector<4x256xf32>
    %143 = tpu.matmul %142, %141, %cst_113 {dimension_numbers = #tpu.dot_dimension_numbers<[1], [0], [0], [1], [0, 0, 1, 1], [], []>} : vector<4x4xf32>, vector<4x256xf32>, vector<4x256xf32> -> vector<4x256xf32>
    %cst_114 = arith.constant 0.000000e+00 : f32
    %144 = vector.broadcast %cst_114 : f32 to vector<4x256xf32>
    %145 = arith.cmpf oge, %143, %144 : vector<4x256xf32>
    %cst_115 = arith.constant 0.00999999977 : f32
    %146 = vector.broadcast %cst_115 : f32 to vector<4x256xf32>
    %147 = arith.mulf %146, %143 : vector<4x256xf32>
    %148 = arith.select %145, %143, %147 : vector<4x256xi1>, vector<4x256xf32>
    %c0_116 = arith.constant 0 : index
    %c0_117 = arith.constant 0 : index
    %149 = vector.load %arg5[%c0_116, %c0_117] : memref<16x4xf32, #tpu.memory_space<vmem>>, vector<16x4xf32>
    %cst_118 = arith.constant dense<0.000000e+00> : vector<16x256xf32>
    %150 = tpu.matmul %149, %148, %cst_118 {dimension_numbers = #tpu.dot_dimension_numbers<[1], [0], [0], [1], [0, 0, 1, 1], [], []>} : vector<16x4xf32>, vector<4x256xf32>, vector<16x256xf32> -> vector<16x256xf32>
    %c0_119 = arith.constant 0 : index
    %c0_120 = arith.constant 0 : index
    %151 = vector.load %arg6[%c0_119, %c0_120] : memref<16x1xf32, #tpu.memory_space<vmem>>, vector<16x1xf32>
    %152 = vector.broadcast %151 : vector<16x1xf32> to vector<16x256xf32>
    %153 = arith.addf %150, %152 : vector<16x256xf32>
    %cst_121 = arith.constant 0.000000e+00 : f32
    %154 = vector.broadcast %cst_121 : f32 to vector<16x256xf32>
    %155 = arith.cmpf oge, %153, %154 : vector<16x256xf32>
    %cst_122 = arith.constant 0.00999999977 : f32
    %156 = vector.broadcast %cst_122 : f32 to vector<16x256xf32>
    %157 = arith.mulf %156, %153 : vector<16x256xf32>
    %158 = arith.select %155, %153, %157 : vector<16x256xi1>, vector<16x256xf32>
    %c0_123 = arith.constant 0 : index
    %c0_124 = arith.constant 0 : index
    %c0_125 = arith.constant 0 : index
    %159 = vector.load %arg7[%c0_123, %c0_124, %c0_125] : memref<1x16x256xf32, #tpu.memory_space<vmem>>, vector<1x16x256xf32>
    %160 = vector.shape_cast %159 : vector<1x16x256xf32> to vector<16x256xf32>
    %161 = vector.shape_cast %158 : vector<16x256xf32> to vector<1x16x256xf32>
    tpu.vector_store %arg7[%c0_123, %c0_124, %c0_125], %161 {strides = array<i32>} : memref<1x16x256xf32, #tpu.memory_space<vmem>>, vector<1x16x256xf32>,
    return
  }
  func.func @transform_0(%arg0: i32) -> (i32, i32, i32) {
    %c0_i32 = arith.constant 0 : i32
    %c0_i32_0 = arith.constant 0 : i32
    %c0_i32_1 = arith.constant 0 : i32
    return %arg0, %c0_i32, %c0_i32_0 : i32, i32, i32
  }
  func.func @transform_1(%arg0: i32) -> (i32, i32) {
    %c0_i32 = arith.constant 0 : i32
    %c0_i32_0 = arith.constant 0 : i32
    %c0_i32_1 = arith.constant 0 : i32
    return %c0_i32, %c0_i32_0 : i32, i32
  }
  func.func @transform_2(%arg0: i32) -> (i32, i32) {
    %c0_i32 = arith.constant 0 : i32
    %c0_i32_0 = arith.constant 0 : i32
    %c0_i32_1 = arith.constant 0 : i32
    return %c0_i32, %c0_i32_0 : i32, i32
  }
  func.func @transform_3(%arg0: i32) -> (i32, i32) {
    %c0_i32 = arith.constant 0 : i32
    %c0_i32_0 = arith.constant 0 : i32
    %c0_i32_1 = arith.constant 0 : i32
    return %c0_i32, %c0_i32_0 : i32, i32
  }
  func.func @transform_4(%arg0: i32) -> (i32, i32) {
    %c0_i32 = arith.constant 0 : i32
    %c0_i32_0 = arith.constant 0 : i32
    %c0_i32_1 = arith.constant 0 : i32
    return %c0_i32, %c0_i32_0 : i32, i32
  }
  func.func @transform_5(%arg0: i32) -> (i32, i32) {
    %c0_i32 = arith.constant 0 : i32
    %c0_i32_0 = arith.constant 0 : i32
    %c0_i32_1 = arith.constant 0 : i32
    return %c0_i32, %c0_i32_0 : i32, i32
  }
  func.func @transform_6(%arg0: i32) -> (i32, i32, i32) {
    %c0_i32 = arith.constant 0 : i32
    %c0_i32_0 = arith.constant 0 : i32
    %c0_i32_1 = arith.constant 0 : i32
    return %arg0, %c0_i32, %c0_i32_0 : i32, i32, i32
  }
}

</mosaic_0001>

<llo_original>
// kernel: feature_concat_forward.2
$region0: #{feature_concat_forward.2}
  #allocation0 [shape = 'u32[]', space=smem, size = 0x4, offset = 0x4, fixed_abs, tag = 'smem constant byte address 0x4 - core index']
  #allocation1 [shape = 'u32[144,128]{1,0:T(1,128)}', space=vmem, size = 0x12000, scoped, tag = 'internal scratch']
  #allocation2 [shape = 'f32[8,290]{1,0:T(8,128)}', space=vmem, size = 0x3000, scoped, tag = 'scratch operand']
  #allocation3 [shape = 'f32[72,256]{1,0:T(8,128)}', space=vmem, size = 0x12000, scoped, tag = 'scratch operand']
  #allocation4 [shape = 'f32[4,290]{1,0:T(4,128)}', space=vmem, size = 0x1800, scoped, tag = 'scratch operand']
  #allocation5 [shape = 'f32[36,256]{1,0:T(8,128)}', space=vmem, size = 0xa000, scoped, tag = 'scratch operand']
  %s0 = inlined_call_operand.vmem [shape: f32[2,8,256], index: 0, kind: input, shape index: {}]
  %s1 = inlined_call_operand.vmem [shape: f32[4,72], index: 1, kind: input, shape index: {}]
  %s2 = inlined_call_operand.vmem [shape: f32[4,36], index: 2, kind: input, shape index: {}]
  %s3 = inlined_call_operand.vmem [shape: f32[4,4], index: 3, kind: input, shape index: {}]
  %s4 = inlined_call_operand.vmem [shape: f32[16,4], index: 4, kind: input, shape index: {}]
  %s5 = inlined_call_operand.vmem [shape: f32[16,1], index: 5, kind: input, shape index: {}]
  %s6 = inlined_call_operand.vmem [shape: f32[2,16,256], index: 6, kind: output, shape index: {}]
  %s7 = sld [smem:[#allocation0]]
  $region57: #{feature_concat_forward.2} parent=0
    _
  %s9 = ssub.s32 1, %s7
  %s10 = scalar_select 0, %s9, %s7
  loop: start=0, step=1, limit=4
  $region2: #{feature_concat_forward.2} parent=0 // loop_pre_header
    _
  $region3: #{feature_concat_forward.2} parent=0 // loop_header
    %s12 = sphi 0, %s16
    %p13 = scmp.ge.s32.totalorder %s12, 4
    %s22 = sphi 0, %s24
    %s25 = sphi 0, %s22
    %s26 = sphi 0, %s25
    %s42 = sphi 0, %s26
    %s46 = sphi 0, %s46
    %s48 = sphi 0, %s46
    %s49 = sphi 0, %s48
    %s63 = sphi 0, %s49
    %s67 = sphi 0, %s67
    %s69 = sphi 0, %s67
    %s70 = sphi 0, %s69
    %s84 = sphi 0, %s70
    %s88 = sphi 0, %s88
    %s90 = sphi 0, %s88
    %s91 = sphi 0, %s90
    %s105 = sphi 0, %s91
    %s109 = sphi 0, %s109
    %s111 = sphi 0, %s109
    %s112 = sphi 0, %s111
    %s126 = sphi 0, %s112
    %s130 = sphi 0, %s130
    %s132 = sphi 0, %s130
    %s133 = sphi 0, %s132
    %s147 = sphi 0, %s133
    %s153 = sphi 0, %s155
    %s156 = sphi 0, %s153
    %s157 = sphi 0, %s156
    %s173 = sphi 0, %s157
  $region4: #{feature_concat_forward.2} parent=0 // loop_header_branch
    %15 = sbr.rel (%p13) target = $region8
  $region5: #{feature_concat_forward.2} parent=0 // loop_body
    %s17 = ssub.s32 %s12, 1
    %s18 = ssub.s32 %s12, 2
    %s19 = sadd.s32 %s12, 1
    %s20 = ssub.s32 %s12, %s19
    %p21 = scmp.eq.s32.totalorder %s20, 0
    %s23 = sadd.s32 %s22, 1
    %s24 = scalar_select %p21, %s22, %s23
    %p27 = pneg %p21
    %p28 = scmp.eq.s32.totalorder %s12, 1
    %p29 = por %p27, %p28
    %p30 = scmp.ne.s32.totalorder %s22, %s25
    %p31 = scmp.eq.s32.totalorder %s12, 0
    %p32 = por %p30, %p31
    %p33 = scmp.ne.s32.totalorder %s22, %s25
    %p34 = scmp.eq.s32.totalorder %s17, 1
    %p35 = por %p33, %p34
    %p36 = scmp.ne.s32.totalorder %s25, %s26
    %p37 = scmp.eq.s32.totalorder %s17, 0
    %p38 = por %p36, %p37
    %p39 = scmp.ne.s32.totalorder %s25, %s26
    %p40 = scmp.eq.s32.totalorder %s18, 1
    %p41 = por %p39, %p40
    %p43 = scmp.ne.s32.totalorder %s26, %s42
    %p44 = scmp.eq.s32.totalorder %s18, 0
    %p45 = por %p43, %p44
    %s47 = sadd.s32 %s46, 1
    %p50 = scmp.eq.s32.totalorder %s12, 1
    %p51 = scmp.ne.s32.totalorder %s46, %s48
    %p52 = scmp.eq.s32.totalorder %s12, 0
    %p53 = por %p51, %p52
    %p54 = scmp.ne.s32.totalorder %s46, %s48
    %p55 = scmp.eq.s32.totalorder %s17, 1
    %p56 = por %p54, %p55
    %p57 = scmp.ne.s32.totalorder %s48, %s49
    %p58 = scmp.eq.s32.totalorder %s17, 0
    %p59 = por %p57, %p58
    %p60 = scmp.ne.s32.totalorder %s48, %s49
    %p61 = scmp.eq.s32.totalorder %s18, 1
    %p62 = por %p60, %p61
    %p64 = scmp.ne.s32.totalorder %s49, %s63
    %p65 = scmp.eq.s32.totalorder %s18, 0
    %p66 = por %p64, %p65
    %s68 = sadd.s32 %s67, 1
    %p71 = scmp.eq.s32.totalorder %s12, 1
    %p72 = scmp.ne.s32.totalorder %s67, %s69
    %p73 = scmp.eq.s32.totalorder %s12, 0
    %p74 = por %p72, %p73
    %p75 = scmp.ne.s32.totalorder %s67, %s69
    %p76 = scmp.eq.s32.totalorder %s17, 1
    %p77 = por %p75, %p76
    %p78 = scmp.ne.s32.totalorder %s69, %s70
    %p79 = scmp.eq.s32.totalorder %s17, 0
    %p80 = por %p78, %p79
    %p81 = scmp.ne.s32.totalorder %s69, %s70
    %p82 = scmp.eq.s32.totalorder %s18, 1
    %p83 = por %p81, %p82
    %p85 = scmp.ne.s32.totalorder %s70, %s84
    %p86 = scmp.eq.s32.totalorder %s18, 0
    %p87 = por %p85, %p86
    %s89 = sadd.s32 %s88, 1
    %p92 = scmp.eq.s32.totalorder %s12, 1
    %p93 = scmp.ne.s32.totalorder %s88, %s90
    %p94 = scmp.eq.s32.totalorder %s12, 0
    %p95 = por %p93, %p94
    %p96 = scmp.ne.s32.totalorder %s88, %s90
    %p97 = scmp.eq.s32.totalorder %s17, 1
    %p98 = por %p96, %p97
    %p99 = scmp.ne.s32.totalorder %s90, %s91
    %p100 = scmp.eq.s32.totalorder %s17, 0
    %p101 = por %p99, %p100
    %p102 = scmp.ne.s32.totalorder %s90, %s91
    %p103 = scmp.eq.s32.totalorder %s18, 1
    %p104 = por %p102, %p103
    %p106 = scmp.ne.s32.totalorder %s91, %s105
    %p107 = scmp.eq.s32.totalorder %s18, 0
    %p108 = por %p106, %p107
    %s110 = sadd.s32 %s109, 1
    %p113 = scmp.eq.s32.totalorder %s12, 1
    %p114 = scmp.ne.s32.totalorder %s109, %s111
    %p115 = scmp.eq.s32.totalorder %s12, 0
    %p116 = por %p114, %p115
    %p117 = scmp.ne.s32.totalorder %s109, %s111
    %p118 = scmp.eq.s32.totalorder %s17, 1
    %p119 = por %p117, %p118
    %p120 = scmp.ne.s32.totalorder %s111, %s112
    %p121 = scmp.eq.s32.totalorder %s17, 0
    %p122 = por %p120, %p121
    %p123 = scmp.ne.s32.totalorder %s111, %s112
    %p124 = scmp.eq.s32.totalorder %s18, 1
    %p125 = por %p123, %p124
    %p127 = scmp.ne.s32.totalorder %s112, %s126
    %p128 = scmp.eq.s32.totalorder %s18, 0
    %p129 = por %p127, %p128
    %s131 = sadd.s32 %s130, 1
    %p134 = scmp.eq.s32.totalorder %s12, 1
    %p135 = scmp.ne.s32.totalorder %s130, %s132
    %p136 = scmp.eq.s32.totalorder %s12, 0
    %p137 = por %p135, %p136
    %p138 = scmp.ne.s32.totalorder %s130, %s132
    %p139 = scmp.eq.s32.totalorder %s17, 1
    %p140 = por %p138, %p139
    %p141 = scmp.ne.s32.totalorder %s132, %s133
    %p142 = scmp.eq.s32.totalorder %s17, 0
    %p143 = por %p141, %p142
    %p144 = scmp.ne.s32.totalorder %s132, %s133
    %p145 = scmp.eq.s32.totalorder %s18, 1
    %p146 = por %p144, %p145
    %p148 = scmp.ne.s32.totalorder %s133, %s147
    %p149 = scmp.eq.s32.totalorder %s18, 0
    %p150 = por %p148, %p149
    %s151 = ssub.s32 %s12, %s19
    %p152 = scmp.eq.s32.totalorder %s151, 0
    %s154 = sadd.s32 %s153, 1
    %s155 = scalar_select %p152, %s153, %s154
    %p158 = pneg %p152
    %p159 = scmp.eq.s32.totalorder %s12, 1
    %p160 = por %p158, %p159
    %p161 = scmp.ne.s32.totalorder %s153, %s156
    %p162 = scmp.eq.s32.totalorder %s12, 0
    %p163 = por %p161, %p162
    %p164 = scmp.ne.s32.totalorder %s153, %s156
    %p165 = scmp.eq.s32.totalorder %s17, 1
    %p166 = por %p164, %p165
    %p167 = scmp.ne.s32.totalorder %s156, %s157
    %p168 = scmp.eq.s32.totalorder %s17, 0
    %p169 = por %p167, %p168
    %p170 = scmp.ne.s32.totalorder %s156, %s157
    %p171 = scmp.eq.s32.totalorder %s18, 1
    %p172 = por %p170, %p171
    %p174 = scmp.ne.s32.totalorder %s157, %s173
    %p175 = scmp.eq.s32.totalorder %s18, 0
    %p176 = por %p174, %p175
    %p177 = scmp.le.s32.totalorder 1, %s12
    %p178 = scmp.lt.s32.totalorder %s12, 3
    %p179 = pnand %p177, %p178
    %p180 = pneg %p179
    // Predicated region
    $region9: #{feature_concat_forward.2} parent=5 // pred_check
      _
    $region10: #{feature_concat_forward.2} parent=5 // pred_check_branch
      %182 = sbr.rel (%p179) target = $region12
    $region11: #{feature_concat_forward.2} parent=5 // pred_region
      %s183 = ssub.s32 %s12, 1
      // Predicated region
      $region13: #{feature_concat_forward.2} parent=11 // pred_check
        %p184 = pneg %p59
      $region14: #{feature_concat_forward.2} parent=11 // pred_check_branch
        %186 = sbr.rel (%p184) target = $region16
      $region15: #{feature_concat_forward.2} parent=11 // pred_region
        _
      $region16: #{feature_concat_forward.2} parent=11 // pred_fallthru
        _
      // Predicated region
      $region17: #{feature_concat_forward.2} parent=11 // pred_check
        %p187 = pneg %p80
      $region18: #{feature_concat_forward.2} parent=11 // pred_check_branch
        %189 = sbr.rel (%p187) target = $region20
      $region19: #{feature_concat_forward.2} parent=11 // pred_region
        _
      $region20: #{feature_concat_forward.2} parent=11 // pred_fallthru
        _
      // Predicated region
      $region21: #{feature_concat_forward.2} parent=11 // pred_check
        %p190 = pneg %p101
      $region22: #{feature_concat_forward.2} parent=11 // pred_check_branch
        %192 = sbr.rel (%p190) target = $region24
      $region23: #{feature_concat_forward.2} parent=11 // pred_region
        _
      $region24: #{feature_concat_forward.2} parent=11 // pred_fallthru
        _
      // Predicated region
      $region25: #{feature_concat_forward.2} parent=11 // pred_check
        %p193 = pneg %p122
      $region26: #{feature_concat_forward.2} parent=11 // pred_check_branch
        %195 = sbr.rel (%p193) target = $region28
      $region27: #{feature_concat_forward.2} parent=11 // pred_region
        _
      $region28: #{feature_concat_forward.2} parent=11 // pred_fallthru
        _
      // Predicated region
      $region29: #{feature_concat_forward.2} parent=11 // pred_check
        %p196 = pneg %p143
      $region30: #{feature_concat_forward.2} parent=11 // pred_check_branch
        %198 = sbr.rel (%p196) target = $region32
      $region31: #{feature_concat_forward.2} parent=11 // pred_region
        _
      $region32: #{feature_concat_forward.2} parent=11 // pred_fallthru
        _
    $region12: #{feature_concat_forward.2} parent=5 // pred_fallthru
      _
    %p199 = scmp.lt.s32.totalorder %s12, 2
    // Predicated region
    $region33: #{feature_concat_forward.2} parent=5 // pred_check
      %p200 = pneg %p199
    $region34: #{feature_concat_forward.2} parent=5 // pred_check_branch
      %202 = sbr.rel (%p200) target = $region36
    $region35: #{feature_concat_forward.2} parent=5 // pred_region
      // Predicated region
      $region37: #{feature_concat_forward.2} parent=35 // pred_check
        %p203 = pneg %p32
      $region38: #{feature_concat_forward.2} parent=35 // pred_check_branch
        %205 = sbr.rel (%p203) target = $region40
      $region39: #{feature_concat_forward.2} parent=35 // pred_region
        %p206 = scmp.lt.s32.totalorder %s12, 1
        %s207 = scalar_select %p206, %s12, 1
        %s208 = smul.addr %s207, 2
        %s209 = smul.addr %s208, 8
        %s210 = scalar_lea.vmem %s0, %s209
      $region40: #{feature_concat_forward.2} parent=35 // pred_fallthru
        _
    $region36: #{feature_concat_forward.2} parent=5 // pred_fallthru
      _
    %p211 = scmp.le.s32.totalorder 1, %s12
    %p212 = scmp.lt.s32.totalorder %s12, 3
    %p213 = pnand %p211, %p212
    %p214 = pneg %p213
    // Predicated region
    $region41: #{feature_concat_forward.2} parent=5 // pred_check
      _
    $region42: #{feature_concat_forward.2} parent=5 // pred_check_branch
      %216 = sbr.rel (%p213) target = $region44
    $region43: #{feature_concat_forward.2} parent=5 // pred_region
      %s217 = ssub.s32 %s12, 1
      %p218 = scmp.lt.s32.totalorder %s17, 1
      %s219 = scalar_select %p218, %s17, 1
      %s220 = smul.addr %s219, 2
      %s221 = smul.addr %s220, 8
      %s222 = scalar_lea.vmem %s0, %s221
      %p223 = pneg %p38
      %p224 = pneg %p35
      %p225 = pneg %p59
      %p226 = pneg %p56
      %p227 = pneg %p80
      %p228 = pneg %p77
      %p229 = pneg %p101
      %p230 = pneg %p98
      %p231 = pneg %p122
      %p232 = pneg %p119
      %p233 = pneg %p143
      %p234 = pneg %p140
      %p235 = pneg %p169
      %p236 = pneg %p166
      %p237 = scmp.lt.s32.totalorder %s17, 1
      %s238 = scalar_select %p237, %s17, 1
      %s239 = smul.addr %s238, 4
      %s240 = smul.addr %s239, 8
      %s241 = scalar_lea.vmem %s6, %s240
      %p242 = scmp.lt.s32.totalorder %s17, 1
      %s243 = scalar_select %p242, %s17, 1
      %s244 = smul.addr %s243, 2
      %s245 = smul.addr %s244, 8
      %s246 = scalar_lea.vmem %s0, %s245
      %p247 = scmp.lt.s32.totalorder %s17, 1
      %s248 = scalar_select %p247, %s17, 1
      %s249 = smul.addr %s248, 4
      %s250 = smul.addr %s249, 8
      %s251 = scalar_lea.vmem %s6, %s250
      %v252 = vld [vmem:[%s246] sm:$0xff]
      %v253 = vld [vmem:[%s246 + $0x8] sm:$0xff]
      %254 = vst [vmem:[#allocation2] sm:$0xff] 0.0
      %255 = vst [vmem:[#allocation2 + $0x8] sm:$0xff] 0.0
      %vm256 = vcmask 277504
      %257 = vst.msk [vmem:[#allocation2 + $0x10] sm:$0xff] %vm256, 0.0
      %260 = vrot.lane.b32.xlu0 %v252, 17
      %v261 = vpop.permute.xlu0 %260
      %262 = vrot.lane.b32.xlu0 %v253, 17
      %v263 = vpop.permute.xlu0 %262
      %vm264 = vcmask 138240
      %v265 = vsel %vm264, %v261, %v263
      %vm269 = vcmask 1047688
      %270 = vst.msk [vmem:[#allocation2] sm:$0xff] %vm269, %v261
      %271 = vst [vmem:[#allocation2 + $0x8] sm:$0xff] %v265
      %272 = vst.msk [vmem:[#allocation2 + $0x10] sm:$0xff] %vm264, %v263
      %v273 = vlaneseq
      %v274 = vand.u32 %v273, 127
      %v275 = vadd.s32 %v274, 128
      %vm276 = vcmp.lt.s32.totalorder %v274, 0
      %v277 = vsub.s32 0, %v274
      %v278 = vsel %vm276, %v277, %v274
      %v279 = vshrl.u32 %v278, 4
      %v280 = vand.u32 %v278, 15
      %v281 = vsub.s32 0, %v280
      %v282 = vsel %vm276, %v281, %v280
      %vm283 = vcmp.lt.s32.totalorder %v275, 0
      %v284 = vsub.s32 0, %v275
      %v285 = vsel %vm283, %v284, %v275
      %v286 = vshrl.u32 %v285, 4
      %v287 = vand.u32 %v285, 15
      %v288 = vsub.s32 0, %v287
      %v289 = vsel %vm283, %v288, %v287
      %vm290 = vcmp.ne.s32.totalorder %v282, 0
      %vm291 = vcmp.ne.s32.totalorder %v289, 0
      %vm292 = vcmp.lt.s32.totalorder %v282, 0
      %vm293 = vcmp.lt.s32.totalorder %v289, 0
      %vm294 = vmand %vm292, %vm290
      %vm295 = vmand %vm293, %vm291
      %v296 = vadd.s32 %v282, 16
      %v297 = vadd.s32 %v289, 16
      %v298 = vsel %vm294, %v296, %v282
      %v299 = vsel %vm295, %v297, %v289
      %v300 = vld [vmem:[#allocation2] sm:$0xff]
      %v301 = vld [vmem:[#allocation2 + $0x8] sm:$0xff]
      %vm302 = vcmp.ne.s32.totalorder %v298, 0
      %vm303 = vcmp.ne.s32.totalorder %v299, 0
      %v304 = vsel %vm302, %v300, 0.0
      %v305 = vsel %vm303, %v301, 0.0
      %306 = vst [vmem:[#allocation3] sm:$0xff] %v304
      %307 = vst [vmem:[#allocation3 + $0x8] sm:$0xff] %v305
      %v308 = vld [vmem:[#allocation2] sm:$0xff]
      %v309 = vld [vmem:[#allocation2 + $0x8] sm:$0xff]
      %v310 = vld [vmem:[#allocation2 + $0x10] sm:$0xff]
      %314 = vrot.lane.b32.xlu0 %v308, 127
      %v315 = vpop.permute.xlu0 %314
      %316 = vrot.lane.b32.xlu0 %v309, 127
      %v317 = vpop.permute.xlu0 %316
      %318 = vrot.lane.b32.xlu0 %v310, 127
      %v319 = vpop.permute.xlu0 %318
      %vm320 = vcmask 1039360
      %v321 = vsel %vm320, %v315, %v317
      %v322 = vsel %vm320, %v317, %v319
      %325 = vst [vmem:[#allocation3 + $0x10] sm:$0xff] %v321
      %326 = vst [vmem:[#allocation3 + $0x18] sm:$0xff] %v322
      %v327 = vld [vmem:[#allocation2] sm:$0xff]
      %v328 = vld [vmem:[#allocation2 + $0x8] sm:$0xff]
      %v329 = vld [vmem:[#allocation2 + $0x10] sm:$0xff]
      %vm330 = vcmp.ne.s32.totalorder %v298, 15
      %vm331 = vcmp.ne.s32.totalorder %v299, 15
      %335 = vrot.lane.b32.xlu0 %v327, 126
      %v336 = vpop.permute.xlu0 %335
      %337 = vrot.lane.b32.xlu0 %v328, 126
      %v338 = vpop.permute.xlu0 %337
      %339 = vrot.lane.b32.xlu0 %v329, 126
      %v340 = vpop.permute.xlu0 %339
      %vm341 = vcmask 1031168
      %v342 = vsel %vm341, %v336, %v338
      %v343 = vsel %vm341, %v338, %v340
      %v346 = vsel %vm330, %v342, 0.0
      %v347 = vsel %vm331, %v343, 0.0
      %348 = vst [vmem:[#allocation3 + $0x20] sm:$0xff] %v346
      %349 = vst [vmem:[#allocation3 + $0x28] sm:$0xff] %v347
      %v350 = vld [vmem:[#allocation2] sm:$0xff]
      %v351 = vld [vmem:[#allocation2 + $0x8] sm:$0xff]
      %v352 = vld [vmem:[#allocation2 + $0x10] sm:$0xff]
      %356 = vrot.lane.b32.xlu0 %v350, 112
      %v357 = vpop.permute.xlu0 %356
      %358 = vrot.lane.b32.xlu0 %v351, 112
      %v359 = vpop.permute.xlu0 %358
      %360 = vrot.lane.b32.xlu0 %v352, 112
      %v361 = vpop.permute.xlu0 %360
      %vm362 = vcmask 916480
      %v363 = vsel %vm362, %v357, %v359
      %v364 = vsel %vm362, %v359, %v361
      %v367 = vsel %vm302, %v363, 0.0
      %v368 = vsel %vm303, %v364, 0.0
      %369 = vst [vmem:[#allocation3 + $0x30] sm:$0xff] %v367
      %370 = vst [vmem:[#allocation3 + $0x38] sm:$0xff] %v368
      %v371 = vld [vmem:[#allocation2] sm:$0xff]
      %v372 = vld [vmem:[#allocation2 + $0x8] sm:$0xff]
      %v373 = vld [vmem:[#allocation2 + $0x10] sm:$0xff]
      %377 = vrot.lane.b32.xlu0 %v371, 111
      %v378 = vpop.permute.xlu0 %377
      %379 = vrot.lane.b32.xlu0 %v372, 111
      %v380 = vpop.permute.xlu0 %379
      %381 = vrot.lane.b32.xlu0 %v373, 111
      %v382 = vpop.permute.xlu0 %381
      %vm383 = vcmask 908288
      %v384 = vsel %vm383, %v378, %v380
      %v385 = vsel %vm383, %v380, %v382
      %388 = vst [vmem:[#allocation3 + $0x40] sm:$0xff] %v384
      %389 = vst [vmem:[#allocation3 + $0x48] sm:$0xff] %v385
      %v390 = vld [vmem:[#allocation2] sm:$0xff]
      %v391 = vld [vmem:[#allocation2 + $0x8] sm:$0xff]
      %v392 = vld [vmem:[#allocation2 + $0x10] sm:$0xff]
      %396 = vrot.lane.b32.xlu0 %v390, 110
      %v397 = vpop.permute.xlu0 %396
      %398 = vrot.lane.b32.xlu0 %v391, 110
      %v399 = vpop.permute.xlu0 %398
      %400 = vrot.lane.b32.xlu0 %v392, 110
      %v401 = vpop.permute.xlu0 %400
      %vm402 = vcmask 900096
      %v403 = vsel %vm402, %v397, %v399
      %v404 = vsel %vm402, %v399, %v401
      %v407 = vsel %vm330, %v403, 0.0
      %v408 = vsel %vm331, %v404, 0.0
      %409 = vst [vmem:[#allocation3 + $0x50] sm:$0xff] %v407
      %410 = vst [vmem:[#allocation3 + $0x58] sm:$0xff] %v408
      %v411 = vld [vmem:[#allocation2] sm:$0xff]
      %v412 = vld [vmem:[#allocation2 + $0x8] sm:$0xff]
      %v413 = vld [vmem:[#allocation2 + $0x10] sm:$0xff]
      %417 = vrot.lane.b32.xlu0 %v411, 96
      %v418 = vpop.permute.xlu0 %417
      %419 = vrot.lane.b32.xlu0 %v412, 96
      %v420 = vpop.permute.xlu0 %419
      %421 = vrot.lane.b32.xlu0 %v413, 96
      %v422 = vpop.permute.xlu0 %421
      %vm423 = vcmask 785408
      %v424 = vsel %vm423, %v418, %v420
      %v425 = vsel %vm423, %v420, %v422
      %v428 = vsel %vm302, %v424, 0.0
      %v429 = vsel %vm303, %v425, 0.0
      %430 = vst [vmem:[#allocation3 + $0x60] sm:$0xff] %v428
      %431 = vst [vmem:[#allocation3 + $0x68] sm:$0xff] %v429
      %v432 = vld [vmem:[#allocation2] sm:$0xff]
      %v433 = vld [vmem:[#allocation2 + $0x8] sm:$0xff]
      %v434 = vld [vmem:[#allocation2 + $0x10] sm:$0xff]
      %438 = vrot.lane.b32.xlu0 %v432, 95
      %v439 = vpop.permute.xlu0 %438
      %440 = vrot.lane.b32.xlu0 %v433, 95
      %v441 = vpop.permute.xlu0 %440
      %442 = vrot.lane.b32.xlu0 %v434, 95
      %v443 = vpop.permute.xlu0 %442
      %vm444 = vcmask 777216
      %v445 = vsel %vm444, %v439, %v441
      %v446 = vsel %vm444, %v441, %v443
      %449 = vst [vmem:[#allocation3 + $0x70] sm:$0xff] %v445
      %450 = vst [vmem:[#allocation3 + $0x78] sm:$0xff] %v446
      %v451 = vld [vmem:[#allocation2] sm:$0xff]
      %v452 = vld [vmem:[#allocation2 + $0x8] sm:$0xff]
      %v453 = vld [vmem:[#allocation2 + $0x10] sm:$0xff]
      %457 = vrot.lane.b32.xlu0 %v451, 94
      %v458 = vpop.permute.xlu0 %457
      %459 = vrot.lane.b32.xlu0 %v452, 94
      %v460 = vpop.permute.xlu0 %459
      %461 = vrot.lane.b32.xlu0 %v453, 94
      %v462 = vpop.permute.xlu0 %461
      %vm463 = vcmask 769024
      %v464 = vsel %vm463, %v458, %v460
      %v465 = vsel %vm463, %v460, %v462
      %v468 = vsel %vm330, %v464, 0.0
      %v469 = vsel %vm331, %v465, 0.0
      %470 = vst [vmem:[#allocation3 + $0x80] sm:$0xff] %v468
      %471 = vst [vmem:[#allocation3 + $0x88] sm:$0xff] %v469
      %v472 = vld [vmem:[%s1] sm:$0xf]
      %v473 = vld [vmem:[#allocation3] sm:$0xff]
      %v474 = vld [vmem:[#allocation3 + $0x8] sm:$0xff]
      %v475 = vld [vmem:[#allocation3 + $0x10] sm:$0xff]
      %v476 = vld [vmem:[#allocation3 + $0x18] sm:$0xff]
      %v477 = vld [vmem:[#allocation3 + $0x20] sm:$0xff]
      %v478 = vld [vmem:[#allocation3 + $0x28] sm:$0xff]
      %v479 = vld [vmem:[#allocation3 + $0x30] sm:$0xff]
      %v480 = vld [vmem:[#allocation3 + $0x38] sm:$0xff]
      %v481 = vld [vmem:[#allocation3 + $0x40] sm:$0xff]
      %v482 = vld [vmem:[#allocation3 + $0x48] sm:$0xff]
      %v483 = vld [vmem:[#allocation3 + $0x50] sm:$0xff]
      %v484 = vld [vmem:[#allocation3 + $0x58] sm:$0xff]
      %v485 = vld [vmem:[#allocation3 + $0x60] sm:$0xff]
      %v486 = vld [vmem:[#allocation3 + $0x68] sm:$0xff]
      %v487 = vld [vmem:[#allocation3 + $0x70] sm:$0xff]
      %v488 = vld [vmem:[#allocation3 + $0x78] sm:$0xff]
      %v489 = vld [vmem:[#allocation3 + $0x80] sm:$0xff]
      %v490 = vld [vmem:[#allocation3 + $0x88] sm:$0xff]
      %vm491 = vcmask 588800
      %v493 = vsel %vm491, %v472, 0
      %495 = vmatprep.subr.mxu0 %v474
      %496 = vmatpush1.msra.mxu0 %v473
      %497 = vmatprep.subr.mxu0 %v476
      %498 = vmatpush1.msra.mxu0 %v475
      %499 = vmatprep.subr.mxu0 %v478
      %500 = vmatpush1.msra.mxu0 %v477
      %501 = vmatprep.subr.mxu0 %v480
      %502 = vmatpush1.msra.mxu0 %v479
      %503 = vmatprep.subr.mxu0 %v482
      %504 = vmatpush1.msra.mxu0 %v481
      %505 = vmatprep.subr.mxu0 %v484
      %506 = vmatpush1.msra.mxu0 %v483
      %507 = vmatprep.subr.mxu0 %v486
      %508 = vmatpush1.msra.mxu0 %v485
      %509 = vmatprep.subr.mxu0 %v488
      %510 = vmatpush1.msra.mxu0 %v487
      %511 = vmatprep.subr.mxu0 %v490
      %512 = vmatpush1.msra.mxu0 %v489
      %513 = vmatprep.subr.mxu0 0.0
      %514 = vmatpush1.msra.mxu0 0.0
      %515 = vmatprep.subr.mxu0 0.0
      %516 = vmatpush1.msra.mxu0 0.0
      %517 = vmatprep.subr.mxu0 0.0
      %518 = vmatpush1.msra.mxu0 0.0
      %519 = vmatprep.subr.mxu0 0.0
      %520 = vmatpush1.msra.mxu0 0.0
      %521 = vmatprep.subr.mxu0 0.0
      %522 = vmatpush1.msra.mxu0 0.0
      %523 = vmatprep.subr.mxu0 0.0
      %524 = vmatpush1.msra.mxu0 0.0
      %525 = vmatprep.subr.mxu0 0.0
      %526 = vmatpush1.msra.mxu0 0.0
      %527 = vmatprep.subr.mxu0 0.0
      %528 = vmatpush1.msra.mxu0 0.0
      %529 = vmatprep.subr.mxu0 0.0
      %530 = vmatpush1.msra.mxu0 0.0
      %531 = vmatprep.subr.mxu0 0.0
      %532 = vmatpush1.msra.mxu0 0.0
      %533 = vmatprep.subr.mxu0 0.0
      %534 = vmatpush1.msra.mxu0 0.0
      %535 = vmatprep.subr.mxu0 0.0
      %536 = vmatpush1.msra.mxu0 0.0
      %537 = vmatprep.subr.mxu0 0.0
      %538 = vmatpush1.msra.mxu0 0.0
      %539 = vmatprep.subr.mxu0 0.0
      %540 = vmatpush1.msra.mxu0 0.0
      %541 = vmatprep.subr.mxu0 0.0
      %542 = vmatpush1.msra.mxu0 0.0
      %543 = vmatprep.subr.mxu0 0.0
      %544 = vmatpush1.msra.mxu0 0.0
      %545 = vmatprep.subr.mxu0 0.0
      %546 = vmatpush1.msra.mxu0 0.0
      %547 = vmatprep.subr.mxu0 0.0
      %548 = vmatpush1.msra.mxu0 0.0
      %549 = vmatprep.subr.mxu0 0.0
      %550 = vmatpush1.msra.mxu0 0.0
      %551 = vmatprep.subr.mxu0 0.0
      %552 = vmatpush1.msra.mxu0 0.0
      %553 = vmatprep.subr.mxu0 0.0
      %554 = vmatpush1.msra.mxu0 0.0
      %555 = vmatprep.subr.mxu0 0.0
      %556 = vmatpush1.msra.mxu0 0.0
      %557 = vmatprep.subr.mxu0 0.0
      %558 = vmatpush1.msra.mxu0 0.0
      %559 = vmatprep.mubr.f32.mxu0 0.0
      %560 = vmatmul.mubr.f32.gmra.mrb[0].mxu0 %v493
      %v561 = vpop.f32.mrb[0].mxu0
      %v562 = vadd.f32 0.0, %v561
      %v563 = vpop.f32.mrb[0].mxu0
      %v564 = vadd.f32 0.0, %v563
      %565 = vdwg.mxu0
      %vm566 = vcmp.ge.f32.partialorder %v562, 0.0
      %vm567 = vcmp.ge.f32.partialorder %v564, 0.0
      %v568 = vmul.f32 %v562, 0.01
      %v569 = vmul.f32 %v564, 0.01
      %v570 = vsel %vm566, %v562, %v568
      %v571 = vsel %vm567, %v564, %v569
      %572 = vst [vmem:[#allocation4] sm:$0xff] 0.0
      %vm573 = vcmask 273408
      %574 = vst.msk [vmem:[#allocation4 + $0x8] sm:$0xf] %vm573, 0.0
      %v577 = vcombine.low %v570, %v571
      %578 = vrot.lane.b32.xlu0 %v577, 17
      %v579 = vpop.permute.xlu0 %578
      %v580 = vrot.slane %v579, 4
      %v581 = vsel %vm264, %v580, %v579
      %vm584 = vcmask 1043592
      %vm585 = vcmask 1047556
      %vm586 = vmor %vm585, %vm584
      %587 = vst.msk [vmem:[#allocation4] sm:$0xff] %vm586, %v581
      %vm588 = vcmask 134144
      %589 = vst.msk [vmem:[#allocation4 + $0x8] sm:$0xf] %vm588, %v580
      %v590 = vld [vmem:[#allocation4] sm:$0xff]
      %v592 = vcombine.high %v590, %v590
      %v594 = vsel %vm302, %v590, 0.0
      %v595 = vsel %vm303, %v592, 0.0
      %596 = vst [vmem:[#allocation5] sm:$0xf] %v594
      %597 = vst [vmem:[#allocation5 + $0x8] sm:$0xf] %v595
      %v598 = vld [vmem:[#allocation4] sm:$0xff]
      %v599 = vld [vmem:[#allocation4 + $0x8] sm:$0xf]
      %v602 = vcombine.low %v598, %v598
      %v603 = vcombine.low %v599, %v599
      %604 = vrot.lane.b32.xlu0 %v602, 127
      %v605 = vpop.permute.xlu0 %604
      %606 = vrot.lane.b32.xlu0 %v598, 127
      %v607 = vpop.permute.xlu0 %606
      %608 = vrot.lane.b32.xlu0 %v603, 127
      %v609 = vpop.permute.xlu0 %608
      %v610 = vsel %vm320, %v605, %v607
      %v611 = vsel %vm320, %v607, %v609
      %614 = vst [vmem:[#allocation5] sm:$0xf0] %v610
      %615 = vst [vmem:[#allocation5 + $0x8] sm:$0xf0] %v611
      %v616 = vld [vmem:[#allocation4] sm:$0xff]
      %v617 = vld [vmem:[#allocation4 + $0x8] sm:$0xf]
      %v620 = vcombine.high %v616, %v616
      %621 = vrot.lane.b32.xlu0 %v616, 126
      %v622 = vpop.permute.xlu0 %621
      %623 = vrot.lane.b32.xlu0 %v620, 126
      %v624 = vpop.permute.xlu0 %623
      %625 = vrot.lane.b32.xlu0 %v617, 126
      %v626 = vpop.permute.xlu0 %625
      %v627 = vsel %vm341, %v622, %v624
      %v628 = vsel %vm341, %v624, %v626
      %v631 = vsel %vm330, %v627, 0.0
      %v632 = vsel %vm331, %v628, 0.0
      %633 = vst [vmem:[#allocation5 + $0x10] sm:$0xf] %v631
      %634 = vst [vmem:[#allocation5 + $0x18] sm:$0xf] %v632
      %v635 = vld [vmem:[#allocation4] sm:$0xff]
      %v636 = vld [vmem:[#allocation4 + $0x8] sm:$0xf]
      %v639 = vcombine.high %v635, %v635
      %640 = vrot.lane.b32.xlu0 %v635, 112
      %v641 = vpop.permute.xlu0 %640
      %642 = vrot.lane.b32.xlu0 %v639, 112
      %v643 = vpop.permute.xlu0 %642
      %644 = vrot.lane.b32.xlu0 %v636, 112
      %v645 = vpop.permute.xlu0 %644
      %v646 = vsel %vm362, %v641, %v643
      %v647 = vsel %vm362, %v643, %v645
      %v650 = vsel %vm302, %v646, 0.0
      %v651 = vsel %vm303, %v647, 0.0
      %v654 = vrot.slane %v650, 4
      %v655 = vrot.slane %v651, 4
      %658 = vst [vmem:[#allocation5 + $0x10] sm:$0xf0] %v654
      %659 = vst [vmem:[#allocation5 + $0x18] sm:$0xf0] %v655
      %v660 = vld [vmem:[#allocation4] sm:$0xff]
      %v661 = vld [vmem:[#allocation4 + $0x8] sm:$0xf]
      %v664 = vcombine.high %v660, %v660
      %665 = vrot.lane.b32.xlu0 %v660, 111
      %v666 = vpop.permute.xlu0 %665
      %667 = vrot.lane.b32.xlu0 %v664, 111
      %v668 = vpop.permute.xlu0 %667
      %669 = vrot.lane.b32.xlu0 %v661, 111
      %v670 = vpop.permute.xlu0 %669
      %v671 = vsel %vm383, %v666, %v668
      %v672 = vsel %vm383, %v668, %v670
      %675 = vst [vmem:[#allocation5 + $0x20] sm:$0xf] %v671
      %676 = vst [vmem:[#allocation5 + $0x28] sm:$0xf] %v672
      %v677 = vld [vmem:[#allocation4] sm:$0xff]
      %v678 = vld [vmem:[#allocation4 + $0x8] sm:$0xf]
      %v681 = vcombine.high %v677, %v677
      %682 = vrot.lane.b32.xlu0 %v677, 110
      %v683 = vpop.permute.xlu0 %682
      %684 = vrot.lane.b32.xlu0 %v681, 110
      %v685 = vpop.permute.xlu0 %684
      %686 = vrot.lane.b32.xlu0 %v678, 110
      %v687 = vpop.permute.xlu0 %686
      %v688 = vsel %vm402, %v683, %v685
      %v689 = vsel %vm402, %v685, %v687
      %v692 = vsel %vm330, %v688, 0.0
      %v693 = vsel %vm331, %v689, 0.0
      %v696 = vrot.slane %v692, 4
      %v697 = vrot.slane %v693, 4
      %700 = vst [vmem:[#allocation5 + $0x20] sm:$0xf0] %v696
      %701 = vst [vmem:[#allocation5 + $0x28] sm:$0xf0] %v697
      %v702 = vld [vmem:[#allocation4] sm:$0xff]
      %v703 = vld [vmem:[#allocation4 + $0x8] sm:$0xf]
      %v706 = vcombine.high %v702, %v702
      %707 = vrot.lane.b32.xlu0 %v702, 96
      %v708 = vpop.permute.xlu0 %707
      %709 = vrot.lane.b32.xlu0 %v706, 96
      %v710 = vpop.permute.xlu0 %709
      %711 = vrot.lane.b32.xlu0 %v703, 96
      %v712 = vpop.permute.xlu0 %711
      %v713 = vsel %vm423, %v708, %v710
      %v714 = vsel %vm423, %v710, %v712
      %v717 = vsel %vm302, %v713, 0.0
      %v718 = vsel %vm303, %v714, 0.0
      %719 = vst [vmem:[#allocation5 + $0x30] sm:$0xf] %v717
      %720 = vst [vmem:[#allocation5 + $0x38] sm:$0xf] %v718
      %v721 = vld [vmem:[#allocation4] sm:$0xff]
      %v722 = vld [vmem:[#allocation4 + $0x8] sm:$0xf]
      %v725 = vcombine.low %v721, %v721
      %v726 = vcombine.low %v722, %v722
      %727 = vrot.lane.b32.xlu0 %v725, 95
      %v728 = vpop.permute.xlu0 %727
      %729 = vrot.lane.b32.xlu0 %v721, 95
      %v730 = vpop.permute.xlu0 %729
      %731 = vrot.lane.b32.xlu0 %v726, 95
      %v732 = vpop.permute.xlu0 %731
      %v733 = vsel %vm444, %v728, %v730
      %v734 = vsel %vm444, %v730, %v732
      %737 = vst [vmem:[#allocation5 + $0x30] sm:$0xf0] %v733
      %738 = vst [vmem:[#allocation5 + $0x38] sm:$0xf0] %v734
      %v739 = vld [vmem:[#allocation4] sm:$0xff]
      %v740 = vld [vmem:[#allocation4 + $0x8] sm:$0xf]
      %v743 = vcombine.high %v739, %v739
      %744 = vrot.lane.b32.xlu0 %v739, 94
      %v745 = vpop.permute.xlu0 %744
      %746 = vrot.lane.b32.xlu0 %v743, 94
      %v747 = vpop.permute.xlu0 %746
      %748 = vrot.lane.b32.xlu0 %v740, 94
      %v749 = vpop.permute.xlu0 %748
      %v750 = vsel %vm463, %v745, %v747
      %v751 = vsel %vm463, %v747, %v749
      %v754 = vsel %vm330, %v750, 0.0
      %v755 = vsel %vm331, %v751, 0.0
      %756 = vst [vmem:[#allocation5 + $0x40] sm:$0xf] %v754
      %757 = vst [vmem:[#allocation5 + $0x48] sm:$0xf] %v755
      %v758 = vld [vmem:[%s2] sm:$0xf]
      %v759 = vld [vmem:[#allocation5] sm:$0xff]
      %v760 = vld [vmem:[#allocation5 + $0x8] sm:$0xff]
      %v761 = vld [vmem:[#allocation5 + $0x10] sm:$0xff]
      %v762 = vld [vmem:[#allocation5 + $0x18] sm:$0xff]
      %v763 = vld [vmem:[#allocation5 + $0x20] sm:$0xff]
      %v764 = vld [vmem:[#allocation5 + $0x28] sm:$0xff]
      %v765 = vld [vmem:[#allocation5 + $0x30] sm:$0xff]
      %v766 = vld [vmem:[#allocation5 + $0x38] sm:$0xff]
      %v767 = vld [vmem:[#allocation5 + $0x40] sm:$0xf]
      %v768 = vld [vmem:[#allocation5 + $0x48] sm:$0xf]
      %vm769 = vcmask 293888
      %v771 = vsel %vm769, %v758, 0
      %vm773 = vcmask 1043456
      %v775 = vsel %vm773, %v767, 0
      %v778 = vsel %vm773, %v768, 0
      %780 = vmatprep.subr.mxu0 %v760
      %781 = vmatpush1.msra.mxu0 %v759
      %782 = vmatprep.subr.mxu0 %v762
      %783 = vmatpush1.msra.mxu0 %v761
      %784 = vmatprep.subr.mxu0 %v764
      %785 = vmatpush1.msra.mxu0 %v763
      %786 = vmatprep.subr.mxu0 %v766
      %787 = vmatpush1.msra.mxu0 %v765
      %788 = vmatprep.subr.mxu0 %v778
      %789 = vmatpush1.msra.mxu0 %v775
      %790 = vmatprep.subr.mxu0 0.0
      %791 = vmatpush1.msra.mxu0 0.0
      %792 = vmatprep.subr.mxu0 0.0
      %793 = vmatpush1.msra.mxu0 0.0
      %794 = vmatprep.subr.mxu0 0.0
      %795 = vmatpush1.msra.mxu0 0.0
      %796 = vmatprep.subr.mxu0 0.0
      %797 = vmatpush1.msra.mxu0 0.0
      %798 = vmatprep.subr.mxu0 0.0
      %799 = vmatpush1.msra.mxu0 0.0
      %800 = vmatprep.subr.mxu0 0.0
      %801 = vmatpush1.msra.mxu0 0.0
      %802 = vmatprep.subr.mxu0 0.0
      %803 = vmatpush1.msra.mxu0 0.0
      %804 = vmatprep.subr.mxu0 0.0
      %805 = vmatpush1.msra.mxu0 0.0
      %806 = vmatprep.subr.mxu0 0.0
      %807 = vmatpush1.msra.mxu0 0.0
      %808 = vmatprep.subr.mxu0 0.0
      %809 = vmatpush1.msra.mxu0 0.0
      %810 = vmatprep.subr.mxu0 0.0
      %811 = vmatpush1.msra.mxu0 0.0
      %812 = vmatprep.subr.mxu0 0.0
      %813 = vmatpush1.msra.mxu0 0.0
      %814 = vmatprep.subr.mxu0 0.0
      %815 = vmatpush1.msra.mxu0 0.0
      %816 = vmatprep.subr.mxu0 0.0
      %817 = vmatpush1.msra.mxu0 0.0
      %818 = vmatprep.subr.mxu0 0.0
      %819 = vmatpush1.msra.mxu0 0.0
      %820 = vmatprep.subr.mxu0 0.0
      %821 = vmatpush1.msra.mxu0 0.0
      %822 = vmatprep.subr.mxu0 0.0
      %823 = vmatpush1.msra.mxu0 0.0
      %824 = vmatprep.subr.mxu0 0.0
      %825 = vmatpush1.msra.mxu0 0.0
      %826 = vmatprep.subr.mxu0 0.0
      %827 = vmatpush1.msra.mxu0 0.0
      %828 = vmatprep.subr.mxu0 0.0
      %829 = vmatpush1.msra.mxu0 0.0
      %830 = vmatprep.subr.mxu0 0.0
      %831 = vmatpush1.msra.mxu0 0.0
      %832 = vmatprep.subr.mxu0 0.0
      %833 = vmatpush1.msra.mxu0 0.0
      %834 = vmatprep.subr.mxu0 0.0
      %835 = vmatpush1.msra.mxu0 0.0
      %836 = vmatprep.subr.mxu0 0.0
      %837 = vmatpush1.msra.mxu0 0.0
      %838 = vmatprep.subr.mxu0 0.0
      %839 = vmatpush1.msra.mxu0 0.0
      %840 = vmatprep.subr.mxu0 0.0
      %841 = vmatpush1.msra.mxu0 0.0
      %842 = vmatprep.subr.mxu0 0.0
      %843 = vmatpush1.msra.mxu0 0.0
      %844 = vmatprep.mubr.f32.mxu0 0.0
      %845 = vmatmul.mubr.f32.gmra.mrb[0].mxu0 %v771
      %v846 = vpop.f32.mrb[0].mxu0
      %v847 = vadd.f32 0.0, %v846
      %v848 = vpop.f32.mrb[0].mxu0
      %v849 = vadd.f32 0.0, %v848
      %850 = vdwg.mxu0
      %vm851 = vcmp.ge.f32.partialorder %v847, 0.0
      %vm852 = vcmp.ge.f32.partialorder %v849, 0.0
      %v853 = vmul.f32 %v847, 0.01
      %v854 = vmul.f32 %v849, 0.01
      %v855 = vsel %vm851, %v847, %v853
      %v856 = vsel %vm852, %v849, %v854
      %v857 = vld [vmem:[%s3] sm:$0xf]
      %vm858 = vcmask 31744
      %v860 = vsel %vm858, %v857, 0
      %v863 = vsel %vm773, %v855, 0
      %v866 = vsel %vm773, %v856, 0
      %868 = vmatprep.subr.mxu0 %v866
      %869 = vmatpush1.msra.mxu0 %v863
      %870 = vmatprep.subr.mxu0 0.0
      %871 = vmatpush1.msra.mxu0 0.0
      %872 = vmatprep.subr.mxu0 0.0
      %873 = vmatpush1.msra.mxu0 0.0
      %874 = vmatprep.subr.mxu0 0.0
      %875 = vmatpush1.msra.mxu0 0.0
      %876 = vmatprep.subr.mxu0 0.0
      %877 = vmatpush1.msra.mxu0 0.0
      %878 = vmatprep.subr.mxu0 0.0
      %879 = vmatpush1.msra.mxu0 0.0
      %880 = vmatprep.subr.mxu0 0.0
      %881 = vmatpush1.msra.mxu0 0.0
      %882 = vmatprep.subr.mxu0 0.0
      %883 = vmatpush1.msra.mxu0 0.0
      %884 = vmatprep.subr.mxu0 0.0
      %885 = vmatpush1.msra.mxu0 0.0
      %886 = vmatprep.subr.mxu0 0.0
      %887 = vmatpush1.msra.mxu0 0.0
      %888 = vmatprep.subr.mxu0 0.0
      %889 = vmatpush1.msra.mxu0 0.0
      %890 = vmatprep.subr.mxu0 0.0
      %891 = vmatpush1.msra.mxu0 0.0
      %892 = vmatprep.subr.mxu0 0.0
      %893 = vmatpush1.msra.mxu0 0.0
      %894 = vmatprep.subr.mxu0 0.0
      %895 = vmatpush1.msra.mxu0 0.0
      %896 = vmatprep.subr.mxu0 0.0
      %897 = vmatpush1.msra.mxu0 0.0
      %898 = vmatprep.subr.mxu0 0.0
      %899 = vmatpush1.msra.mxu0 0.0
      %900 = vmatprep.subr.mxu0 0.0
      %901 = vmatpush1.msra.mxu0 0.0
      %902 = vmatprep.subr.mxu0 0.0
      %903 = vmatpush1.msra.mxu0 0.0
      %904 = vmatprep.subr.mxu0 0.0
      %905 = vmatpush1.msra.mxu0 0.0
      %906 = vmatprep.subr.mxu0 0.0
      %907 = vmatpush1.msra.mxu0 0.0
      %908 = vmatprep.subr.mxu0 0.0
      %909 = vmatpush1.msra.mxu0 0.0
      %910 = vmatprep.subr.mxu0 0.0
      %911 = vmatpush1.msra.mxu0 0.0
      %912 = vmatprep.subr.mxu0 0.0
      %913 = vmatpush1.msra.mxu0 0.0
      %914 = vmatprep.subr.mxu0 0.0
      %915 = vmatpush1.msra.mxu0 0.0
      %916 = vmatprep.subr.mxu0 0.0
      %917 = vmatpush1.msra.mxu0 0.0
      %918 = vmatprep.subr.mxu0 0.0
      %919 = vmatpush1.msra.mxu0 0.0
      %920 = vmatprep.subr.mxu0 0.0
      %921 = vmatpush1.msra.mxu0 0.0
      %922 = vmatprep.subr.mxu0 0.0
      %923 = vmatpush1.msra.mxu0 0.0
      %924 = vmatprep.subr.mxu0 0.0
      %925 = vmatpush1.msra.mxu0 0.0
      %926 = vmatprep.subr.mxu0 0.0
      %927 = vmatpush1.msra.mxu0 0.0
      %928 = vmatprep.subr.mxu0 0.0
      %929 = vmatpush1.msra.mxu0 0.0
      %930 = vmatprep.subr.mxu0 0.0
      %931 = vmatpush1.msra.mxu0 0.0
      %932 = vmatprep.mubr.f32.mxu0 0.0
      %933 = vmatmul.mubr.f32.gmra.mrb[0].mxu0 %v860
      %v934 = vpop.f32.mrb[0].mxu0
      %v935 = vadd.f32 0.0, %v934
      %v936 = vpop.f32.mrb[0].mxu0
      %v937 = vadd.f32 0.0, %v936
      %938 = vdwg.mxu0
      %vm939 = vcmp.ge.f32.partialorder %v935, 0.0
      %vm940 = vcmp.ge.f32.partialorder %v937, 0.0
      %v941 = vmul.f32 %v935, 0.01
      %v942 = vmul.f32 %v937, 0.01
      %v943 = vsel %vm939, %v935, %v941
      %v944 = vsel %vm940, %v937, %v942
      %v945 = vld [vmem:[%s4] sm:$0xff]
      %v946 = vld [vmem:[%s4 + $0x8] sm:$0xff]
      %v947 = vld [vmem:[%s5] sm:$0xff]
      %v948 = vld [vmem:[%s5 + $0x8] sm:$0xff]
      %950 = vset.pattern.permute.xlu0 0
      %951 = vperm.xlu0 %950, %v947
      %v952 = vpop.permute.xlu0 %951
      %955 = vset.pattern.permute.xlu0 0
      %956 = vperm.xlu0 %955, %v948
      %v957 = vpop.permute.xlu0 %956
      %v960 = vsel %vm858, %v945, 0
      %v963 = vsel %vm858, %v946, 0
      %v966 = vsel %vm773, %v943, 0
      %v969 = vsel %vm773, %v944, 0
      %971 = vmatprep.subr.mxu0 %v969
      %972 = vmatpush1.msra.mxu0 %v966
      %973 = vmatprep.subr.mxu0 0.0
      %974 = vmatpush1.msra.mxu0 0.0
      %975 = vmatprep.subr.mxu0 0.0
      %976 = vmatpush1.msra.mxu0 0.0
      %977 = vmatprep.subr.mxu0 0.0
      %978 = vmatpush1.msra.mxu0 0.0
      %979 = vmatprep.subr.mxu0 0.0
      %980 = vmatpush1.msra.mxu0 0.0
      %981 = vmatprep.subr.mxu0 0.0
      %982 = vmatpush1.msra.mxu0 0.0
      %983 = vmatprep.subr.mxu0 0.0
      %984 = vmatpush1.msra.mxu0 0.0
      %985 = vmatprep.subr.mxu0 0.0
      %986 = vmatpush1.msra.mxu0 0.0
      %987 = vmatprep.subr.mxu0 0.0
      %988 = vmatpush1.msra.mxu0 0.0
      %989 = vmatprep.subr.mxu0 0.0
      %990 = vmatpush1.msra.mxu0 0.0
      %991 = vmatprep.subr.mxu0 0.0
      %992 = vmatpush1.msra.mxu0 0.0
      %993 = vmatprep.subr.mxu0 0.0
      %994 = vmatpush1.msra.mxu0 0.0
      %995 = vmatprep.subr.mxu0 0.0
      %996 = vmatpush1.msra.mxu0 0.0
      %997 = vmatprep.subr.mxu0 0.0
      %998 = vmatpush1.msra.mxu0 0.0
      %999 = vmatprep.subr.mxu0 0.0
      %1000 = vmatpush1.msra.mxu0 0.0
      %1001 = vmatprep.subr.mxu0 0.0
      %1002 = vmatpush1.msra.mxu0 0.0
      %1003 = vmatprep.subr.mxu0 0.0
      %1004 = vmatpush1.msra.mxu0 0.0
      %1005 = vmatprep.subr.mxu0 0.0
      %1006 = vmatpush1.msra.mxu0 0.0
      %1007 = vmatprep.subr.mxu0 0.0
      %1008 = vmatpush1.msra.mxu0 0.0
      %1009 = vmatprep.subr.mxu0 0.0
      %1010 = vmatpush1.msra.mxu0 0.0
      %1011 = vmatprep.subr.mxu0 0.0
      %1012 = vmatpush1.msra.mxu0 0.0
      %1013 = vmatprep.subr.mxu0 0.0
      %1014 = vmatpush1.msra.mxu0 0.0
      %1015 = vmatprep.subr.mxu0 0.0
      %1016 = vmatpush1.msra.mxu0 0.0
      %1017 = vmatprep.subr.mxu0 0.0
      %1018 = vmatpush1.msra.mxu0 0.0
      %1019 = vmatprep.subr.mxu0 0.0
      %1020 = vmatpush1.msra.mxu0 0.0
      %1021 = vmatprep.subr.mxu0 0.0
      %1022 = vmatpush1.msra.mxu0 0.0
      %1023 = vmatprep.subr.mxu0 0.0
      %1024 = vmatpush1.msra.mxu0 0.0
      %1025 = vmatprep.subr.mxu0 0.0
      %1026 = vmatpush1.msra.mxu0 0.0
      %1027 = vmatprep.subr.mxu0 0.0
      %1028 = vmatpush1.msra.mxu0 0.0
      %1029 = vmatprep.subr.mxu0 0.0
      %1030 = vmatpush1.msra.mxu0 0.0
      %1031 = vmatprep.subr.mxu0 0.0
      %1032 = vmatpush1.msra.mxu0 0.0
      %1033 = vmatprep.subr.mxu0 0.0
      %1034 = vmatpush1.msra.mxu0 0.0
      %1035 = vmatprep.mubr.f32.mxu0 0.0
      %1036 = vmatmul.mubr.f32.gmra.mrb[0].mxu0 %v960
      %v1037 = vpop.f32.mrb[0].mxu0
      %v1038 = vadd.f32 %v952, %v1037
      %v1039 = vpop.f32.mrb[0].mxu0
      %v1040 = vadd.f32 %v952, %v1039
      %1041 = vmatprep.mubr.f32.mxu0 0.0
      %1042 = vmatmul.mubr.f32.gmra.mrb[0].mxu0 %v963
      %v1043 = vpop.f32.mrb[0].mxu0
      %v1044 = vadd.f32 %v957, %v1043
      %v1045 = vpop.f32.mrb[0].mxu0
      %v1046 = vadd.f32 %v957, %v1045
      %1047 = vdwg.mxu0
      %vm1048 = vcmp.ge.f32.partialorder %v1038, 0.0
      %vm1049 = vcmp.ge.f32.partialorder %v1040, 0.0
      %vm1050 = vcmp.ge.f32.partialorder %v1044, 0.0
      %vm1051 = vcmp.ge.f32.partialorder %v1046, 0.0
      %v1052 = vmul.f32 %v1038, 0.01
      %v1053 = vmul.f32 %v1040, 0.01
      %v1054 = vmul.f32 %v1044, 0.01
      %v1055 = vmul.f32 %v1046, 0.01
      %v1056 = vsel %vm1048, %v1038, %v1052
      %v1057 = vsel %vm1049, %v1040, %v1053
      %v1058 = vsel %vm1050, %v1044, %v1054
      %v1059 = vsel %vm1051, %v1046, %v1055
      %1060 = vst [vmem:[%s251] sm:$0xff] %v1056
      %1061 = vst [vmem:[%s251 + $0x8] sm:$0xff] %v1057
      %1062 = vst [vmem:[%s251 + $0x10] sm:$0xff] %v1058
      %1063 = vst [vmem:[%s251 + $0x18] sm:$0xff] %v1059
      %p1064 = scmp.lt.s32.totalorder %s17, 1
      %s1065 = scalar_select %p1064, %s17, 1
      %s1066 = smul.addr %s1065, 4
      %s1067 = smul.addr %s1066, 8
      %s1068 = scalar_lea.vmem %s6, %s1067
      // Predicated region
      $region45: #{feature_concat_forward.2} parent=43 // pred_check
        %p1069 = pneg %p166
      $region46: #{feature_concat_forward.2} parent=43 // pred_check_branch
        %1071 = sbr.rel (%p1069) target = $region48
      $region47: #{feature_concat_forward.2} parent=43 // pred_region
        _
      $region48: #{feature_concat_forward.2} parent=43 // pred_fallthru
        _
    $region44: #{feature_concat_forward.2} parent=5 // pred_fallthru
      _
    %p1072 = scmp.le.s32.totalorder 2, %s12
    // Predicated region
    $region49: #{feature_concat_forward.2} parent=5 // pred_check
      %p1073 = pneg %p1072
    $region50: #{feature_concat_forward.2} parent=5 // pred_check_branch
      %1075 = sbr.rel (%p1073) target = $region52
    $region51: #{feature_concat_forward.2} parent=5 // pred_region
      %s1076 = ssub.s32 %s12, 2
      // Predicated region
      $region53: #{feature_concat_forward.2} parent=51 // pred_check
        %p1077 = pneg %p172
      $region54: #{feature_concat_forward.2} parent=51 // pred_check_branch
        %1079 = sbr.rel (%p1077) target = $region56
      $region55: #{feature_concat_forward.2} parent=51 // pred_region
        %p1080 = scmp.lt.s32.totalorder %s18, 1
        %s1081 = scalar_select %p1080, %s18, 1
        %s1082 = smul.addr %s1081, 4
        %s1083 = smul.addr %s1082, 8
        %s1084 = scalar_lea.vmem %s6, %s1083
      $region56: #{feature_concat_forward.2} parent=51 // pred_fallthru
        _
    $region52: #{feature_concat_forward.2} parent=5 // pred_fallthru
      _
  $region6: #{feature_concat_forward.2} parent=0 // loop_footer
    %s16 = sadd.s32 1, %s12
  $region7: #{feature_concat_forward.2} parent=0 // loop_footer_branch
    %11 = sbr.rel target = $region3
  $region8: #{feature_concat_forward.2} parent=0 // loop_exit
    _

// kernel: feature_concat_forward.3
$region0: #{feature_concat_forward.3}
  #allocation0 [shape = 'u32[]', space=smem, size = 0x4, offset = 0x4, fixed_abs, tag = 'smem constant byte address 0x4 - core index']
  #allocation1 [shape = 'u32[144,128]{1,0:T(1,128)}', space=vmem, size = 0x12000, scoped, tag = 'internal scratch']
  %s0 = inlined_call_operand.vmem [shape: f32[2,16,16,16], index: 0, kind: input, shape index: {}]
  %s1 = inlined_call_operand.vmem [shape: f32[2,16,16], index: 1, kind: input, shape index: {}]
  %s2 = inlined_call_operand.vmem [shape: f32[2,16,16], index: 2, kind: input, shape index: {}]
  %s3 = inlined_call_operand.hbm [shape: f32[2,4,16,16], index: 3, kind: output, shape index: {}]
  %s4 = sld [smem:[#allocation0]]
  $region45: #{feature_concat_forward.3} parent=0
    _
  %s6 = ssub.s32 1, %s4
  %s7 = scalar_select 0, %s6, %s4
  $region1: #{feature_concat_forward.3} parent=0
    #allocation2 [shape = 'u8[65536]{0}', space=vmem, size = 0x10000, scoped, tag = 'output window, operand 0']
    #allocation3 [shape = 's32[2]{0}', space=sflag, size = 0x8, scoped, tag = 'scoped memory for feature_concat_forward.3']
    %8 = vsyncpa [#allocation3], 0
    %s9 = scalar_lea.sflag [#allocation3], 1
    %10 = vsyncpa %s9, 0
    loop: start=0, step=1, limit=4
    $region2: #{feature_concat_forward.3} parent=1 // loop_pre_header
      _
    $region3: #{feature_concat_forward.3} parent=1 // loop_header
      %s12 = sphi 0, %s16
      %p13 = scmp.ge.s32.totalorder %s12, 4
      %s22 = sphi 0, %s24
      %s25 = sphi 0, %s22
      %s26 = sphi 0, %s25
      %s42 = sphi 0, %s26
      %s46 = sphi 0, %s46
      %s48 = sphi 0, %s46
      %s49 = sphi 0, %s48
      %s63 = sphi 0, %s49
      %s67 = sphi 0, %s67
      %s69 = sphi 0, %s67
      %s70 = sphi 0, %s69
      %s84 = sphi 0, %s70
      %s90 = sphi 0, %s92
      %s93 = sphi 0, %s90
      %s94 = sphi 0, %s93
      %s110 = sphi 0, %s94
    $region4: #{feature_concat_forward.3} parent=1 // loop_header_branch
      %15 = sbr.rel (%p13) target = $region8
    $region5: #{feature_concat_forward.3} parent=1 // loop_body
      %s17 = ssub.s32 %s12, 1
      %s18 = ssub.s32 %s12, 2
      %s19 = sadd.s32 %s12, 1
      %s20 = ssub.s32 %s12, %s19
      %p21 = scmp.eq.s32.totalorder %s20, 0
      %s23 = sadd.s32 %s22, 1
      %s24 = scalar_select %p21, %s22, %s23
      %p27 = pneg %p21
      %p28 = scmp.eq.s32.totalorder %s12, 1
      %p29 = por %p27, %p28
      %p30 = scmp.ne.s32.totalorder %s22, %s25
      %p31 = scmp.eq.s32.totalorder %s12, 0
      %p32 = por %p30, %p31
      %p33 = scmp.ne.s32.totalorder %s22, %s25
      %p34 = scmp.eq.s32.totalorder %s17, 1
      %p35 = por %p33, %p34
      %p36 = scmp.ne.s32.totalorder %s25, %s26
      %p37 = scmp.eq.s32.totalorder %s17, 0
      %p38 = por %p36, %p37
      %p39 = scmp.ne.s32.totalorder %s25, %s26
      %p40 = scmp.eq.s32.totalorder %s18, 1
      %p41 = por %p39, %p40
      %p43 = scmp.ne.s32.totalorder %s26, %s42
      %p44 = scmp.eq.s32.totalorder %s18, 0
      %p45 = por %p43, %p44
      %s47 = sadd.s32 %s46, 1
      %p50 = scmp.eq.s32.totalorder %s12, 1
      %p51 = scmp.ne.s32.totalorder %s46, %s48
      %p52 = scmp.eq.s32.totalorder %s12, 0
      %p53 = por %p51, %p52
      %p54 = scmp.ne.s32.totalorder %s46, %s48
      %p55 = scmp.eq.s32.totalorder %s17, 1
      %p56 = por %p54, %p55
      %p57 = scmp.ne.s32.totalorder %s48, %s49
      %p58 = scmp.eq.s32.totalorder %s17, 0
      %p59 = por %p57, %p58
      %p60 = scmp.ne.s32.totalorder %s48, %s49
      %p61 = scmp.eq.s32.totalorder %s18, 1
      %p62 = por %p60, %p61
      %p64 = scmp.ne.s32.totalorder %s49, %s63
      %p65 = scmp.eq.s32.totalorder %s18, 0
      %p66 = por %p64, %p65
      %s68 = sadd.s32 %s67, 1
      %p71 = scmp.eq.s32.totalorder %s12, 1
      %p72 = scmp.ne.s32.totalorder %s67, %s69
      %p73 = scmp.eq.s32.totalorder %s12, 0
      %p74 = por %p72, %p73
      %p75 = scmp.ne.s32.totalorder %s67, %s69
      %p76 = scmp.eq.s32.totalorder %s17, 1
      %p77 = por %p75, %p76
      %p78 = scmp.ne.s32.totalorder %s69, %s70
      %p79 = scmp.eq.s32.totalorder %s17, 0
      %p80 = por %p78, %p79
      %p81 = scmp.ne.s32.totalorder %s69, %s70
      %p82 = scmp.eq.s32.totalorder %s18, 1
      %p83 = por %p81, %p82
      %p85 = scmp.ne.s32.totalorder %s70, %s84
      %p86 = scmp.eq.s32.totalorder %s18, 0
      %p87 = por %p85, %p86
      %s88 = ssub.s32 %s12, %s19
      %p89 = scmp.eq.s32.totalorder %s88, 0
      %s91 = sadd.s32 %s90, 1
      %s92 = scalar_select %p89, %s90, %s91
      %p95 = pneg %p89
      %p96 = scmp.eq.s32.totalorder %s12, 1
      %p97 = por %p95, %p96
      %p98 = scmp.ne.s32.totalorder %s90, %s93
      %p99 = scmp.eq.s32.totalorder %s12, 0
      %p100 = por %p98, %p99
      %p101 = scmp.ne.s32.totalorder %s90, %s93
      %p102 = scmp.eq.s32.totalorder %s17, 1
      %p103 = por %p101, %p102
      %p104 = scmp.ne.s32.totalorder %s93, %s94
      %p105 = scmp.eq.s32.totalorder %s17, 0
      %p106 = por %p104, %p105
      %p107 = scmp.ne.s32.totalorder %s93, %s94
      %p108 = scmp.eq.s32.totalorder %s18, 1
      %p109 = por %p107, %p108
      %p111 = scmp.ne.s32.totalorder %s94, %s110
      %p112 = scmp.eq.s32.totalorder %s18, 0
      %p113 = por %p111, %p112
      %p114 = scmp.le.s32.totalorder 1, %s12
      %p115 = scmp.lt.s32.totalorder %s12, 3
      %p116 = pnand %p114, %p115
      %p117 = pneg %p116
      // Predicated region
      $region9: #{feature_concat_forward.3} parent=5 // pred_check
        _
      $region10: #{feature_concat_forward.3} parent=5 // pred_check_branch
        %119 = sbr.rel (%p116) target = $region12
      $region11: #{feature_concat_forward.3} parent=5 // pred_region
        %s120 = ssub.s32 %s12, 1
        // Predicated region
        $region13: #{feature_concat_forward.3} parent=11 // pred_check
          %p121 = pneg %p59
        $region14: #{feature_concat_forward.3} parent=11 // pred_check_branch
          %123 = sbr.rel (%p121) target = $region16
        $region15: #{feature_concat_forward.3} parent=11 // pred_region
          _
        $region16: #{feature_concat_forward.3} parent=11 // pred_fallthru
          _
        // Predicated region
        $region17: #{feature_concat_forward.3} parent=11 // pred_check
          %p124 = pneg %p80
        $region18: #{feature_concat_forward.3} parent=11 // pred_check_branch
          %126 = sbr.rel (%p124) target = $region20
        $region19: #{feature_concat_forward.3} parent=11 // pred_region
          _
        $region20: #{feature_concat_forward.3} parent=11 // pred_fallthru
          _
      $region12: #{feature_concat_forward.3} parent=5 // pred_fallthru
        _
      %p127 = scmp.lt.s32.totalorder %s12, 2
      // Predicated region
      $region21: #{feature_concat_forward.3} parent=5 // pred_check
        %p128 = pneg %p127
      $region22: #{feature_concat_forward.3} parent=5 // pred_check_branch
        %130 = sbr.rel (%p128) target = $region24
      $region23: #{feature_concat_forward.3} parent=5 // pred_region
        // Predicated region
        $region25: #{feature_concat_forward.3} parent=23 // pred_check
          %p131 = pneg %p32
        $region26: #{feature_concat_forward.3} parent=23 // pred_check_branch
          %133 = sbr.rel (%p131) target = $region28
        $region27: #{feature_concat_forward.3} parent=23 // pred_region
          %p134 = scmp.lt.s32.totalorder %s12, 1
          %s135 = scalar_select %p134, %s12, 1
          %s136 = smul.addr %s135, 32
          %s137 = smul.addr %s136, 8
          %s138 = scalar_lea.vmem %s0, %s137
        $region28: #{feature_concat_forward.3} parent=23 // pred_fallthru
          _
      $region24: #{feature_concat_forward.3} parent=5 // pred_fallthru
        _
      %p139 = scmp.le.s32.totalorder 1, %s12
      %p140 = scmp.lt.s32.totalorder %s12, 3
      %p141 = pnand %p139, %p140
      %p142 = pneg %p141
      // Predicated region
      $region29: #{feature_concat_forward.3} parent=5 // pred_check
        _
      $region30: #{feature_concat_forward.3} parent=5 // pred_check_branch
        %144 = sbr.rel (%p141) target = $region32
      $region31: #{feature_concat_forward.3} parent=5 // pred_region
        %s145 = ssub.s32 %s12, 1
        %p146 = scmp.lt.s32.totalorder %s17, 1
        %s147 = scalar_select %p146, %s17, 1
        %s148 = smul.addr %s147, 32
        %s149 = smul.addr %s148, 8
        %s150 = scalar_lea.vmem %s0, %s149
        %p151 = pneg %p38
        %p152 = pneg %p35
        %p153 = pneg %p59
        %p154 = pneg %p56
        %p155 = pneg %p80
        %p156 = pneg %p77
        %p157 = pneg %p106
        %p158 = pneg %p103
        %s159 = sand.u32 %s93, 1
        %s160 = scalar_lea.sflag [#allocation3], %s159
        %s161 = sand.u32 %s93, 1
        %s162 = smul.addr %s161, 64
        %s163 = scalar_lea.vmem [#allocation2], %s162
        %p164 = scmp.lt.s32.totalorder %s17, 1
        %s165 = scalar_select %p164, %s17, 1
        %s166 = smul.addr %s165, 32
        %s167 = smul.addr %s166, 8
        %s168 = scalar_lea.vmem %s0, %s167
        %v169 = vld [vmem:[%s1] sm:$0xff]
        %v170 = vld [vmem:[%s1 + $0x8] sm:$0xff]
        %s171 = scalar_lea.vmem %s1, 16
        %v172 = vld [vmem:[%s171] sm:$0xff]
        %v173 = vld [vmem:[%s171 + $0x8] sm:$0xff]
        %v174 = vld [vmem:[%s2] sm:$0xff]
        %v175 = vld [vmem:[%s2 + $0x8] sm:$0xff]
        %s176 = scalar_lea.vmem %s2, 16
        %v177 = vld [vmem:[%s176] sm:$0xff]
        %v178 = vld [vmem:[%s176 + $0x8] sm:$0xff]
        %v179 = vld [vmem:[%s168] sm:$0xff]
        %v180 = vld [vmem:[%s168 + $0x8] sm:$0xff]
        %s181 = scalar_lea.vmem %s168, 128
        %v182 = vld [vmem:[%s181] sm:$0xff]
        %v183 = vld [vmem:[%s181 + $0x8] sm:$0xff]
        %vm184 = vcmask 130048
        %v186 = vsel %vm184, %v172, 0
        %v189 = vsel %vm184, %v173, 0
        %191 = vmatprep.subr.mxu0 0.0
        %192 = vmatpush1.msra.mxu0 %v182
        %193 = vmatprep.subr.mxu0 0.0
        %194 = vmatpush1.msra.mxu0 %v183
        %195 = vmatprep.subr.mxu0 0.0
        %196 = vmatpush1.msra.mxu0 0.0
        %197 = vmatprep.subr.mxu0 0.0
        %198 = vmatpush1.msra.mxu0 0.0
        %199 = vmatprep.subr.mxu0 0.0
        %200 = vmatpush1.msra.mxu0 0.0
        %201 = vmatprep.subr.mxu0 0.0
        %202 = vmatpush1.msra.mxu0 0.0
        %203 = vmatprep.subr.mxu0 0.0
        %204 = vmatpush1.msra.mxu0 0.0
        %205 = vmatprep.subr.mxu0 0.0
        %206 = vmatpush1.msra.mxu0 0.0
        %207 = vmatprep.subr.mxu0 0.0
        %208 = vmatpush1.msra.mxu0 0.0
        %209 = vmatprep.subr.mxu0 0.0
        %210 = vmatpush1.msra.mxu0 0.0
        %211 = vmatprep.subr.mxu0 0.0
        %212 = vmatpush1.msra.mxu0 0.0
        %213 = vmatprep.subr.mxu0 0.0
        %214 = vmatpush1.msra.mxu0 0.0
        %215 = vmatprep.subr.mxu0 0.0
        %216 = vmatpush1.msra.mxu0 0.0
        %217 = vmatprep.subr.mxu0 0.0
        %218 = vmatpush1.msra.mxu0 0.0
        %219 = vmatprep.subr.mxu0 0.0
        %220 = vmatpush1.msra.mxu0 0.0
        %221 = vmatprep.subr.mxu0 0.0
        %222 = vmatpush1.msra.mxu0 0.0
        %223 = vmatprep.subr.mxu0 0.0
        %224 = vmatpush1.msra.mxu0 0.0
        %225 = vmatprep.subr.mxu0 0.0
        %226 = vmatpush1.msra.mxu0 0.0
        %227 = vmatprep.subr.mxu0 0.0
        %228 = vmatpush1.msra.mxu0 0.0
        %229 = vmatprep.subr.mxu0 0.0
        %230 = vmatpush1.msra.mxu0 0.0
        %231 = vmatprep.subr.mxu0 0.0
        %232 = vmatpush1.msra.mxu0 0.0
        %233 = vmatprep.subr.mxu0 0.0
        %234 = vmatpush1.msra.mxu0 0.0
        %235 = vmatprep.subr.mxu0 0.0
        %236 = vmatpush1.msra.mxu0 0.0
        %237 = vmatprep.subr.mxu0 0.0
        %238 = vmatpush1.msra.mxu0 0.0
        %239 = vmatprep.subr.mxu0 0.0
        %240 = vmatpush1.msra.mxu0 0.0
        %241 = vmatprep.subr.mxu0 0.0
        %242 = vmatpush1.msra.mxu0 0.0
        %243 = vmatprep.subr.mxu0 0.0
        %244 = vmatpush1.msra.mxu0 0.0
        %245 = vmatprep.subr.mxu0 0.0
        %246 = vmatpush1.msra.mxu0 0.0
        %247 = vmatprep.subr.mxu0 0.0
        %248 = vmatpush1.msra.mxu0 0.0
        %249 = vmatprep.subr.mxu0 0.0
        %250 = vmatpush1.msra.mxu0 0.0
        %251 = vmatprep.subr.mxu0 0.0
        %252 = vmatpush1.msra.mxu0 0.0
        %253 = vmatprep.subr.mxu0 0.0
        %254 = vmatpush1.msra.mxu0 0.0
        %255 = vmatprep.mubr.f32.mxu0 0.0
        %256 = vmatmul.mubr.f32.gmra.mrb[0].mxu0 %v186
        %v257 = vpop.f32.mrb[0].mxu0
        %v258 = vadd.f32 0.0, %v257
        %v259 = vpop.f32.mrb[0].mxu0
        %260 = vmatprep.mubr.f32.mxu0 0.0
        %261 = vmatmul.mubr.f32.gmra.mrb[0].mxu0 %v189
        %v262 = vpop.f32.mrb[0].mxu0
        %v263 = vadd.f32 0.0, %v262
        %v264 = vpop.f32.mrb[0].mxu0
        %265 = vdwg.mxu0
        %v267 = vsel %vm184, %v169, 0
        %v270 = vsel %vm184, %v170, 0
        %272 = vmatprep.subr.mxu0 0.0
        %273 = vmatpush1.msra.mxu0 %v179
        %274 = vmatprep.subr.mxu0 0.0
        %275 = vmatpush1.msra.mxu0 %v180
        %276 = vmatprep.subr.mxu0 0.0
        %277 = vmatpush1.msra.mxu0 0.0
        %278 = vmatprep.subr.mxu0 0.0
        %279 = vmatpush1.msra.mxu0 0.0
        %280 = vmatprep.subr.mxu0 0.0
        %281 = vmatpush1.msra.mxu0 0.0
        %282 = vmatprep.subr.mxu0 0.0
        %283 = vmatpush1.msra.mxu0 0.0
        %284 = vmatprep.subr.mxu0 0.0
        %285 = vmatpush1.msra.mxu0 0.0
        %286 = vmatprep.subr.mxu0 0.0
        %287 = vmatpush1.msra.mxu0 0.0
        %288 = vmatprep.subr.mxu0 0.0
        %289 = vmatpush1.msra.mxu0 0.0
        %290 = vmatprep.subr.mxu0 0.0
        %291 = vmatpush1.msra.mxu0 0.0
        %292 = vmatprep.subr.mxu0 0.0
        %293 = vmatpush1.msra.mxu0 0.0
        %294 = vmatprep.subr.mxu0 0.0
        %295 = vmatpush1.msra.mxu0 0.0
        %296 = vmatprep.subr.mxu0 0.0
        %297 = vmatpush1.msra.mxu0 0.0
        %298 = vmatprep.subr.mxu0 0.0
        %299 = vmatpush1.msra.mxu0 0.0
        %300 = vmatprep.subr.mxu0 0.0
        %301 = vmatpush1.msra.mxu0 0.0
        %302 = vmatprep.subr.mxu0 0.0
        %303 = vmatpush1.msra.mxu0 0.0
        %304 = vmatprep.subr.mxu0 0.0
        %305 = vmatpush1.msra.mxu0 0.0
        %306 = vmatprep.subr.mxu0 0.0
        %307 = vmatpush1.msra.mxu0 0.0
        %308 = vmatprep.subr.mxu0 0.0
        %309 = vmatpush1.msra.mxu0 0.0
        %310 = vmatprep.subr.mxu0 0.0
        %311 = vmatpush1.msra.mxu0 0.0
        %312 = vmatprep.subr.mxu0 0.0
        %313 = vmatpush1.msra.mxu0 0.0
        %314 = vmatprep.subr.mxu0 0.0
        %315 = vmatpush1.msra.mxu0 0.0
        %316 = vmatprep.subr.mxu0 0.0
        %317 = vmatpush1.msra.mxu0 0.0
        %318 = vmatprep.subr.mxu0 0.0
        %319 = vmatpush1.msra.mxu0 0.0
        %320 = vmatprep.subr.mxu0 0.0
        %321 = vmatpush1.msra.mxu0 0.0
        %322 = vmatprep.subr.mxu0 0.0
        %323 = vmatpush1.msra.mxu0 0.0
        %324 = vmatprep.subr.mxu0 0.0
        %325 = vmatpush1.msra.mxu0 0.0
        %326 = vmatprep.subr.mxu0 0.0
        %327 = vmatpush1.msra.mxu0 0.0
        %328 = vmatprep.subr.mxu0 0.0
        %329 = vmatpush1.msra.mxu0 0.0
        %330 = vmatprep.subr.mxu0 0.0
        %331 = vmatpush1.msra.mxu0 0.0
        %332 = vmatprep.subr.mxu0 0.0
        %333 = vmatpush1.msra.mxu0 0.0
        %334 = vmatprep.subr.mxu0 0.0
        %335 = vmatpush1.msra.mxu0 0.0
        %336 = vmatprep.mubr.f32.mxu0 0.0
        %337 = vmatmul.mubr.f32.gmra.mrb[0].mxu0 %v267
        %v338 = vpop.f32.mrb[0].mxu0
        %v339 = vadd.f32 %v258, %v338
        %v340 = vpop.f32.mrb[0].mxu0
        %341 = vmatprep.mubr.f32.mxu0 0.0
        %342 = vmatmul.mubr.f32.gmra.mrb[0].mxu0 %v270
        %v343 = vpop.f32.mrb[0].mxu0
        %v344 = vadd.f32 %v263, %v343
        %v345 = vpop.f32.mrb[0].mxu0
        %346 = vdwg.mxu0
        %v347 = vmax.f32 %v339, 0.0
        %v348 = vmax.f32 %v344, 0.0
        %s349 = scalar_lea.vmem %s168, 64
        %v350 = vld [vmem:[%s349] sm:$0xff]
        %v351 = vld [vmem:[%s349 + $0x8] sm:$0xff]
        %s352 = scalar_lea.vmem %s168, 192
        %v353 = vld [vmem:[%s352] sm:$0xff]
        %v354 = vld [vmem:[%s352 + $0x8] sm:$0xff]
        %355 = vmatprep.subr.mxu0 0.0
        %356 = vmatpush1.msra.mxu0 %v353
        %357 = vmatprep.subr.mxu0 0.0
        %358 = vmatpush1.msra.mxu0 %v354
        %359 = vmatprep.subr.mxu0 0.0
        %360 = vmatpush1.msra.mxu0 0.0
        %361 = vmatprep.subr.mxu0 0.0
        %362 = vmatpush1.msra.mxu0 0.0
        %363 = vmatprep.subr.mxu0 0.0
        %364 = vmatpush1.msra.mxu0 0.0
        %365 = vmatprep.subr.mxu0 0.0
        %366 = vmatpush1.msra.mxu0 0.0
        %367 = vmatprep.subr.mxu0 0.0
        %368 = vmatpush1.msra.mxu0 0.0
        %369 = vmatprep.subr.mxu0 0.0
        %370 = vmatpush1.msra.mxu0 0.0
        %371 = vmatprep.subr.mxu0 0.0
        %372 = vmatpush1.msra.mxu0 0.0
        %373 = vmatprep.subr.mxu0 0.0
        %374 = vmatpush1.msra.mxu0 0.0
        %375 = vmatprep.subr.mxu0 0.0
        %376 = vmatpush1.msra.mxu0 0.0
        %377 = vmatprep.subr.mxu0 0.0
        %378 = vmatpush1.msra.mxu0 0.0
        %379 = vmatprep.subr.mxu0 0.0
        %380 = vmatpush1.msra.mxu0 0.0
        %381 = vmatprep.subr.mxu0 0.0
        %382 = vmatpush1.msra.mxu0 0.0
        %383 = vmatprep.subr.mxu0 0.0
        %384 = vmatpush1.msra.mxu0 0.0
        %385 = vmatprep.subr.mxu0 0.0
        %386 = vmatpush1.msra.mxu0 0.0
        %387 = vmatprep.subr.mxu0 0.0
        %388 = vmatpush1.msra.mxu0 0.0
        %389 = vmatprep.subr.mxu0 0.0
        %390 = vmatpush1.msra.mxu0 0.0
        %391 = vmatprep.subr.mxu0 0.0
        %392 = vmatpush1.msra.mxu0 0.0
        %393 = vmatprep.subr.mxu0 0.0
        %394 = vmatpush1.msra.mxu0 0.0
        %395 = vmatprep.subr.mxu0 0.0
        %396 = vmatpush1.msra.mxu0 0.0
        %397 = vmatprep.subr.mxu0 0.0
        %398 = vmatpush1.msra.mxu0 0.0
        %399 = vmatprep.subr.mxu0 0.0
        %400 = vmatpush1.msra.mxu0 0.0
        %401 = vmatprep.subr.mxu0 0.0
        %402 = vmatpush1.msra.mxu0 0.0
        %403 = vmatprep.subr.mxu0 0.0
        %404 = vmatpush1.msra.mxu0 0.0
        %405 = vmatprep.subr.mxu0 0.0
        %406 = vmatpush1.msra.mxu0 0.0
        %407 = vmatprep.subr.mxu0 0.0
        %408 = vmatpush1.msra.mxu0 0.0
        %409 = vmatprep.subr.mxu0 0.0
        %410 = vmatpush1.msra.mxu0 0.0
        %411 = vmatprep.subr.mxu0 0.0
        %412 = vmatpush1.msra.mxu0 0.0
        %413 = vmatprep.subr.mxu0 0.0
        %414 = vmatpush1.msra.mxu0 0.0
        %415 = vmatprep.subr.mxu0 0.0
        %416 = vmatpush1.msra.mxu0 0.0
        %417 = vmatprep.subr.mxu0 0.0
        %418 = vmatpush1.msra.mxu0 0.0
        %419 = vmatprep.mubr.f32.mxu0 0.0
        %420 = vmatmul.mubr.f32.gmra.mrb[0].mxu0 %v186
        %v421 = vpop.f32.mrb[0].mxu0
        %v422 = vadd.f32 0.0, %v421
        %v423 = vpop.f32.mrb[0].mxu0
        %424 = vmatprep.mubr.f32.mxu0 0.0
        %425 = vmatmul.mubr.f32.gmra.mrb[0].mxu0 %v189
        %v426 = vpop.f32.mrb[0].mxu0
        %v427 = vadd.f32 0.0, %v426
        %v428 = vpop.f32.mrb[0].mxu0
        %429 = vdwg.mxu0
        %430 = vmatprep.subr.mxu0 0.0
        %431 = vmatpush1.msra.mxu0 %v350
        %432 = vmatprep.subr.mxu0 0.0
        %433 = vmatpush1.msra.mxu0 %v351
        %434 = vmatprep.subr.mxu0 0.0
        %435 = vmatpush1.msra.mxu0 0.0
        %436 = vmatprep.subr.mxu0 0.0
        %437 = vmatpush1.msra.mxu0 0.0
        %438 = vmatprep.subr.mxu0 0.0
        %439 = vmatpush1.msra.mxu0 0.0
        %440 = vmatprep.subr.mxu0 0.0
        %441 = vmatpush1.msra.mxu0 0.0
        %442 = vmatprep.subr.mxu0 0.0
        %443 = vmatpush1.msra.mxu0 0.0
        %444 = vmatprep.subr.mxu0 0.0
        %445 = vmatpush1.msra.mxu0 0.0
        %446 = vmatprep.subr.mxu0 0.0
        %447 = vmatpush1.msra.mxu0 0.0
        %448 = vmatprep.subr.mxu0 0.0
        %449 = vmatpush1.msra.mxu0 0.0
        %450 = vmatprep.subr.mxu0 0.0
        %451 = vmatpush1.msra.mxu0 0.0
        %452 = vmatprep.subr.mxu0 0.0
        %453 = vmatpush1.msra.mxu0 0.0
        %454 = vmatprep.subr.mxu0 0.0
        %455 = vmatpush1.msra.mxu0 0.0
        %456 = vmatprep.subr.mxu0 0.0
        %457 = vmatpush1.msra.mxu0 0.0
        %458 = vmatprep.subr.mxu0 0.0
        %459 = vmatpush1.msra.mxu0 0.0
        %460 = vmatprep.subr.mxu0 0.0
        %461 = vmatpush1.msra.mxu0 0.0
        %462 = vmatprep.subr.mxu0 0.0
        %463 = vmatpush1.msra.mxu0 0.0
        %464 = vmatprep.subr.mxu0 0.0
        %465 = vmatpush1.msra.mxu0 0.0
        %466 = vmatprep.subr.mxu0 0.0
        %467 = vmatpush1.msra.mxu0 0.0
        %468 = vmatprep.subr.mxu0 0.0
        %469 = vmatpush1.msra.mxu0 0.0
        %470 = vmatprep.subr.mxu0 0.0
        %471 = vmatpush1.msra.mxu0 0.0
        %472 = vmatprep.subr.mxu0 0.0
        %473 = vmatpush1.msra.mxu0 0.0
        %474 = vmatprep.subr.mxu0 0.0
        %475 = vmatpush1.msra.mxu0 0.0
        %476 = vmatprep.subr.mxu0 0.0
        %477 = vmatpush1.msra.mxu0 0.0
        %478 = vmatprep.subr.mxu0 0.0
        %479 = vmatpush1.msra.mxu0 0.0
        %480 = vmatprep.subr.mxu0 0.0
        %481 = vmatpush1.msra.mxu0 0.0
        %482 = vmatprep.subr.mxu0 0.0
        %483 = vmatpush1.msra.mxu0 0.0
        %484 = vmatprep.subr.mxu0 0.0
        %485 = vmatpush1.msra.mxu0 0.0
        %486 = vmatprep.subr.mxu0 0.0
        %487 = vmatpush1.msra.mxu0 0.0
        %488 = vmatprep.subr.mxu0 0.0
        %489 = vmatpush1.msra.mxu0 0.0
        %490 = vmatprep.subr.mxu0 0.0
        %491 = vmatpush1.msra.mxu0 0.0
        %492 = vmatprep.subr.mxu0 0.0
        %493 = vmatpush1.msra.mxu0 0.0
        %494 = vmatprep.mubr.f32.mxu0 0.0
        %495 = vmatmul.mubr.f32.gmra.mrb[0].mxu0 %v267
        %v496 = vpop.f32.mrb[0].mxu0
        %v497 = vadd.f32 %v422, %v496
        %v498 = vpop.f32.mrb[0].mxu0
        %499 = vmatprep.mubr.f32.mxu0 0.0
        %500 = vmatmul.mubr.f32.gmra.mrb[0].mxu0 %v270
        %v501 = vpop.f32.mrb[0].mxu0
        %v502 = vadd.f32 %v427, %v501
        %v503 = vpop.f32.mrb[0].mxu0
        %504 = vdwg.mxu0
        %v505 = vmax.f32 %v497, 0.0
        %v506 = vmax.f32 %v502, 0.0
        %v508 = vsel %vm184, %v505, 0
        %v511 = vsel %vm184, %v506, 0
        %513 = vmatprep.subr.mxu0 0.0
        %514 = vmatpush1.msra.mxu0 %v177
        %515 = vmatprep.subr.mxu0 0.0
        %516 = vmatpush1.msra.mxu0 %v178
        %517 = vmatprep.subr.mxu0 0.0
        %518 = vmatpush1.msra.mxu0 0.0
        %519 = vmatprep.subr.mxu0 0.0
        %520 = vmatpush1.msra.mxu0 0.0
        %521 = vmatprep.subr.mxu0 0.0
        %522 = vmatpush1.msra.mxu0 0.0
        %523 = vmatprep.subr.mxu0 0.0
        %524 = vmatpush1.msra.mxu0 0.0
        %525 = vmatprep.subr.mxu0 0.0
        %526 = vmatpush1.msra.mxu0 0.0
        %527 = vmatprep.subr.mxu0 0.0
        %528 = vmatpush1.msra.mxu0 0.0
        %529 = vmatprep.subr.mxu0 0.0
        %530 = vmatpush1.msra.mxu0 0.0
        %531 = vmatprep.subr.mxu0 0.0
        %532 = vmatpush1.msra.mxu0 0.0
        %533 = vmatprep.subr.mxu0 0.0
        %534 = vmatpush1.msra.mxu0 0.0
        %535 = vmatprep.subr.mxu0 0.0
        %536 = vmatpush1.msra.mxu0 0.0
        %537 = vmatprep.subr.mxu0 0.0
        %538 = vmatpush1.msra.mxu0 0.0
        %539 = vmatprep.subr.mxu0 0.0
        %540 = vmatpush1.msra.mxu0 0.0
        %541 = vmatprep.subr.mxu0 0.0
        %542 = vmatpush1.msra.mxu0 0.0
        %543 = vmatprep.subr.mxu0 0.0
        %544 = vmatpush1.msra.mxu0 0.0
        %545 = vmatprep.subr.mxu0 0.0
        %546 = vmatpush1.msra.mxu0 0.0
        %547 = vmatprep.subr.mxu0 0.0
        %548 = vmatpush1.msra.mxu0 0.0
        %549 = vmatprep.subr.mxu0 0.0
        %550 = vmatpush1.msra.mxu0 0.0
        %551 = vmatprep.subr.mxu0 0.0
        %552 = vmatpush1.msra.mxu0 0.0
        %553 = vmatprep.subr.mxu0 0.0
        %554 = vmatpush1.msra.mxu0 0.0
        %555 = vmatprep.subr.mxu0 0.0
        %556 = vmatpush1.msra.mxu0 0.0
        %557 = vmatprep.subr.mxu0 0.0
        %558 = vmatpush1.msra.mxu0 0.0
        %559 = vmatprep.subr.mxu0 0.0
        %560 = vmatpush1.msra.mxu0 0.0
        %561 = vmatprep.subr.mxu0 0.0
        %562 = vmatpush1.msra.mxu0 0.0
        %563 = vmatprep.subr.mxu0 0.0
        %564 = vmatpush1.msra.mxu0 0.0
        %565 = vmatprep.subr.mxu0 0.0
        %566 = vmatpush1.msra.mxu0 0.0
        %567 = vmatprep.subr.mxu0 0.0
        %568 = vmatpush1.msra.mxu0 0.0
        %569 = vmatprep.subr.mxu0 0.0
        %570 = vmatpush1.msra.mxu0 0.0
        %571 = vmatprep.subr.mxu0 0.0
        %572 = vmatpush1.msra.mxu0 0.0
        %573 = vmatprep.subr.mxu0 0.0
        %574 = vmatpush1.msra.mxu0 0.0
        %575 = vmatprep.subr.mxu0 0.0
        %576 = vmatpush1.msra.mxu0 0.0
        %577 = vmatprep.mubr.f32.mxu0 0.0
        %578 = vmatmul.mubr.f32.gmra.mrb[0].mxu0 %v508
        %v579 = vpop.f32.mrb[0].mxu0
        %v580 = vadd.f32 0.0, %v579
        %v581 = vpop.f32.mrb[0].mxu0
        %582 = vmatprep.mubr.f32.mxu0 0.0
        %583 = vmatmul.mubr.f32.gmra.mrb[0].mxu0 %v511
        %v584 = vpop.f32.mrb[0].mxu0
        %v585 = vadd.f32 0.0, %v584
        %v586 = vpop.f32.mrb[0].mxu0
        %587 = vdwg.mxu0
        %v589 = vsel %vm184, %v347, 0
        %v592 = vsel %vm184, %v348, 0
        %594 = vmatprep.subr.mxu0 0.0
        %595 = vmatpush1.msra.mxu0 %v174
        %596 = vmatprep.subr.mxu0 0.0
        %597 = vmatpush1.msra.mxu0 %v175
        %598 = vmatprep.subr.mxu0 0.0
        %599 = vmatpush1.msra.mxu0 0.0
        %600 = vmatprep.subr.mxu0 0.0
        %601 = vmatpush1.msra.mxu0 0.0
        %602 = vmatprep.subr.mxu0 0.0
        %603 = vmatpush1.msra.mxu0 0.0
        %604 = vmatprep.subr.mxu0 0.0
        %605 = vmatpush1.msra.mxu0 0.0
        %606 = vmatprep.subr.mxu0 0.0
        %607 = vmatpush1.msra.mxu0 0.0
        %608 = vmatprep.subr.mxu0 0.0
        %609 = vmatpush1.msra.mxu0 0.0
        %610 = vmatprep.subr.mxu0 0.0
        %611 = vmatpush1.msra.mxu0 0.0
        %612 = vmatprep.subr.mxu0 0.0
        %613 = vmatpush1.msra.mxu0 0.0
        %614 = vmatprep.subr.mxu0 0.0
        %615 = vmatpush1.msra.mxu0 0.0
        %616 = vmatprep.subr.mxu0 0.0
        %617 = vmatpush1.msra.mxu0 0.0
        %618 = vmatprep.subr.mxu0 0.0
        %619 = vmatpush1.msra.mxu0 0.0
        %620 = vmatprep.subr.mxu0 0.0
        %621 = vmatpush1.msra.mxu0 0.0
        %622 = vmatprep.subr.mxu0 0.0
        %623 = vmatpush1.msra.mxu0 0.0
        %624 = vmatprep.subr.mxu0 0.0
        %625 = vmatpush1.msra.mxu0 0.0
        %626 = vmatprep.subr.mxu0 0.0
        %627 = vmatpush1.msra.mxu0 0.0
        %628 = vmatprep.subr.mxu0 0.0
        %629 = vmatpush1.msra.mxu0 0.0
        %630 = vmatprep.subr.mxu0 0.0
        %631 = vmatpush1.msra.mxu0 0.0
        %632 = vmatprep.subr.mxu0 0.0
        %633 = vmatpush1.msra.mxu0 0.0
        %634 = vmatprep.subr.mxu0 0.0
        %635 = vmatpush1.msra.mxu0 0.0
        %636 = vmatprep.subr.mxu0 0.0
        %637 = vmatpush1.msra.mxu0 0.0
        %638 = vmatprep.subr.mxu0 0.0
        %639 = vmatpush1.msra.mxu0 0.0
        %640 = vmatprep.subr.mxu0 0.0
        %641 = vmatpush1.msra.mxu0 0.0
        %642 = vmatprep.subr.mxu0 0.0
        %643 = vmatpush1.msra.mxu0 0.0
        %644 = vmatprep.subr.mxu0 0.0
        %645 = vmatpush1.msra.mxu0 0.0
        %646 = vmatprep.subr.mxu0 0.0
        %647 = vmatpush1.msra.mxu0 0.0
        %648 = vmatprep.subr.mxu0 0.0
        %649 = vmatpush1.msra.mxu0 0.0
        %650 = vmatprep.subr.mxu0 0.0
        %651 = vmatpush1.msra.mxu0 0.0
        %652 = vmatprep.subr.mxu0 0.0
        %653 = vmatpush1.msra.mxu0 0.0
        %654 = vmatprep.subr.mxu0 0.0
        %655 = vmatpush1.msra.mxu0 0.0
        %656 = vmatprep.subr.mxu0 0.0
        %657 = vmatpush1.msra.mxu0 0.0
        %658 = vmatprep.mubr.f32.mxu0 0.0
        %659 = vmatmul.mubr.f32.gmra.mrb[0].mxu0 %v589
        %v660 = vpop.f32.mrb[0].mxu0
        %v661 = vadd.f32 %v580, %v660
        %v662 = vpop.f32.mrb[0].mxu0
        %663 = vmatprep.mubr.f32.mxu0 0.0
        %664 = vmatmul.mubr.f32.gmra.mrb[0].mxu0 %v592
        %v665 = vpop.f32.mrb[0].mxu0
        %v666 = vadd.f32 %v585, %v665
        %v667 = vpop.f32.mrb[0].mxu0
        %668 = vdwg.mxu0
        %v669 = vmax.f32 %v661, 0.0
        %v670 = vmax.f32 %v666, 0.0
        %671 = vst.msk [vmem:[%s163] sm:$0xff] %vm184, %v669
        %672 = vst.msk [vmem:[%s163 + $0x8] sm:$0xff] %vm184, %v670
        %s673 = scalar_lea.vmem %s168, 16
        %v674 = vld [vmem:[%s673] sm:$0xff]
        %v675 = vld [vmem:[%s673 + $0x8] sm:$0xff]
        %s676 = scalar_lea.vmem %s168, 144
        %v677 = vld [vmem:[%s676] sm:$0xff]
        %v678 = vld [vmem:[%s676 + $0x8] sm:$0xff]
        %679 = vmatprep.subr.mxu0 0.0
        %680 = vmatpush1.msra.mxu0 %v677
        %681 = vmatprep.subr.mxu0 0.0
        %682 = vmatpush1.msra.mxu0 %v678
        %683 = vmatprep.subr.mxu0 0.0
        %684 = vmatpush1.msra.mxu0 0.0
        %685 = vmatprep.subr.mxu0 0.0
        %686 = vmatpush1.msra.mxu0 0.0
        %687 = vmatprep.subr.mxu0 0.0
        %688 = vmatpush1.msra.mxu0 0.0
        %689 = vmatprep.subr.mxu0 0.0
        %690 = vmatpush1.msra.mxu0 0.0
        %691 = vmatprep.subr.mxu0 0.0
        %692 = vmatpush1.msra.mxu0 0.0
        %693 = vmatprep.subr.mxu0 0.0
        %694 = vmatpush1.msra.mxu0 0.0
        %695 = vmatprep.subr.mxu0 0.0
        %696 = vmatpush1.msra.mxu0 0.0
        %697 = vmatprep.subr.mxu0 0.0
        %698 = vmatpush1.msra.mxu0 0.0
        %699 = vmatprep.subr.mxu0 0.0
        %700 = vmatpush1.msra.mxu0 0.0
        %701 = vmatprep.subr.mxu0 0.0
        %702 = vmatpush1.msra.mxu0 0.0
        %703 = vmatprep.subr.mxu0 0.0
        %704 = vmatpush1.msra.mxu0 0.0
        %705 = vmatprep.subr.mxu0 0.0
        %706 = vmatpush1.msra.mxu0 0.0
        %707 = vmatprep.subr.mxu0 0.0
        %708 = vmatpush1.msra.mxu0 0.0
        %709 = vmatprep.subr.mxu0 0.0
        %710 = vmatpush1.msra.mxu0 0.0
        %711 = vmatprep.subr.mxu0 0.0
        %712 = vmatpush1.msra.mxu0 0.0
        %713 = vmatprep.subr.mxu0 0.0
        %714 = vmatpush1.msra.mxu0 0.0
        %715 = vmatprep.subr.mxu0 0.0
        %716 = vmatpush1.msra.mxu0 0.0
        %717 = vmatprep.subr.mxu0 0.0
        %718 = vmatpush1.msra.mxu0 0.0
        %719 = vmatprep.subr.mxu0 0.0
        %720 = vmatpush1.msra.mxu0 0.0
        %721 = vmatprep.subr.mxu0 0.0
        %722 = vmatpush1.msra.mxu0 0.0
        %723 = vmatprep.subr.mxu0 0.0
        %724 = vmatpush1.msra.mxu0 0.0
        %725 = vmatprep.subr.mxu0 0.0
        %726 = vmatpush1.msra.mxu0 0.0
        %727 = vmatprep.subr.mxu0 0.0
        %728 = vmatpush1.msra.mxu0 0.0
        %729 = vmatprep.subr.mxu0 0.0
        %730 = vmatpush1.msra.mxu0 0.0
        %731 = vmatprep.subr.mxu0 0.0
        %732 = vmatpush1.msra.mxu0 0.0
        %733 = vmatprep.subr.mxu0 0.0
        %734 = vmatpush1.msra.mxu0 0.0
        %735 = vmatprep.subr.mxu0 0.0
        %736 = vmatpush1.msra.mxu0 0.0
        %737 = vmatprep.subr.mxu0 0.0
        %738 = vmatpush1.msra.mxu0 0.0
        %739 = vmatprep.subr.mxu0 0.0
        %740 = vmatpush1.msra.mxu0 0.0
        %741 = vmatprep.subr.mxu0 0.0
        %742 = vmatpush1.msra.mxu0 0.0
        %743 = vmatprep.mubr.f32.mxu0 0.0
        %744 = vmatmul.mubr.f32.gmra.mrb[0].mxu0 %v186
        %v745 = vpop.f32.mrb[0].mxu0
        %v746 = vadd.f32 0.0, %v745
        %v747 = vpop.f32.mrb[0].mxu0
        %748 = vmatprep.mubr.f32.mxu0 0.0
        %749 = vmatmul.mubr.f32.gmra.mrb[0].mxu0 %v189
        %v750 = vpop.f32.mrb[0].mxu0
        %v751 = vadd.f32 0.0, %v750
        %v752 = vpop.f32.mrb[0].mxu0
        %753 = vdwg.mxu0
        %754 = vmatprep.subr.mxu0 0.0
        %755 = vmatpush1.msra.mxu0 %v674
        %756 = vmatprep.subr.mxu0 0.0
        %757 = vmatpush1.msra.mxu0 %v675
        %758 = vmatprep.subr.mxu0 0.0
        %759 = vmatpush1.msra.mxu0 0.0
        %760 = vmatprep.subr.mxu0 0.0
        %761 = vmatpush1.msra.mxu0 0.0
        %762 = vmatprep.subr.mxu0 0.0
        %763 = vmatpush1.msra.mxu0 0.0
        %764 = vmatprep.subr.mxu0 0.0
        %765 = vmatpush1.msra.mxu0 0.0
        %766 = vmatprep.subr.mxu0 0.0
        %767 = vmatpush1.msra.mxu0 0.0
        %768 = vmatprep.subr.mxu0 0.0
        %769 = vmatpush1.msra.mxu0 0.0
        %770 = vmatprep.subr.mxu0 0.0
        %771 = vmatpush1.msra.mxu0 0.0
        %772 = vmatprep.subr.mxu0 0.0
        %773 = vmatpush1.msra.mxu0 0.0
        %774 = vmatprep.subr.mxu0 0.0
        %775 = vmatpush1.msra.mxu0 0.0
        %776 = vmatprep.subr.mxu0 0.0
        %777 = vmatpush1.msra.mxu0 0.0
        %778 = vmatprep.subr.mxu0 0.0
        %779 = vmatpush1.msra.mxu0 0.0
        %780 = vmatprep.subr.mxu0 0.0
        %781 = vmatpush1.msra.mxu0 0.0
        %782 = vmatprep.subr.mxu0 0.0
        %783 = vmatpush1.msra.mxu0 0.0
        %784 = vmatprep.subr.mxu0 0.0
        %785 = vmatpush1.msra.mxu0 0.0
        %786 = vmatprep.subr.mxu0 0.0
        %787 = vmatpush1.msra.mxu0 0.0
        %788 = vmatprep.subr.mxu0 0.0
        %789 = vmatpush1.msra.mxu0 0.0
        %790 = vmatprep.subr.mxu0 0.0
        %791 = vmatpush1.msra.mxu0 0.0
        %792 = vmatprep.subr.mxu0 0.0
        %793 = vmatpush1.msra.mxu0 0.0
        %794 = vmatprep.subr.mxu0 0.0
        %795 = vmatpush1.msra.mxu0 0.0
        %796 = vmatprep.subr.mxu0 0.0
        %797 = vmatpush1.msra.mxu0 0.0
        %798 = vmatprep.subr.mxu0 0.0
        %799 = vmatpush1.msra.mxu0 0.0
        %800 = vmatprep.subr.mxu0 0.0
        %801 = vmatpush1.msra.mxu0 0.0
        %802 = vmatprep.subr.mxu0 0.0
        %803 = vmatpush1.msra.mxu0 0.0
        %804 = vmatprep.subr.mxu0 0.0
        %805 = vmatpush1.msra.mxu0 0.0
        %806 = vmatprep.subr.mxu0 0.0
        %807 = vmatpush1.msra.mxu0 0.0
        %808 = vmatprep.subr.mxu0 0.0
        %809 = vmatpush1.msra.mxu0 0.0
        %810 = vmatprep.subr.mxu0 0.0
        %811 = vmatpush1.msra.mxu0 0.0
        %812 = vmatprep.subr.mxu0 0.0
        %813 = vmatpush1.msra.mxu0 0.0
        %814 = vmatprep.subr.mxu0 0.0
        %815 = vmatpush1.msra.mxu0 0.0
        %816 = vmatprep.subr.mxu0 0.0
        %817 = vmatpush1.msra.mxu0 0.0
        %818 = vmatprep.mubr.f32.mxu0 0.0
        %819 = vmatmul.mubr.f32.gmra.mrb[0].mxu0 %v267
        %v820 = vpop.f32.mrb[0].mxu0
        %v821 = vadd.f32 %v746, %v820
        %v822 = vpop.f32.mrb[0].mxu0
        %823 = vmatprep.mubr.f32.mxu0 0.0
        %824 = vmatmul.mubr.f32.gmra.mrb[0].mxu0 %v270
        %v825 = vpop.f32.mrb[0].mxu0
        %v826 = vadd.f32 %v751, %v825
        %v827 = vpop.f32.mrb[0].mxu0
        %828 = vdwg.mxu0
        %v829 = vmax.f32 %v821, 0.0
        %v830 = vmax.f32 %v826, 0.0
        %s831 = scalar_lea.vmem %s168, 80
        %v832 = vld [vmem:[%s831] sm:$0xff]
        %v833 = vld [vmem:[%s831 + $0x8] sm:$0xff]
        %s834 = scalar_lea.vmem %s168, 208
        %v835 = vld [vmem:[%s834] sm:$0xff]
        %v836 = vld [vmem:[%s834 + $0x8] sm:$0xff]
        %837 = vmatprep.subr.mxu0 0.0
        %838 = vmatpush1.msra.mxu0 %v835
        %839 = vmatprep.subr.mxu0 0.0
        %840 = vmatpush1.msra.mxu0 %v836
        %841 = vmatprep.subr.mxu0 0.0
        %842 = vmatpush1.msra.mxu0 0.0
        %843 = vmatprep.subr.mxu0 0.0
        %844 = vmatpush1.msra.mxu0 0.0
        %845 = vmatprep.subr.mxu0 0.0
        %846 = vmatpush1.msra.mxu0 0.0
        %847 = vmatprep.subr.mxu0 0.0
        %848 = vmatpush1.msra.mxu0 0.0
        %849 = vmatprep.subr.mxu0 0.0
        %850 = vmatpush1.msra.mxu0 0.0
        %851 = vmatprep.subr.mxu0 0.0
        %852 = vmatpush1.msra.mxu0 0.0
        %853 = vmatprep.subr.mxu0 0.0
        %854 = vmatpush1.msra.mxu0 0.0
        %855 = vmatprep.subr.mxu0 0.0
        %856 = vmatpush1.msra.mxu0 0.0
        %857 = vmatprep.subr.mxu0 0.0
        %858 = vmatpush1.msra.mxu0 0.0
        %859 = vmatprep.subr.mxu0 0.0
        %860 = vmatpush1.msra.mxu0 0.0
        %861 = vmatprep.subr.mxu0 0.0
        %862 = vmatpush1.msra.mxu0 0.0
        %863 = vmatprep.subr.mxu0 0.0
        %864 = vmatpush1.msra.mxu0 0.0
        %865 = vmatprep.subr.mxu0 0.0
        %866 = vmatpush1.msra.mxu0 0.0
        %867 = vmatprep.subr.mxu0 0.0
        %868 = vmatpush1.msra.mxu0 0.0
        %869 = vmatprep.subr.mxu0 0.0
        %870 = vmatpush1.msra.mxu0 0.0
        %871 = vmatprep.subr.mxu0 0.0
        %872 = vmatpush1.msra.mxu0 0.0
        %873 = vmatprep.subr.mxu0 0.0
        %874 = vmatpush1.msra.mxu0 0.0
        %875 = vmatprep.subr.mxu0 0.0
        %876 = vmatpush1.msra.mxu0 0.0
        %877 = vmatprep.subr.mxu0 0.0
        %878 = vmatpush1.msra.mxu0 0.0
        %879 = vmatprep.subr.mxu0 0.0
        %880 = vmatpush1.msra.mxu0 0.0
        %881 = vmatprep.subr.mxu0 0.0
        %882 = vmatpush1.msra.mxu0 0.0
        %883 = vmatprep.subr.mxu0 0.0
        %884 = vmatpush1.msra.mxu0 0.0
        %885 = vmatprep.subr.mxu0 0.0
        %886 = vmatpush1.msra.mxu0 0.0
        %887 = vmatprep.subr.mxu0 0.0
        %888 = vmatpush1.msra.mxu0 0.0
        %889 = vmatprep.subr.mxu0 0.0
        %890 = vmatpush1.msra.mxu0 0.0
        %891 = vmatprep.subr.mxu0 0.0
        %892 = vmatpush1.msra.mxu0 0.0
        %893 = vmatprep.subr.mxu0 0.0
        %894 = vmatpush1.msra.mxu0 0.0
        %895 = vmatprep.subr.mxu0 0.0
        %896 = vmatpush1.msra.mxu0 0.0
        %897 = vmatprep.subr.mxu0 0.0
        %898 = vmatpush1.msra.mxu0 0.0
        %899 = vmatprep.subr.mxu0 0.0
        %900 = vmatpush1.msra.mxu0 0.0
        %901 = vmatprep.mubr.f32.mxu0 0.0
        %902 = vmatmul.mubr.f32.gmra.mrb[0].mxu0 %v186
        %v903 = vpop.f32.mrb[0].mxu0
        %v904 = vadd.f32 0.0, %v903
        %v905 = vpop.f32.mrb[0].mxu0
        %906 = vmatprep.mubr.f32.mxu0 0.0
        %907 = vmatmul.mubr.f32.gmra.mrb[0].mxu0 %v189
        %v908 = vpop.f32.mrb[0].mxu0
        %v909 = vadd.f32 0.0, %v908
        %v910 = vpop.f32.mrb[0].mxu0
        %911 = vdwg.mxu0
        %912 = vmatprep.subr.mxu0 0.0
        %913 = vmatpush1.msra.mxu0 %v832
        %914 = vmatprep.subr.mxu0 0.0
        %915 = vmatpush1.msra.mxu0 %v833
        %916 = vmatprep.subr.mxu0 0.0
        %917 = vmatpush1.msra.mxu0 0.0
        %918 = vmatprep.subr.mxu0 0.0
        %919 = vmatpush1.msra.mxu0 0.0
        %920 = vmatprep.subr.mxu0 0.0
        %921 = vmatpush1.msra.mxu0 0.0
        %922 = vmatprep.subr.mxu0 0.0
        %923 = vmatpush1.msra.mxu0 0.0
        %924 = vmatprep.subr.mxu0 0.0
        %925 = vmatpush1.msra.mxu0 0.0
        %926 = vmatprep.subr.mxu0 0.0
        %927 = vmatpush1.msra.mxu0 0.0
        %928 = vmatprep.subr.mxu0 0.0
        %929 = vmatpush1.msra.mxu0 0.0
        %930 = vmatprep.subr.mxu0 0.0
        %931 = vmatpush1.msra.mxu0 0.0
        %932 = vmatprep.subr.mxu0 0.0
        %933 = vmatpush1.msra.mxu0 0.0
        %934 = vmatprep.subr.mxu0 0.0
        %935 = vmatpush1.msra.mxu0 0.0
        %936 = vmatprep.subr.mxu0 0.0
        %937 = vmatpush1.msra.mxu0 0.0
        %938 = vmatprep.subr.mxu0 0.0
        %939 = vmatpush1.msra.mxu0 0.0
        %940 = vmatprep.subr.mxu0 0.0
        %941 = vmatpush1.msra.mxu0 0.0
        %942 = vmatprep.subr.mxu0 0.0
        %943 = vmatpush1.msra.mxu0 0.0
        %944 = vmatprep.subr.mxu0 0.0
        %945 = vmatpush1.msra.mxu0 0.0
        %946 = vmatprep.subr.mxu0 0.0
        %947 = vmatpush1.msra.mxu0 0.0
        %948 = vmatprep.subr.mxu0 0.0
        %949 = vmatpush1.msra.mxu0 0.0
        %950 = vmatprep.subr.mxu0 0.0
        %951 = vmatpush1.msra.mxu0 0.0
        %952 = vmatprep.subr.mxu0 0.0
        %953 = vmatpush1.msra.mxu0 0.0
        %954 = vmatprep.subr.mxu0 0.0
        %955 = vmatpush1.msra.mxu0 0.0
        %956 = vmatprep.subr.mxu0 0.0
        %957 = vmatpush1.msra.mxu0 0.0
        %958 = vmatprep.subr.mxu0 0.0
        %959 = vmatpush1.msra.mxu0 0.0
        %960 = vmatprep.subr.mxu0 0.0
        %961 = vmatpush1.msra.mxu0 0.0
        %962 = vmatprep.subr.mxu0 0.0
        %963 = vmatpush1.msra.mxu0 0.0
        %964 = vmatprep.subr.mxu0 0.0
        %965 = vmatpush1.msra.mxu0 0.0
        %966 = vmatprep.subr.mxu0 0.0
        %967 = vmatpush1.msra.mxu0 0.0
        %968 = vmatprep.subr.mxu0 0.0
        %969 = vmatpush1.msra.mxu0 0.0
        %970 = vmatprep.subr.mxu0 0.0
        %971 = vmatpush1.msra.mxu0 0.0
        %972 = vmatprep.subr.mxu0 0.0
        %973 = vmatpush1.msra.mxu0 0.0
        %974 = vmatprep.subr.mxu0 0.0
        %975 = vmatpush1.msra.mxu0 0.0
        %976 = vmatprep.mubr.f32.mxu0 0.0
        %977 = vmatmul.mubr.f32.gmra.mrb[0].mxu0 %v267
        %v978 = vpop.f32.mrb[0].mxu0
        %v979 = vadd.f32 %v904, %v978
        %v980 = vpop.f32.mrb[0].mxu0
        %981 = vmatprep.mubr.f32.mxu0 0.0
        %982 = vmatmul.mubr.f32.gmra.mrb[0].mxu0 %v270
        %v983 = vpop.f32.mrb[0].mxu0
        %v984 = vadd.f32 %v909, %v983
        %v985 = vpop.f32.mrb[0].mxu0
        %986 = vdwg.mxu0
        %v987 = vmax.f32 %v979, 0.0
        %v988 = vmax.f32 %v984, 0.0
        %v990 = vsel %vm184, %v987, 0
        %v993 = vsel %vm184, %v988, 0
        %995 = vmatprep.subr.mxu0 0.0
        %996 = vmatpush1.msra.mxu0 %v177
        %997 = vmatprep.subr.mxu0 0.0
        %998 = vmatpush1.msra.mxu0 %v178
        %999 = vmatprep.subr.mxu0 0.0
        %1000 = vmatpush1.msra.mxu0 0.0
        %1001 = vmatprep.subr.mxu0 0.0
        %1002 = vmatpush1.msra.mxu0 0.0
        %1003 = vmatprep.subr.mxu0 0.0
        %1004 = vmatpush1.msra.mxu0 0.0
        %1005 = vmatprep.subr.mxu0 0.0
        %1006 = vmatpush1.msra.mxu0 0.0
        %1007 = vmatprep.subr.mxu0 0.0
        %1008 = vmatpush1.msra.mxu0 0.0
        %1009 = vmatprep.subr.mxu0 0.0
        %1010 = vmatpush1.msra.mxu0 0.0
        %1011 = vmatprep.subr.mxu0 0.0
        %1012 = vmatpush1.msra.mxu0 0.0
        %1013 = vmatprep.subr.mxu0 0.0
        %1014 = vmatpush1.msra.mxu0 0.0
        %1015 = vmatprep.subr.mxu0 0.0
        %1016 = vmatpush1.msra.mxu0 0.0
        %1017 = vmatprep.subr.mxu0 0.0
        %1018 = vmatpush1.msra.mxu0 0.0
        %1019 = vmatprep.subr.mxu0 0.0
        %1020 = vmatpush1.msra.mxu0 0.0
        %1021 = vmatprep.subr.mxu0 0.0
        %1022 = vmatpush1.msra.mxu0 0.0
        %1023 = vmatprep.subr.mxu0 0.0
        %1024 = vmatpush1.msra.mxu0 0.0
        %1025 = vmatprep.subr.mxu0 0.0
        %1026 = vmatpush1.msra.mxu0 0.0
        %1027 = vmatprep.subr.mxu0 0.0
        %1028 = vmatpush1.msra.mxu0 0.0
        %1029 = vmatprep.subr.mxu0 0.0
        %1030 = vmatpush1.msra.mxu0 0.0
        %1031 = vmatprep.subr.mxu0 0.0
        %1032 = vmatpush1.msra.mxu0 0.0
        %1033 = vmatprep.subr.mxu0 0.0
        %1034 = vmatpush1.msra.mxu0 0.0
        %1035 = vmatprep.subr.mxu0 0.0
        %1036 = vmatpush1.msra.mxu0 0.0
        %1037 = vmatprep.subr.mxu0 0.0
        %1038 = vmatpush1.msra.mxu0 0.0
        %1039 = vmatprep.subr.mxu0 0.0
        %1040 = vmatpush1.msra.mxu0 0.0
        %1041 = vmatprep.subr.mxu0 0.0
        %1042 = vmatpush1.msra.mxu0 0.0
        %1043 = vmatprep.subr.mxu0 0.0
        %1044 = vmatpush1.msra.mxu0 0.0
        %1045 = vmatprep.subr.mxu0 0.0
        %1046 = vmatpush1.msra.mxu0 0.0
        %1047 = vmatprep.subr.mxu0 0.0
        %1048 = vmatpush1.msra.mxu0 0.0
        %1049 = vmatprep.subr.mxu0 0.0
        %1050 = vmatpush1.msra.mxu0 0.0
        %1051 = vmatprep.subr.mxu0 0.0
        %1052 = vmatpush1.msra.mxu0 0.0
        %1053 = vmatprep.subr.mxu0 0.0
        %1054 = vmatpush1.msra.mxu0 0.0
        %1055 = vmatprep.subr.mxu0 0.0
        %1056 = vmatpush1.msra.mxu0 0.0
        %1057 = vmatprep.subr.mxu0 0.0
        %1058 = vmatpush1.msra.mxu0 0.0
        %1059 = vmatprep.mubr.f32.mxu0 0.0
        %1060 = vmatmul.mubr.f32.gmra.mrb[0].mxu0 %v990
        %v1061 = vpop.f32.mrb[0].mxu0
        %v1062 = vadd.f32 0.0, %v1061
        %v1063 = vpop.f32.mrb[0].mxu0
        %1064 = vmatprep.mubr.f32.mxu0 0.0
        %1065 = vmatmul.mubr.f32.gmra.mrb[0].mxu0 %v993
        %v1066 = vpop.f32.mrb[0].mxu0
        %v1067 = vadd.f32 0.0, %v1066
        %v1068 = vpop.f32.mrb[0].mxu0
        %1069 = vdwg.mxu0
        %v1071 = vsel %vm184, %v829, 0
        %v1074 = vsel %vm184, %v830, 0
        %1076 = vmatprep.subr.mxu0 0.0
        %1077 = vmatpush1.msra.mxu0 %v174
        %1078 = vmatprep.subr.mxu0 0.0
        %1079 = vmatpush1.msra.mxu0 %v175
        %1080 = vmatprep.subr.mxu0 0.0
        %1081 = vmatpush1.msra.mxu0 0.0
        %1082 = vmatprep.subr.mxu0 0.0
        %1083 = vmatpush1.msra.mxu0 0.0
        %1084 = vmatprep.subr.mxu0 0.0
        %1085 = vmatpush1.msra.mxu0 0.0
        %1086 = vmatprep.subr.mxu0 0.0
        %1087 = vmatpush1.msra.mxu0 0.0
        %1088 = vmatprep.subr.mxu0 0.0
        %1089 = vmatpush1.msra.mxu0 0.0
        %1090 = vmatprep.subr.mxu0 0.0
        %1091 = vmatpush1.msra.mxu0 0.0
        %1092 = vmatprep.subr.mxu0 0.0
        %1093 = vmatpush1.msra.mxu0 0.0
        %1094 = vmatprep.subr.mxu0 0.0
        %1095 = vmatpush1.msra.mxu0 0.0
        %1096 = vmatprep.subr.mxu0 0.0
        %1097 = vmatpush1.msra.mxu0 0.0
        %1098 = vmatprep.subr.mxu0 0.0
        %1099 = vmatpush1.msra.mxu0 0.0
        %1100 = vmatprep.subr.mxu0 0.0
        %1101 = vmatpush1.msra.mxu0 0.0
        %1102 = vmatprep.subr.mxu0 0.0
        %1103 = vmatpush1.msra.mxu0 0.0
        %1104 = vmatprep.subr.mxu0 0.0
        %1105 = vmatpush1.msra.mxu0 0.0
        %1106 = vmatprep.subr.mxu0 0.0
        %1107 = vmatpush1.msra.mxu0 0.0
        %1108 = vmatprep.subr.mxu0 0.0
        %1109 = vmatpush1.msra.mxu0 0.0
        %1110 = vmatprep.subr.mxu0 0.0
        %1111 = vmatpush1.msra.mxu0 0.0
        %1112 = vmatprep.subr.mxu0 0.0
        %1113 = vmatpush1.msra.mxu0 0.0
        %1114 = vmatprep.subr.mxu0 0.0
        %1115 = vmatpush1.msra.mxu0 0.0
        %1116 = vmatprep.subr.mxu0 0.0
        %1117 = vmatpush1.msra.mxu0 0.0
        %1118 = vmatprep.subr.mxu0 0.0
        %1119 = vmatpush1.msra.mxu0 0.0
        %1120 = vmatprep.subr.mxu0 0.0
        %1121 = vmatpush1.msra.mxu0 0.0
        %1122 = vmatprep.subr.mxu0 0.0
        %1123 = vmatpush1.msra.mxu0 0.0
        %1124 = vmatprep.subr.mxu0 0.0
        %1125 = vmatpush1.msra.mxu0 0.0
        %1126 = vmatprep.subr.mxu0 0.0
        %1127 = vmatpush1.msra.mxu0 0.0
        %1128 = vmatprep.subr.mxu0 0.0
        %1129 = vmatpush1.msra.mxu0 0.0
        %1130 = vmatprep.subr.mxu0 0.0
        %1131 = vmatpush1.msra.mxu0 0.0
        %1132 = vmatprep.subr.mxu0 0.0
        %1133 = vmatpush1.msra.mxu0 0.0
        %1134 = vmatprep.subr.mxu0 0.0
        %1135 = vmatpush1.msra.mxu0 0.0
        %1136 = vmatprep.subr.mxu0 0.0
        %1137 = vmatpush1.msra.mxu0 0.0
        %1138 = vmatprep.subr.mxu0 0.0
        %1139 = vmatpush1.msra.mxu0 0.0
        %1140 = vmatprep.mubr.f32.mxu0 0.0
        %1141 = vmatmul.mubr.f32.gmra.mrb[0].mxu0 %v1071
        %v1142 = vpop.f32.mrb[0].mxu0
        %v1143 = vadd.f32 %v1062, %v1142
        %v1144 = vpop.f32.mrb[0].mxu0
        %1145 = vmatprep.mubr.f32.mxu0 0.0
        %1146 = vmatmul.mubr.f32.gmra.mrb[0].mxu0 %v1074
        %v1147 = vpop.f32.mrb[0].mxu0
        %v1148 = vadd.f32 %v1067, %v1147
        %v1149 = vpop.f32.mrb[0].mxu0
        %1150 = vdwg.mxu0
        %v1151 = vmax.f32 %v1143, 0.0
        %v1152 = vmax.f32 %v1148, 0.0
        %s1153 = scalar_lea.vmem %s163, 16 [#allocation2]
        %1154 = vst.msk [vmem:[%s1153] sm:$0xff] %vm184, %v1151
        %1155 = vst.msk [vmem:[%s1153 + $0x8] sm:$0xff] %vm184, %v1152
        %s1156 = scalar_lea.vmem %s168, 32
        %v1157 = vld [vmem:[%s1156] sm:$0xff]
        %v1158 = vld [vmem:[%s1156 + $0x8] sm:$0xff]
        %s1159 = scalar_lea.vmem %s168, 160
        %v1160 = vld [vmem:[%s1159] sm:$0xff]
        %v1161 = vld [vmem:[%s1159 + $0x8] sm:$0xff]
        %1162 = vmatprep.subr.mxu0 0.0
        %1163 = vmatpush1.msra.mxu0 %v1160
        %1164 = vmatprep.subr.mxu0 0.0
        %1165 = vmatpush1.msra.mxu0 %v1161
        %1166 = vmatprep.subr.mxu0 0.0
        %1167 = vmatpush1.msra.mxu0 0.0
        %1168 = vmatprep.subr.mxu0 0.0
        %1169 = vmatpush1.msra.mxu0 0.0
        %1170 = vmatprep.subr.mxu0 0.0
        %1171 = vmatpush1.msra.mxu0 0.0
        %1172 = vmatprep.subr.mxu0 0.0
        %1173 = vmatpush1.msra.mxu0 0.0
        %1174 = vmatprep.subr.mxu0 0.0
        %1175 = vmatpush1.msra.mxu0 0.0
        %1176 = vmatprep.subr.mxu0 0.0
        %1177 = vmatpush1.msra.mxu0 0.0
        %1178 = vmatprep.subr.mxu0 0.0
        %1179 = vmatpush1.msra.mxu0 0.0
        %1180 = vmatprep.subr.mxu0 0.0
        %1181 = vmatpush1.msra.mxu0 0.0
        %1182 = vmatprep.subr.mxu0 0.0
        %1183 = vmatpush1.msra.mxu0 0.0
        %1184 = vmatprep.subr.mxu0 0.0
        %1185 = vmatpush1.msra.mxu0 0.0
        %1186 = vmatprep.subr.mxu0 0.0
        %1187 = vmatpush1.msra.mxu0 0.0
        %1188 = vmatprep.subr.mxu0 0.0
        %1189 = vmatpush1.msra.mxu0 0.0
        %1190 = vmatprep.subr.mxu0 0.0
        %1191 = vmatpush1.msra.mxu0 0.0
        %1192 = vmatprep.subr.mxu0 0.0
        %1193 = vmatpush1.msra.mxu0 0.0
        %1194 = vmatprep.subr.mxu0 0.0
        %1195 = vmatpush1.msra.mxu0 0.0
        %1196 = vmatprep.subr.mxu0 0.0
        %1197 = vmatpush1.msra.mxu0 0.0
        %1198 = vmatprep.subr.mxu0 0.0
        %1199 = vmatpush1.msra.mxu0 0.0
        %1200 = vmatprep.subr.mxu0 0.0
        %1201 = vmatpush1.msra.mxu0 0.0
        %1202 = vmatprep.subr.mxu0 0.0
        %1203 = vmatpush1.msra.mxu0 0.0
        %1204 = vmatprep.subr.mxu0 0.0
        %1205 = vmatpush1.msra.mxu0 0.0
        %1206 = vmatprep.subr.mxu0 0.0
        %1207 = vmatpush1.msra.mxu0 0.0
        %1208 = vmatprep.subr.mxu0 0.0
        %1209 = vmatpush1.msra.mxu0 0.0
        %1210 = vmatprep.subr.mxu0 0.0
        %1211 = vmatpush1.msra.mxu0 0.0
        %1212 = vmatprep.subr.mxu0 0.0
        %1213 = vmatpush1.msra.mxu0 0.0
        %1214 = vmatprep.subr.mxu0 0.0
        %1215 = vmatpush1.msra.mxu0 0.0
        %1216 = vmatprep.subr.mxu0 0.0
        %1217 = vmatpush1.msra.mxu0 0.0
        %1218 = vmatprep.subr.mxu0 0.0
        %1219 = vmatpush1.msra.mxu0 0.0
        %1220 = vmatprep.subr.mxu0 0.0
        %1221 = vmatpush1.msra.mxu0 0.0
        %1222 = vmatprep.subr.mxu0 0.0
        %1223 = vmatpush1.msra.mxu0 0.0
        %1224 = vmatprep.subr.mxu0 0.0
        %1225 = vmatpush1.msra.mxu0 0.0
        %1226 = vmatprep.mubr.f32.mxu0 0.0
        %1227 = vmatmul.mubr.f32.gmra.mrb[0].mxu0 %v186
        %v1228 = vpop.f32.mrb[0].mxu0
        %v1229 = vadd.f32 0.0, %v1228
        %v1230 = vpop.f32.mrb[0].mxu0
        %1231 = vmatprep.mubr.f32.mxu0 0.0
        %1232 = vmatmul.mubr.f32.gmra.mrb[0].mxu0 %v189
        %v1233 = vpop.f32.mrb[0].mxu0
        %v1234 = vadd.f32 0.0, %v1233
        %v1235 = vpop.f32.mrb[0].mxu0
        %1236 = vdwg.mxu0
        %1237 = vmatprep.subr.mxu0 0.0
        %1238 = vmatpush1.msra.mxu0 %v1157
        %1239 = vmatprep.subr.mxu0 0.0
        %1240 = vmatpush1.msra.mxu0 %v1158
        %1241 = vmatprep.subr.mxu0 0.0
        %1242 = vmatpush1.msra.mxu0 0.0
        %1243 = vmatprep.subr.mxu0 0.0
        %1244 = vmatpush1.msra.mxu0 0.0
        %1245 = vmatprep.subr.mxu0 0.0
        %1246 = vmatpush1.msra.mxu0 0.0
        %1247 = vmatprep.subr.mxu0 0.0
        %1248 = vmatpush1.msra.mxu0 0.0
        %1249 = vmatprep.subr.mxu0 0.0
        %1250 = vmatpush1.msra.mxu0 0.0
        %1251 = vmatprep.subr.mxu0 0.0
        %1252 = vmatpush1.msra.mxu0 0.0
        %1253 = vmatprep.subr.mxu0 0.0
        %1254 = vmatpush1.msra.mxu0 0.0
        %1255 = vmatprep.subr.mxu0 0.0
        %1256 = vmatpush1.msra.mxu0 0.0
        %1257 = vmatprep.subr.mxu0 0.0
        %1258 = vmatpush1.msra.mxu0 0.0
        %1259 = vmatprep.subr.mxu0 0.0
        %1260 = vmatpush1.msra.mxu0 0.0
        %1261 = vmatprep.subr.mxu0 0.0
        %1262 = vmatpush1.msra.mxu0 0.0
        %1263 = vmatprep.subr.mxu0 0.0
        %1264 = vmatpush1.msra.mxu0 0.0
        %1265 = vmatprep.subr.mxu0 0.0
        %1266 = vmatpush1.msra.mxu0 0.0
        %1267 = vmatprep.subr.mxu0 0.0
        %1268 = vmatpush1.msra.mxu0 0.0
        %1269 = vmatprep.subr.mxu0 0.0
        %1270 = vmatpush1.msra.mxu0 0.0
        %1271 = vmatprep.subr.mxu0 0.0
        %1272 = vmatpush1.msra.mxu0 0.0
        %1273 = vmatprep.subr.mxu0 0.0
        %1274 = vmatpush1.msra.mxu0 0.0
        %1275 = vmatprep.subr.mxu0 0.0
        %1276 = vmatpush1.msra.mxu0 0.0
        %1277 = vmatprep.subr.mxu0 0.0
        %1278 = vmatpush1.msra.mxu0 0.0
        %1279 = vmatprep.subr.mxu0 0.0
        %1280 = vmatpush1.msra.mxu0 0.0
        %1281 = vmatprep.subr.mxu0 0.0
        %1282 = vmatpush1.msra.mxu0 0.0
        %1283 = vmatprep.subr.mxu0 0.0
        %1284 = vmatpush1.msra.mxu0 0.0
        %1285 = vmatprep.subr.mxu0 0.0
        %1286 = vmatpush1.msra.mxu0 0.0
        %1287 = vmatprep.subr.mxu0 0.0
        %1288 = vmatpush1.msra.mxu0 0.0
        %1289 = vmatprep.subr.mxu0 0.0
        %1290 = vmatpush1.msra.mxu0 0.0
        %1291 = vmatprep.subr.mxu0 0.0
        %1292 = vmatpush1.msra.mxu0 0.0
        %1293 = vmatprep.subr.mxu0 0.0
        %1294 = vmatpush1.msra.mxu0 0.0
        %1295 = vmatprep.subr.mxu0 0.0
        %1296 = vmatpush1.msra.mxu0 0.0
        %1297 = vmatprep.subr.mxu0 0.0
        %1298 = vmatpush1.msra.mxu0 0.0
        %1299 = vmatprep.subr.mxu0 0.0
        %1300 = vmatpush1.msra.mxu0 0.0
        %1301 = vmatprep.mubr.f32.mxu0 0.0
        %1302 = vmatmul.mubr.f32.gmra.mrb[0].mxu0 %v267
        %v1303 = vpop.f32.mrb[0].mxu0
        %v1304 = vadd.f32 %v1229, %v1303
        %v1305 = vpop.f32.mrb[0].mxu0
        %1306 = vmatprep.mubr.f32.mxu0 0.0
        %1307 = vmatmul.mubr.f32.gmra.mrb[0].mxu0 %v270
        %v1308 = vpop.f32.mrb[0].mxu0
        %v1309 = vadd.f32 %v1234, %v1308
        %v1310 = vpop.f32.mrb[0].mxu0
        %1311 = vdwg.mxu0
        %v1312 = vmax.f32 %v1304, 0.0
        %v1313 = vmax.f32 %v1309, 0.0
        %s1314 = scalar_lea.vmem %s168, 96
        %v1315 = vld [vmem:[%s1314] sm:$0xff]
        %v1316 = vld [vmem:[%s1314 + $0x8] sm:$0xff]
        %s1317 = scalar_lea.vmem %s168, 224
        %v1318 = vld [vmem:[%s1317] sm:$0xff]
        %v1319 = vld [vmem:[%s1317 + $0x8] sm:$0xff]
        %1320 = vmatprep.subr.mxu0 0.0
        %1321 = vmatpush1.msra.mxu0 %v1318
        %1322 = vmatprep.subr.mxu0 0.0
        %1323 = vmatpush1.msra.mxu0 %v1319
        %1324 = vmatprep.subr.mxu0 0.0
        %1325 = vmatpush1.msra.mxu0 0.0
        %1326 = vmatprep.subr.mxu0 0.0
        %1327 = vmatpush1.msra.mxu0 0.0
        %1328 = vmatprep.subr.mxu0 0.0
        %1329 = vmatpush1.msra.mxu0 0.0
        %1330 = vmatprep.subr.mxu0 0.0
        %1331 = vmatpush1.msra.mxu0 0.0
        %1332 = vmatprep.subr.mxu0 0.0
        %1333 = vmatpush1.msra.mxu0 0.0
        %1334 = vmatprep.subr.mxu0 0.0
        %1335 = vmatpush1.msra.mxu0 0.0
        %1336 = vmatprep.subr.mxu0 0.0
        %1337 = vmatpush1.msra.mxu0 0.0
        %1338 = vmatprep.subr.mxu0 0.0
        %1339 = vmatpush1.msra.mxu0 0.0
        %1340 = vmatprep.subr.mxu0 0.0
        %1341 = vmatpush1.msra.mxu0 0.0
        %1342 = vmatprep.subr.mxu0 0.0
        %1343 = vmatpush1.msra.mxu0 0.0
        %1344 = vmatprep.subr.mxu0 0.0
        %1345 = vmatpush1.msra.mxu0 0.0
        %1346 = vmatprep.subr.mxu0 0.0
        %1347 = vmatpush1.msra.mxu0 0.0
        %1348 = vmatprep.subr.mxu0 0.0
        %1349 = vmatpush1.msra.mxu0 0.0
        %1350 = vmatprep.subr.mxu0 0.0
        %1351 = vmatpush1.msra.mxu0 0.0
        %1352 = vmatprep.subr.mxu0 0.0
        %1353 = vmatpush1.msra.mxu0 0.0
        %1354 = vmatprep.subr.mxu0 0.0
        %1355 = vmatpush1.msra.mxu0 0.0
        %1356 = vmatprep.subr.mxu0 0.0
        %1357 = vmatpush1.msra.mxu0 0.0
        %1358 = vmatprep.subr.mxu0 0.0
        %1359 = vmatpush1.msra.mxu0 0.0
        %1360 = vmatprep.subr.mxu0 0.0
        %1361 = vmatpush1.msra.mxu0 0.0
        %1362 = vmatprep.subr.mxu0 0.0
        %1363 = vmatpush1.msra.mxu0 0.0
        %1364 = vmatprep.subr.mxu0 0.0
        %1365 = vmatpush1.msra.mxu0 0.0
        %1366 = vmatprep.subr.mxu0 0.0
        %1367 = vmatpush1.msra.mxu0 0.0
        %1368 = vmatprep.subr.mxu0 0.0
        %1369 = vmatpush1.msra.mxu0 0.0
        %1370 = vmatprep.subr.mxu0 0.0
        %1371 = vmatpush1.msra.mxu0 0.0
        %1372 = vmatprep.subr.mxu0 0.0
        %1373 = vmatpush1.msra.mxu0 0.0
        %1374 = vmatprep.subr.mxu0 0.0
        %1375 = vmatpush1.msra.mxu0 0.0
        %1376 = vmatprep.subr.mxu0 0.0
        %1377 = vmatpush1.msra.mxu0 0.0
        %1378 = vmatprep.subr.mxu0 0.0
        %1379 = vmatpush1.msra.mxu0 0.0
        %1380 = vmatprep.subr.mxu0 0.0
        %1381 = vmatpush1.msra.mxu0 0.0
        %1382 = vmatprep.subr.mxu0 0.0
        %1383 = vmatpush1.msra.mxu0 0.0
        %1384 = vmatprep.mubr.f32.mxu0 0.0
        %1385 = vmatmul.mubr.f32.gmra.mrb[0].mxu0 %v186
        %v1386 = vpop.f32.mrb[0].mxu0
        %v1387 = vadd.f32 0.0, %v1386
        %v1388 = vpop.f32.mrb[0].mxu0
        %1389 = vmatprep.mubr.f32.mxu0 0.0
        %1390 = vmatmul.mubr.f32.gmra.mrb[0].mxu0 %v189
        %v1391 = vpop.f32.mrb[0].mxu0
        %v1392 = vadd.f32 0.0, %v1391
        %v1393 = vpop.f32.mrb[0].mxu0
        %1394 = vdwg.mxu0
        %1395 = vmatprep.subr.mxu0 0.0
        %1396 = vmatpush1.msra.mxu0 %v1315
        %1397 = vmatprep.subr.mxu0 0.0
        %1398 = vmatpush1.msra.mxu0 %v1316
        %1399 = vmatprep.subr.mxu0 0.0
        %1400 = vmatpush1.msra.mxu0 0.0
        %1401 = vmatprep.subr.mxu0 0.0
        %1402 = vmatpush1.msra.mxu0 0.0
        %1403 = vmatprep.subr.mxu0 0.0
        %1404 = vmatpush1.msra.mxu0 0.0
        %1405 = vmatprep.subr.mxu0 0.0
        %1406 = vmatpush1.msra.mxu0 0.0
        %1407 = vmatprep.subr.mxu0 0.0
        %1408 = vmatpush1.msra.mxu0 0.0
        %1409 = vmatprep.subr.mxu0 0.0
        %1410 = vmatpush1.msra.mxu0 0.0
        %1411 = vmatprep.subr.mxu0 0.0
        %1412 = vmatpush1.msra.mxu0 0.0
        %1413 = vmatprep.subr.mxu0 0.0
        %1414 = vmatpush1.msra.mxu0 0.0
        %1415 = vmatprep.subr.mxu0 0.0
        %1416 = vmatpush1.msra.mxu0 0.0
        %1417 = vmatprep.subr.mxu0 0.0
        %1418 = vmatpush1.msra.mxu0 0.0
        %1419 = vmatprep.subr.mxu0 0.0
        %1420 = vmatpush1.msra.mxu0 0.0
        %1421 = vmatprep.subr.mxu0 0.0
        %1422 = vmatpush1.msra.mxu0 0.0
        %1423 = vmatprep.subr.mxu0 0.0
        %1424 = vmatpush1.msra.mxu0 0.0
        %1425 = vmatprep.subr.mxu0 0.0
        %1426 = vmatpush1.msra.mxu0 0.0
        %1427 = vmatprep.subr.mxu0 0.0
        %1428 = vmatpush1.msra.mxu0 0.0
        %1429 = vmatprep.subr.mxu0 0.0
        %1430 = vmatpush1.msra.mxu0 0.0
        %1431 = vmatprep.subr.mxu0 0.0
        %1432 = vmatpush1.msra.mxu0 0.0
        %1433 = vmatprep.subr.mxu0 0.0
        %1434 = vmatpush1.msra.mxu0 0.0
        %1435 = vmatprep.subr.mxu0 0.0
        %1436 = vmatpush1.msra.mxu0 0.0
        %1437 = vmatprep.subr.mxu0 0.0
        %1438 = vmatpush1.msra.mxu0 0.0
        %1439 = vmatprep.subr.mxu0 0.0
        %1440 = vmatpush1.msra.mxu0 0.0
        %1441 = vmatprep.subr.mxu0 0.0
        %1442 = vmatpush1.msra.mxu0 0.0
        %1443 = vmatprep.subr.mxu0 0.0
        %1444 = vmatpush1.msra.mxu0 0.0
        %1445 = vmatprep.subr.mxu0 0.0
        %1446 = vmatpush1.msra.mxu0 0.0
        %1447 = vmatprep.subr.mxu0 0.0
        %1448 = vmatpush1.msra.mxu0 0.0
        %1449 = vmatprep.subr.mxu0 0.0
        %1450 = vmatpush1.msra.mxu0 0.0
        %1451 = vmatprep.subr.mxu0 0.0
        %1452 = vmatpush1.msra.mxu0 0.0
        %1453 = vmatprep.subr.mxu0 0.0
        %1454 = vmatpush1.msra.mxu0 0.0
        %1455 = vmatprep.subr.mxu0 0.0
        %1456 = vmatpush1.msra.mxu0 0.0
        %1457 = vmatprep.subr.mxu0 0.0
        %1458 = vmatpush1.msra.mxu0 0.0
        %1459 = vmatprep.mubr.f32.mxu0 0.0
        %1460 = vmatmul.mubr.f32.gmra.mrb[0].mxu0 %v267
        %v1461 = vpop.f32.mrb[0].mxu0
        %v1462 = vadd.f32 %v1387, %v1461
        %v1463 = vpop.f32.mrb[0].mxu0
        %1464 = vmatprep.mubr.f32.mxu0 0.0
        %1465 = vmatmul.mubr.f32.gmra.mrb[0].mxu0 %v270
        %v1466 = vpop.f32.mrb[0].mxu0
        %v1467 = vadd.f32 %v1392, %v1466
        %v1468 = vpop.f32.mrb[0].mxu0
        %1469 = vdwg.mxu0
        %v1470 = vmax.f32 %v1462, 0.0
        %v1471 = vmax.f32 %v1467, 0.0
        %v1473 = vsel %vm184, %v1470, 0
        %v1476 = vsel %vm184, %v1471, 0
        %1478 = vmatprep.subr.mxu0 0.0
        %1479 = vmatpush1.msra.mxu0 %v177
        %1480 = vmatprep.subr.mxu0 0.0
        %1481 = vmatpush1.msra.mxu0 %v178
        %1482 = vmatprep.subr.mxu0 0.0
        %1483 = vmatpush1.msra.mxu0 0.0
        %1484 = vmatprep.subr.mxu0 0.0
        %1485 = vmatpush1.msra.mxu0 0.0
        %1486 = vmatprep.subr.mxu0 0.0
        %1487 = vmatpush1.msra.mxu0 0.0
        %1488 = vmatprep.subr.mxu0 0.0
        %1489 = vmatpush1.msra.mxu0 0.0
        %1490 = vmatprep.subr.mxu0 0.0
        %1491 = vmatpush1.msra.mxu0 0.0
        %1492 = vmatprep.subr.mxu0 0.0
        %1493 = vmatpush1.msra.mxu0 0.0
        %1494 = vmatprep.subr.mxu0 0.0
        %1495 = vmatpush1.msra.mxu0 0.0
        %1496 = vmatprep.subr.mxu0 0.0
        %1497 = vmatpush1.msra.mxu0 0.0
        %1498 = vmatprep.subr.mxu0 0.0
        %1499 = vmatpush1.msra.mxu0 0.0
        %1500 = vmatprep.subr.mxu0 0.0
        %1501 = vmatpush1.msra.mxu0 0.0
        %1502 = vmatprep.subr.mxu0 0.0
        %1503 = vmatpush1.msra.mxu0 0.0
        %1504 = vmatprep.subr.mxu0 0.0
        %1505 = vmatpush1.msra.mxu0 0.0
        %1506 = vmatprep.subr.mxu0 0.0
        %1507 = vmatpush1.msra.mxu0 0.0
        %1508 = vmatprep.subr.mxu0 0.0
        %1509 = vmatpush1.msra.mxu0 0.0
        %1510 = vmatprep.subr.mxu0 0.0
        %1511 = vmatpush1.msra.mxu0 0.0
        %1512 = vmatprep.subr.mxu0 0.0
        %1513 = vmatpush1.msra.mxu0 0.0
        %1514 = vmatprep.subr.mxu0 0.0
        %1515 = vmatpush1.msra.mxu0 0.0
        %1516 = vmatprep.subr.mxu0 0.0
        %1517 = vmatpush1.msra.mxu0 0.0
        %1518 = vmatprep.subr.mxu0 0.0
        %1519 = vmatpush1.msra.mxu0 0.0
        %1520 = vmatprep.subr.mxu0 0.0
        %1521 = vmatpush1.msra.mxu0 0.0
        %1522 = vmatprep.subr.mxu0 0.0
        %1523 = vmatpush1.msra.mxu0 0.0
        %1524 = vmatprep.subr.mxu0 0.0
        %1525 = vmatpush1.msra.mxu0 0.0
        %1526 = vmatprep.subr.mxu0 0.0
        %1527 = vmatpush1.msra.mxu0 0.0
        %1528 = vmatprep.subr.mxu0 0.0
        %1529 = vmatpush1.msra.mxu0 0.0
        %1530 = vmatprep.subr.mxu0 0.0
        %1531 = vmatpush1.msra.mxu0 0.0
        %1532 = vmatprep.subr.mxu0 0.0
        %1533 = vmatpush1.msra.mxu0 0.0
        %1534 = vmatprep.subr.mxu0 0.0
        %1535 = vmatpush1.msra.mxu0 0.0
        %1536 = vmatprep.subr.mxu0 0.0
        %1537 = vmatpush1.msra.mxu0 0.0
        %1538 = vmatprep.subr.mxu0 0.0
        %1539 = vmatpush1.msra.mxu0 0.0
        %1540 = vmatprep.subr.mxu0 0.0
        %1541 = vmatpush1.msra.mxu0 0.0
        %1542 = vmatprep.mubr.f32.mxu0 0.0
        %1543 = vmatmul.mubr.f32.gmra.mrb[0].mxu0 %v1473
        %v1544 = vpop.f32.mrb[0].mxu0
        %v1545 = vadd.f32 0.0, %v1544
        %v1546 = vpop.f32.mrb[0].mxu0
        %1547 = vmatprep.mubr.f32.mxu0 0.0
        %1548 = vmatmul.mubr.f32.gmra.mrb[0].mxu0 %v1476
        %v1549 = vpop.f32.mrb[0].mxu0
        %v1550 = vadd.f32 0.0, %v1549
        %v1551 = vpop.f32.mrb[0].mxu0
        %1552 = vdwg.mxu0
        %v1554 = vsel %vm184, %v1312, 0
        %v1557 = vsel %vm184, %v1313, 0
        %1559 = vmatprep.subr.mxu0 0.0
        %1560 = vmatpush1.msra.mxu0 %v174
        %1561 = vmatprep.subr.mxu0 0.0
        %1562 = vmatpush1.msra.mxu0 %v175
        %1563 = vmatprep.subr.mxu0 0.0
        %1564 = vmatpush1.msra.mxu0 0.0
        %1565 = vmatprep.subr.mxu0 0.0
        %1566 = vmatpush1.msra.mxu0 0.0
        %1567 = vmatprep.subr.mxu0 0.0
        %1568 = vmatpush1.msra.mxu0 0.0
        %1569 = vmatprep.subr.mxu0 0.0
        %1570 = vmatpush1.msra.mxu0 0.0
        %1571 = vmatprep.subr.mxu0 0.0
        %1572 = vmatpush1.msra.mxu0 0.0
        %1573 = vmatprep.subr.mxu0 0.0
        %1574 = vmatpush1.msra.mxu0 0.0
        %1575 = vmatprep.subr.mxu0 0.0
        %1576 = vmatpush1.msra.mxu0 0.0
        %1577 = vmatprep.subr.mxu0 0.0
        %1578 = vmatpush1.msra.mxu0 0.0
        %1579 = vmatprep.subr.mxu0 0.0
        %1580 = vmatpush1.msra.mxu0 0.0
        %1581 = vmatprep.subr.mxu0 0.0
        %1582 = vmatpush1.msra.mxu0 0.0
        %1583 = vmatprep.subr.mxu0 0.0
        %1584 = vmatpush1.msra.mxu0 0.0
        %1585 = vmatprep.subr.mxu0 0.0
        %1586 = vmatpush1.msra.mxu0 0.0
        %1587 = vmatprep.subr.mxu0 0.0
        %1588 = vmatpush1.msra.mxu0 0.0
        %1589 = vmatprep.subr.mxu0 0.0
        %1590 = vmatpush1.msra.mxu0 0.0
        %1591 = vmatprep.subr.mxu0 0.0
        %1592 = vmatpush1.msra.mxu0 0.0
        %1593 = vmatprep.subr.mxu0 0.0
        %1594 = vmatpush1.msra.mxu0 0.0
        %1595 = vmatprep.subr.mxu0 0.0
        %1596 = vmatpush1.msra.mxu0 0.0
        %1597 = vmatprep.subr.mxu0 0.0
        %1598 = vmatpush1.msra.mxu0 0.0
        %1599 = vmatprep.subr.mxu0 0.0
        %1600 = vmatpush1.msra.mxu0 0.0
        %1601 = vmatprep.subr.mxu0 0.0
        %1602 = vmatpush1.msra.mxu0 0.0
        %1603 = vmatprep.subr.mxu0 0.0
        %1604 = vmatpush1.msra.mxu0 0.0
        %1605 = vmatprep.subr.mxu0 0.0
        %1606 = vmatpush1.msra.mxu0 0.0
        %1607 = vmatprep.subr.mxu0 0.0
        %1608 = vmatpush1.msra.mxu0 0.0
        %1609 = vmatprep.subr.mxu0 0.0
        %1610 = vmatpush1.msra.mxu0 0.0
        %1611 = vmatprep.subr.mxu0 0.0
        %1612 = vmatpush1.msra.mxu0 0.0
        %1613 = vmatprep.subr.mxu0 0.0
        %1614 = vmatpush1.msra.mxu0 0.0
        %1615 = vmatprep.subr.mxu0 0.0
        %1616 = vmatpush1.msra.mxu0 0.0
        %1617 = vmatprep.subr.mxu0 0.0
        %1618 = vmatpush1.msra.mxu0 0.0
        %1619 = vmatprep.subr.mxu0 0.0
        %1620 = vmatpush1.msra.mxu0 0.0
        %1621 = vmatprep.subr.mxu0 0.0
        %1622 = vmatpush1.msra.mxu0 0.0
        %1623 = vmatprep.mubr.f32.mxu0 0.0
        %1624 = vmatmul.mubr.f32.gmra.mrb[0].mxu0 %v1554
        %v1625 = vpop.f32.mrb[0].mxu0
        %v1626 = vadd.f32 %v1545, %v1625
        %v1627 = vpop.f32.mrb[0].mxu0
        %1628 = vmatprep.mubr.f32.mxu0 0.0
        %1629 = vmatmul.mubr.f32.gmra.mrb[0].mxu0 %v1557
        %v1630 = vpop.f32.mrb[0].mxu0
        %v1631 = vadd.f32 %v1550, %v1630
        %v1632 = vpop.f32.mrb[0].mxu0
        %1633 = vdwg.mxu0
        %v1634 = vmax.f32 %v1626, 0.0
        %v1635 = vmax.f32 %v1631, 0.0
        %s1636 = scalar_lea.vmem %s163, 32 [#allocation2]
        %1637 = vst.msk [vmem:[%s1636] sm:$0xff] %vm184, %v1634
        %1638 = vst.msk [vmem:[%s1636 + $0x8] sm:$0xff] %vm184, %v1635
        %s1639 = scalar_lea.vmem %s168, 48
        %v1640 = vld [vmem:[%s1639] sm:$0xff]
        %v1641 = vld [vmem:[%s1639 + $0x8] sm:$0xff]
        %s1642 = scalar_lea.vmem %s168, 176
        %v1643 = vld [vmem:[%s1642] sm:$0xff]
        %v1644 = vld [vmem:[%s1642 + $0x8] sm:$0xff]
        %1645 = vmatprep.subr.mxu0 0.0
        %1646 = vmatpush1.msra.mxu0 %v1643
        %1647 = vmatprep.subr.mxu0 0.0
        %1648 = vmatpush1.msra.mxu0 %v1644
        %1649 = vmatprep.subr.mxu0 0.0
        %1650 = vmatpush1.msra.mxu0 0.0
        %1651 = vmatprep.subr.mxu0 0.0
        %1652 = vmatpush1.msra.mxu0 0.0
        %1653 = vmatprep.subr.mxu0 0.0
        %1654 = vmatpush1.msra.mxu0 0.0
        %1655 = vmatprep.subr.mxu0 0.0
        %1656 = vmatpush1.msra.mxu0 0.0
        %1657 = vmatprep.subr.mxu0 0.0
        %1658 = vmatpush1.msra.mxu0 0.0
        %1659 = vmatprep.subr.mxu0 0.0
        %1660 = vmatpush1.msra.mxu0 0.0
        %1661 = vmatprep.subr.mxu0 0.0
        %1662 = vmatpush1.msra.mxu0 0.0
        %1663 = vmatprep.subr.mxu0 0.0
        %1664 = vmatpush1.msra.mxu0 0.0
        %1665 = vmatprep.subr.mxu0 0.0
        %1666 = vmatpush1.msra.mxu0 0.0
        %1667 = vmatprep.subr.mxu0 0.0
        %1668 = vmatpush1.msra.mxu0 0.0
        %1669 = vmatprep.subr.mxu0 0.0
        %1670 = vmatpush1.msra.mxu0 0.0
        %1671 = vmatprep.subr.mxu0 0.0
        %1672 = vmatpush1.msra.mxu0 0.0
        %1673 = vmatprep.subr.mxu0 0.0
        %1674 = vmatpush1.msra.mxu0 0.0
        %1675 = vmatprep.subr.mxu0 0.0
        %1676 = vmatpush1.msra.mxu0 0.0
        %1677 = vmatprep.subr.mxu0 0.0
        %1678 = vmatpush1.msra.mxu0 0.0
        %1679 = vmatprep.subr.mxu0 0.0
        %1680 = vmatpush1.msra.mxu0 0.0
        %1681 = vmatprep.subr.mxu0 0.0
        %1682 = vmatpush1.msra.mxu0 0.0
        %1683 = vmatprep.subr.mxu0 0.0
        %1684 = vmatpush1.msra.mxu0 0.0
        %1685 = vmatprep.subr.mxu0 0.0
        %1686 = vmatpush1.msra.mxu0 0.0
        %1687 = vmatprep.subr.mxu0 0.0
        %1688 = vmatpush1.msra.mxu0 0.0
        %1689 = vmatprep.subr.mxu0 0.0
        %1690 = vmatpush1.msra.mxu0 0.0
        %1691 = vmatprep.subr.mxu0 0.0
        %1692 = vmatpush1.msra.mxu0 0.0
        %1693 = vmatprep.subr.mxu0 0.0
        %1694 = vmatpush1.msra.mxu0 0.0
        %1695 = vmatprep.subr.mxu0 0.0
        %1696 = vmatpush1.msra.mxu0 0.0
        %1697 = vmatprep.subr.mxu0 0.0
        %1698 = vmatpush1.msra.mxu0 0.0
        %1699 = vmatprep.subr.mxu0 0.0
        %1700 = vmatpush1.msra.mxu0 0.0
        %1701 = vmatprep.subr.mxu0 0.0
        %1702 = vmatpush1.msra.mxu0 0.0
        %1703 = vmatprep.subr.mxu0 0.0
        %1704 = vmatpush1.msra.mxu0 0.0
        %1705 = vmatprep.subr.mxu0 0.0
        %1706 = vmatpush1.msra.mxu0 0.0
        %1707 = vmatprep.subr.mxu0 0.0
        %1708 = vmatpush1.msra.mxu0 0.0
        %1709 = vmatprep.mubr.f32.mxu0 0.0
        %1710 = vmatmul.mubr.f32.gmra.mrb[0].mxu0 %v186
        %v1711 = vpop.f32.mrb[0].mxu0
        %v1712 = vadd.f32 0.0, %v1711
        %v1713 = vpop.f32.mrb[0].mxu0
        %1714 = vmatprep.mubr.f32.mxu0 0.0
        %1715 = vmatmul.mubr.f32.gmra.mrb[0].mxu0 %v189
        %v1716 = vpop.f32.mrb[0].mxu0
        %v1717 = vadd.f32 0.0, %v1716
        %v1718 = vpop.f32.mrb[0].mxu0
        %1719 = vdwg.mxu0
        %1720 = vmatprep.subr.mxu0 0.0
        %1721 = vmatpush1.msra.mxu0 %v1640
        %1722 = vmatprep.subr.mxu0 0.0
        %1723 = vmatpush1.msra.mxu0 %v1641
        %1724 = vmatprep.subr.mxu0 0.0
        %1725 = vmatpush1.msra.mxu0 0.0
        %1726 = vmatprep.subr.mxu0 0.0
        %1727 = vmatpush1.msra.mxu0 0.0
        %1728 = vmatprep.subr.mxu0 0.0
        %1729 = vmatpush1.msra.mxu0 0.0
        %1730 = vmatprep.subr.mxu0 0.0
        %1731 = vmatpush1.msra.mxu0 0.0
        %1732 = vmatprep.subr.mxu0 0.0
        %1733 = vmatpush1.msra.mxu0 0.0
        %1734 = vmatprep.subr.mxu0 0.0
        %1735 = vmatpush1.msra.mxu0 0.0
        %1736 = vmatprep.subr.mxu0 0.0
        %1737 = vmatpush1.msra.mxu0 0.0
        %1738 = vmatprep.subr.mxu0 0.0
        %1739 = vmatpush1.msra.mxu0 0.0
        %1740 = vmatprep.subr.mxu0 0.0
        %1741 = vmatpush1.msra.mxu0 0.0
        %1742 = vmatprep.subr.mxu0 0.0
        %1743 = vmatpush1.msra.mxu0 0.0
        %1744 = vmatprep.subr.mxu0 0.0
        %1745 = vmatpush1.msra.mxu0 0.0
        %1746 = vmatprep.subr.mxu0 0.0
        %1747 = vmatpush1.msra.mxu0 0.0
        %1748 = vmatprep.subr.mxu0 0.0
        %1749 = vmatpush1.msra.mxu0 0.0
        %1750 = vmatprep.subr.mxu0 0.0
        %1751 = vmatpush1.msra.mxu0 0.0
        %1752 = vmatprep.subr.mxu0 0.0
        %1753 = vmatpush1.msra.mxu0 0.0
        %1754 = vmatprep.subr.mxu0 0.0
        %1755 = vmatpush1.msra.mxu0 0.0
        %1756 = vmatprep.subr.mxu0 0.0
        %1757 = vmatpush1.msra.mxu0 0.0
        %1758 = vmatprep.subr.mxu0 0.0
        %1759 = vmatpush1.msra.mxu0 0.0
        %1760 = vmatprep.subr.mxu0 0.0
        %1761 = vmatpush1.msra.mxu0 0.0
        %1762 = vmatprep.subr.mxu0 0.0
        %1763 = vmatpush1.msra.mxu0 0.0
        %1764 = vmatprep.subr.mxu0 0.0
        %1765 = vmatpush1.msra.mxu0 0.0
        %1766 = vmatprep.subr.mxu0 0.0
        %1767 = vmatpush1.msra.mxu0 0.0
        %1768 = vmatprep.subr.mxu0 0.0
        %1769 = vmatpush1.msra.mxu0 0.0
        %1770 = vmatprep.subr.mxu0 0.0
        %1771 = vmatpush1.msra.mxu0 0.0
        %1772 = vmatprep.subr.mxu0 0.0
        %1773 = vmatpush1.msra.mxu0 0.0
        %1774 = vmatprep.subr.mxu0 0.0
        %1775 = vmatpush1.msra.mxu0 0.0
        %1776 = vmatprep.subr.mxu0 0.0
        %1777 = vmatpush1.msra.mxu0 0.0
        %1778 = vmatprep.subr.mxu0 0.0
        %1779 = vmatpush1.msra.mxu0 0.0
        %1780 = vmatprep.subr.mxu0 0.0
        %1781 = vmatpush1.msra.mxu0 0.0
        %1782 = vmatprep.subr.mxu0 0.0
        %1783 = vmatpush1.msra.mxu0 0.0
        %1784 = vmatprep.mubr.f32.mxu0 0.0
        %1785 = vmatmul.mubr.f32.gmra.mrb[0].mxu0 %v267
        %v1786 = vpop.f32.mrb[0].mxu0
        %v1787 = vadd.f32 %v1712, %v1786
        %v1788 = vpop.f32.mrb[0].mxu0
        %1789 = vmatprep.mubr.f32.mxu0 0.0
        %1790 = vmatmul.mubr.f32.gmra.mrb[0].mxu0 %v270
        %v1791 = vpop.f32.mrb[0].mxu0
        %v1792 = vadd.f32 %v1717, %v1791
        %v1793 = vpop.f32.mrb[0].mxu0
        %1794 = vdwg.mxu0
        %v1795 = vmax.f32 %v1787, 0.0
        %v1796 = vmax.f32 %v1792, 0.0
        %s1797 = scalar_lea.vmem %s168, 112
        %v1798 = vld [vmem:[%s1797] sm:$0xff]
        %v1799 = vld [vmem:[%s1797 + $0x8] sm:$0xff]
        %s1800 = scalar_lea.vmem %s168, 240
        %v1801 = vld [vmem:[%s1800] sm:$0xff]
        %v1802 = vld [vmem:[%s1800 + $0x8] sm:$0xff]
        %1803 = vmatprep.subr.mxu0 0.0
        %1804 = vmatpush1.msra.mxu0 %v1801
        %1805 = vmatprep.subr.mxu0 0.0
        %1806 = vmatpush1.msra.mxu0 %v1802
        %1807 = vmatprep.subr.mxu0 0.0
        %1808 = vmatpush1.msra.mxu0 0.0
        %1809 = vmatprep.subr.mxu0 0.0
        %1810 = vmatpush1.msra.mxu0 0.0
        %1811 = vmatprep.subr.mxu0 0.0
        %1812 = vmatpush1.msra.mxu0 0.0
        %1813 = vmatprep.subr.mxu0 0.0
        %1814 = vmatpush1.msra.mxu0 0.0
        %1815 = vmatprep.subr.mxu0 0.0
        %1816 = vmatpush1.msra.mxu0 0.0
        %1817 = vmatprep.subr.mxu0 0.0
        %1818 = vmatpush1.msra.mxu0 0.0
        %1819 = vmatprep.subr.mxu0 0.0
        %1820 = vmatpush1.msra.mxu0 0.0
        %1821 = vmatprep.subr.mxu0 0.0
        %1822 = vmatpush1.msra.mxu0 0.0
        %1823 = vmatprep.subr.mxu0 0.0
        %1824 = vmatpush1.msra.mxu0 0.0
        %1825 = vmatprep.subr.mxu0 0.0
        %1826 = vmatpush1.msra.mxu0 0.0
        %1827 = vmatprep.subr.mxu0 0.0
        %1828 = vmatpush1.msra.mxu0 0.0
        %1829 = vmatprep.subr.mxu0 0.0
        %1830 = vmatpush1.msra.mxu0 0.0
        %1831 = vmatprep.subr.mxu0 0.0
        %1832 = vmatpush1.msra.mxu0 0.0
        %1833 = vmatprep.subr.mxu0 0.0
        %1834 = vmatpush1.msra.mxu0 0.0
        %1835 = vmatprep.subr.mxu0 0.0
        %1836 = vmatpush1.msra.mxu0 0.0
        %1837 = vmatprep.subr.mxu0 0.0
        %1838 = vmatpush1.msra.mxu0 0.0
        %1839 = vmatprep.subr.mxu0 0.0
        %1840 = vmatpush1.msra.mxu0 0.0
        %1841 = vmatprep.subr.mxu0 0.0
        %1842 = vmatpush1.msra.mxu0 0.0
        %1843 = vmatprep.subr.mxu0 0.0
        %1844 = vmatpush1.msra.mxu0 0.0
        %1845 = vmatprep.subr.mxu0 0.0
        %1846 = vmatpush1.msra.mxu0 0.0
        %1847 = vmatprep.subr.mxu0 0.0
        %1848 = vmatpush1.msra.mxu0 0.0
        %1849 = vmatprep.subr.mxu0 0.0
        %1850 = vmatpush1.msra.mxu0 0.0
        %1851 = vmatprep.subr.mxu0 0.0
        %1852 = vmatpush1.msra.mxu0 0.0
        %1853 = vmatprep.subr.mxu0 0.0
        %1854 = vmatpush1.msra.mxu0 0.0
        %1855 = vmatprep.subr.mxu0 0.0
        %1856 = vmatpush1.msra.mxu0 0.0
        %1857 = vmatprep.subr.mxu0 0.0
        %1858 = vmatpush1.msra.mxu0 0.0
        %1859 = vmatprep.subr.mxu0 0.0
        %1860 = vmatpush1.msra.mxu0 0.0
        %1861 = vmatprep.subr.mxu0 0.0
        %1862 = vmatpush1.msra.mxu0 0.0
        %1863 = vmatprep.subr.mxu0 0.0
        %1864 = vmatpush1.msra.mxu0 0.0
        %1865 = vmatprep.subr.mxu0 0.0
        %1866 = vmatpush1.msra.mxu0 0.0
        %1867 = vmatprep.mubr.f32.mxu0 0.0
        %1868 = vmatmul.mubr.f32.gmra.mrb[0].mxu0 %v186
        %v1869 = vpop.f32.mrb[0].mxu0
        %v1870 = vadd.f32 0.0, %v1869
        %v1871 = vpop.f32.mrb[0].mxu0
        %1872 = vmatprep.mubr.f32.mxu0 0.0
        %1873 = vmatmul.mubr.f32.gmra.mrb[0].mxu0 %v189
        %v1874 = vpop.f32.mrb[0].mxu0
        %v1875 = vadd.f32 0.0, %v1874
        %v1876 = vpop.f32.mrb[0].mxu0
        %1877 = vdwg.mxu0
        %1878 = vmatprep.subr.mxu0 0.0
        %1879 = vmatpush1.msra.mxu0 %v1798
        %1880 = vmatprep.subr.mxu0 0.0
        %1881 = vmatpush1.msra.mxu0 %v1799
        %1882 = vmatprep.subr.mxu0 0.0
        %1883 = vmatpush1.msra.mxu0 0.0
        %1884 = vmatprep.subr.mxu0 0.0
        %1885 = vmatpush1.msra.mxu0 0.0
        %1886 = vmatprep.subr.mxu0 0.0
        %1887 = vmatpush1.msra.mxu0 0.0
        %1888 = vmatprep.subr.mxu0 0.0
        %1889 = vmatpush1.msra.mxu0 0.0
        %1890 = vmatprep.subr.mxu0 0.0
        %1891 = vmatpush1.msra.mxu0 0.0
        %1892 = vmatprep.subr.mxu0 0.0
        %1893 = vmatpush1.msra.mxu0 0.0
        %1894 = vmatprep.subr.mxu0 0.0
        %1895 = vmatpush1.msra.mxu0 0.0
        %1896 = vmatprep.subr.mxu0 0.0
        %1897 = vmatpush1.msra.mxu0 0.0
        %1898 = vmatprep.subr.mxu0 0.0
        %1899 = vmatpush1.msra.mxu0 0.0
        %1900 = vmatprep.subr.mxu0 0.0
        %1901 = vmatpush1.msra.mxu0 0.0
        %1902 = vmatprep.subr.mxu0 0.0
        %1903 = vmatpush1.msra.mxu0 0.0
        %1904 = vmatprep.subr.mxu0 0.0
        %1905 = vmatpush1.msra.mxu0 0.0
        %1906 = vmatprep.subr.mxu0 0.0
        %1907 = vmatpush1.msra.mxu0 0.0
        %1908 = vmatprep.subr.mxu0 0.0
        %1909 = vmatpush1.msra.mxu0 0.0
        %1910 = vmatprep.subr.mxu0 0.0
        %1911 = vmatpush1.msra.mxu0 0.0
        %1912 = vmatprep.subr.mxu0 0.0
        %1913 = vmatpush1.msra.mxu0 0.0
        %1914 = vmatprep.subr.mxu0 0.0
        %1915 = vmatpush1.msra.mxu0 0.0
        %1916 = vmatprep.subr.mxu0 0.0
        %1917 = vmatpush1.msra.mxu0 0.0
        %1918 = vmatprep.subr.mxu0 0.0
        %1919 = vmatpush1.msra.mxu0 0.0
        %1920 = vmatprep.subr.mxu0 0.0
        %1921 = vmatpush1.msra.mxu0 0.0
        %1922 = vmatprep.subr.mxu0 0.0
        %1923 = vmatpush1.msra.mxu0 0.0
        %1924 = vmatprep.subr.mxu0 0.0
        %1925 = vmatpush1.msra.mxu0 0.0
        %1926 = vmatprep.subr.mxu0 0.0
        %1927 = vmatpush1.msra.mxu0 0.0
        %1928 = vmatprep.subr.mxu0 0.0
        %1929 = vmatpush1.msra.mxu0 0.0
        %1930 = vmatprep.subr.mxu0 0.0
        %1931 = vmatpush1.msra.mxu0 0.0
        %1932 = vmatprep.subr.mxu0 0.0
        %1933 = vmatpush1.msra.mxu0 0.0
        %1934 = vmatprep.subr.mxu0 0.0
        %1935 = vmatpush1.msra.mxu0 0.0
        %1936 = vmatprep.subr.mxu0 0.0
        %1937 = vmatpush1.msra.mxu0 0.0
        %1938 = vmatprep.subr.mxu0 0.0
        %1939 = vmatpush1.msra.mxu0 0.0
        %1940 = vmatprep.subr.mxu0 0.0
        %1941 = vmatpush1.msra.mxu0 0.0
        %1942 = vmatprep.mubr.f32.mxu0 0.0
        %1943 = vmatmul.mubr.f32.gmra.mrb[0].mxu0 %v267
        %v1944 = vpop.f32.mrb[0].mxu0
        %v1945 = vadd.f32 %v1870, %v1944
        %v1946 = vpop.f32.mrb[0].mxu0
        %1947 = vmatprep.mubr.f32.mxu0 0.0
        %1948 = vmatmul.mubr.f32.gmra.mrb[0].mxu0 %v270
        %v1949 = vpop.f32.mrb[0].mxu0
        %v1950 = vadd.f32 %v1875, %v1949
        %v1951 = vpop.f32.mrb[0].mxu0
        %1952 = vdwg.mxu0
        %v1953 = vmax.f32 %v1945, 0.0
        %v1954 = vmax.f32 %v1950, 0.0
        %v1956 = vsel %vm184, %v1953, 0
        %v1959 = vsel %vm184, %v1954, 0
        %1961 = vmatprep.subr.mxu0 0.0
        %1962 = vmatpush1.msra.mxu0 %v177
        %1963 = vmatprep.subr.mxu0 0.0
        %1964 = vmatpush1.msra.mxu0 %v178
        %1965 = vmatprep.subr.mxu0 0.0
        %1966 = vmatpush1.msra.mxu0 0.0
        %1967 = vmatprep.subr.mxu0 0.0
        %1968 = vmatpush1.msra.mxu0 0.0
        %1969 = vmatprep.subr.mxu0 0.0
        %1970 = vmatpush1.msra.mxu0 0.0
        %1971 = vmatprep.subr.mxu0 0.0
        %1972 = vmatpush1.msra.mxu0 0.0
        %1973 = vmatprep.subr.mxu0 0.0
        %1974 = vmatpush1.msra.mxu0 0.0
        %1975 = vmatprep.subr.mxu0 0.0
        %1976 = vmatpush1.msra.mxu0 0.0
        %1977 = vmatprep.subr.mxu0 0.0
        %1978 = vmatpush1.msra.mxu0 0.0
        %1979 = vmatprep.subr.mxu0 0.0
        %1980 = vmatpush1.msra.mxu0 0.0
        %1981 = vmatprep.subr.mxu0 0.0
        %1982 = vmatpush1.msra.mxu0 0.0
        %1983 = vmatprep.subr.mxu0 0.0
        %1984 = vmatpush1.msra.mxu0 0.0
        %1985 = vmatprep.subr.mxu0 0.0
        %1986 = vmatpush1.msra.mxu0 0.0
        %1987 = vmatprep.subr.mxu0 0.0
        %1988 = vmatpush1.msra.mxu0 0.0
        %1989 = vmatprep.subr.mxu0 0.0
        %1990 = vmatpush1.msra.mxu0 0.0
        %1991 = vmatprep.subr.mxu0 0.0
        %1992 = vmatpush1.msra.mxu0 0.0
        %1993 = vmatprep.subr.mxu0 0.0
        %1994 = vmatpush1.msra.mxu0 0.0
        %1995 = vmatprep.subr.mxu0 0.0
        %1996 = vmatpush1.msra.mxu0 0.0
        %1997 = vmatprep.subr.mxu0 0.0
        %1998 = vmatpush1.msra.mxu0 0.0
        %1999 = vmatprep.subr.mxu0 0.0
        %2000 = vmatpush1.msra.mxu0 0.0
        %2001 = vmatprep.subr.mxu0 0.0
        %2002 = vmatpush1.msra.mxu0 0.0
        %2003 = vmatprep.subr.mxu0 0.0
        %2004 = vmatpush1.msra.mxu0 0.0
        %2005 = vmatprep.subr.mxu0 0.0
        %2006 = vmatpush1.msra.mxu0 0.0
        %2007 = vmatprep.subr.mxu0 0.0
        %2008 = vmatpush1.msra.mxu0 0.0
        %2009 = vmatprep.subr.mxu0 0.0
        %2010 = vmatpush1.msra.mxu0 0.0
        %2011 = vmatprep.subr.mxu0 0.0
        %2012 = vmatpush1.msra.mxu0 0.0
        %2013 = vmatprep.subr.mxu0 0.0
        %2014 = vmatpush1.msra.mxu0 0.0
        %2015 = vmatprep.subr.mxu0 0.0
        %2016 = vmatpush1.msra.mxu0 0.0
        %2017 = vmatprep.subr.mxu0 0.0
        %2018 = vmatpush1.msra.mxu0 0.0
        %2019 = vmatprep.subr.mxu0 0.0
        %2020 = vmatpush1.msra.mxu0 0.0
        %2021 = vmatprep.subr.mxu0 0.0
        %2022 = vmatpush1.msra.mxu0 0.0
        %2023 = vmatprep.subr.mxu0 0.0
        %2024 = vmatpush1.msra.mxu0 0.0
        %2025 = vmatprep.mubr.f32.mxu0 0.0
        %2026 = vmatmul.mubr.f32.gmra.mrb[0].mxu0 %v1956
        %v2027 = vpop.f32.mrb[0].mxu0
        %v2028 = vadd.f32 0.0, %v2027
        %v2029 = vpop.f32.mrb[0].mxu0
        %2030 = vmatprep.mubr.f32.mxu0 0.0
        %2031 = vmatmul.mubr.f32.gmra.mrb[0].mxu0 %v1959
        %v2032 = vpop.f32.mrb[0].mxu0
        %v2033 = vadd.f32 0.0, %v2032
        %v2034 = vpop.f32.mrb[0].mxu0
        %2035 = vdwg.mxu0
        %v2037 = vsel %vm184, %v1795, 0
        %v2040 = vsel %vm184, %v1796, 0
        %2042 = vmatprep.subr.mxu0 0.0
        %2043 = vmatpush1.msra.mxu0 %v174
        %2044 = vmatprep.subr.mxu0 0.0
        %2045 = vmatpush1.msra.mxu0 %v175
        %2046 = vmatprep.subr.mxu0 0.0
        %2047 = vmatpush1.msra.mxu0 0.0
        %2048 = vmatprep.subr.mxu0 0.0
        %2049 = vmatpush1.msra.mxu0 0.0
        %2050 = vmatprep.subr.mxu0 0.0
        %2051 = vmatpush1.msra.mxu0 0.0
        %2052 = vmatprep.subr.mxu0 0.0
        %2053 = vmatpush1.msra.mxu0 0.0
        %2054 = vmatprep.subr.mxu0 0.0
        %2055 = vmatpush1.msra.mxu0 0.0
        %2056 = vmatprep.subr.mxu0 0.0
        %2057 = vmatpush1.msra.mxu0 0.0
        %2058 = vmatprep.subr.mxu0 0.0
        %2059 = vmatpush1.msra.mxu0 0.0
        %2060 = vmatprep.subr.mxu0 0.0
        %2061 = vmatpush1.msra.mxu0 0.0
        %2062 = vmatprep.subr.mxu0 0.0
        %2063 = vmatpush1.msra.mxu0 0.0
        %2064 = vmatprep.subr.mxu0 0.0
        %2065 = vmatpush1.msra.mxu0 0.0
        %2066 = vmatprep.subr.mxu0 0.0
        %2067 = vmatpush1.msra.mxu0 0.0
        %2068 = vmatprep.subr.mxu0 0.0
        %2069 = vmatpush1.msra.mxu0 0.0
        %2070 = vmatprep.subr.mxu0 0.0
        %2071 = vmatpush1.msra.mxu0 0.0
        %2072 = vmatprep.subr.mxu0 0.0
        %2073 = vmatpush1.msra.mxu0 0.0
        %2074 = vmatprep.subr.mxu0 0.0
        %2075 = vmatpush1.msra.mxu0 0.0
        %2076 = vmatprep.subr.mxu0 0.0
        %2077 = vmatpush1.msra.mxu0 0.0
        %2078 = vmatprep.subr.mxu0 0.0
        %2079 = vmatpush1.msra.mxu0 0.0
        %2080 = vmatprep.subr.mxu0 0.0
        %2081 = vmatpush1.msra.mxu0 0.0
        %2082 = vmatprep.subr.mxu0 0.0
        %2083 = vmatpush1.msra.mxu0 0.0
        %2084 = vmatprep.subr.mxu0 0.0
        %2085 = vmatpush1.msra.mxu0 0.0
        %2086 = vmatprep.subr.mxu0 0.0
        %2087 = vmatpush1.msra.mxu0 0.0
        %2088 = vmatprep.subr.mxu0 0.0
        %2089 = vmatpush1.msra.mxu0 0.0
        %2090 = vmatprep.subr.mxu0 0.0
        %2091 = vmatpush1.msra.mxu0 0.0
        %2092 = vmatprep.subr.mxu0 0.0
        %2093 = vmatpush1.msra.mxu0 0.0
        %2094 = vmatprep.subr.mxu0 0.0
        %2095 = vmatpush1.msra.mxu0 0.0
        %2096 = vmatprep.subr.mxu0 0.0
        %2097 = vmatpush1.msra.mxu0 0.0
        %2098 = vmatprep.subr.mxu0 0.0
        %2099 = vmatpush1.msra.mxu0 0.0
        %2100 = vmatprep.subr.mxu0 0.0
        %2101 = vmatpush1.msra.mxu0 0.0
        %2102 = vmatprep.subr.mxu0 0.0
        %2103 = vmatpush1.msra.mxu0 0.0
        %2104 = vmatprep.subr.mxu0 0.0
        %2105 = vmatpush1.msra.mxu0 0.0
        %2106 = vmatprep.mubr.f32.mxu0 0.0
        %2107 = vmatmul.mubr.f32.gmra.mrb[0].mxu0 %v2037
        %v2108 = vpop.f32.mrb[0].mxu0
        %v2109 = vadd.f32 %v2028, %v2108
        %v2110 = vpop.f32.mrb[0].mxu0
        %2111 = vmatprep.mubr.f32.mxu0 0.0
        %2112 = vmatmul.mubr.f32.gmra.mrb[0].mxu0 %v2040
        %v2113 = vpop.f32.mrb[0].mxu0
        %v2114 = vadd.f32 %v2033, %v2113
        %v2115 = vpop.f32.mrb[0].mxu0
        %2116 = vdwg.mxu0
        %v2117 = vmax.f32 %v2109, 0.0
        %v2118 = vmax.f32 %v2114, 0.0
        %s2119 = scalar_lea.vmem %s163, 48 [#allocation2]
        %2120 = vst.msk [vmem:[%s2119] sm:$0xff] %vm184, %v2117
        %2121 = vst.msk [vmem:[%s2119 + $0x8] sm:$0xff] %vm184, %v2118
        %s2122 = sand.u32 %s93, 1
        %s2123 = scalar_lea.sflag [#allocation3], %s2122
        %s2124 = sand.u32 %s93, 1
        %s2125 = smul.addr %s2124, 64
        %s2126 = scalar_lea.vmem [#allocation2], %s2125
        // Predicated region
        $region33: #{feature_concat_forward.3} parent=31 // pred_check
          %p2127 = pneg %p103
        $region34: #{feature_concat_forward.3} parent=31 // pred_check_branch
          %2129 = sbr.rel (%p2127) target = $region36
        $region35: #{feature_concat_forward.3} parent=31 // pred_region
          %s2131 = ssub.s32 1024, 1024
          %2132 = vsyncadd %s2123, %s2131
          %s2133 = smul.addr %s17, 8
          %s2134 = smul.addr %s2133, 128
          %s2135 = scalar_lea.hbm %s3, %s2134
          %s2136 = sshll.u32 %s2126, 4
          %s2137 = int_to_ptr.vmem [resolvable:$true] %s2136
          %2142 = dma.vmem_to_hbm [thread:$0]  %s2137, 1024, %s2135, %s2123, 128, 128, 8
        $region36: #{feature_concat_forward.3} parent=31 // pred_fallthru
          _
      $region32: #{feature_concat_forward.3} parent=5 // pred_fallthru
        _
      %p2143 = scmp.le.s32.totalorder 2, %s12
      // Predicated region
      $region37: #{feature_concat_forward.3} parent=5 // pred_check
        %p2144 = pneg %p2143
      $region38: #{feature_concat_forward.3} parent=5 // pred_check_branch
        %2146 = sbr.rel (%p2144) target = $region40
      $region39: #{feature_concat_forward.3} parent=5 // pred_region
        %s2147 = ssub.s32 %s12, 2
        // Predicated region
        $region41: #{feature_concat_forward.3} parent=39 // pred_check
          %p2148 = pneg %p109
        $region42: #{feature_concat_forward.3} parent=39 // pred_check_branch
          %2150 = sbr.rel (%p2148) target = $region44
        $region43: #{feature_concat_forward.3} parent=39 // pred_region
          %s2151 = sand.u32 %s94, 1
          %s2152 = scalar_lea.sflag [#allocation3], %s2151
          %s2153 = sand.u32 %s94, 1
          %s2154 = smul.addr %s2153, 64
          %s2155 = scalar_lea.vmem [#allocation2], %s2154
          %2156 = dma.done %s2152, 1024
        $region44: #{feature_concat_forward.3} parent=39 // pred_fallthru
          _
      $region40: #{feature_concat_forward.3} parent=5 // pred_fallthru
        _
    $region6: #{feature_concat_forward.3} parent=1 // loop_footer
      %s16 = sadd.s32 1, %s12
    $region7: #{feature_concat_forward.3} parent=1 // loop_footer_branch
      %11 = sbr.rel target = $region3
    $region8: #{feature_concat_forward.3} parent=1 // loop_exit
      _
    %2157 = vsyncpa [#allocation3], 1
    %s2158 = scalar_lea.sflag [#allocation3], 1
    %2159 = vsyncpa %s2158, 1

</llo_original>
